<compile_context>
chip_gen: v7x
topology: tpu7x:2x2x1
jax: 0.10.0
libtpu: 0.0.40
codegen_flags: <defaults>
</compile_context>

<pallas_src>
import math

import jax
import jax.numpy as jnp
from jax import lax
from jax.experimental import pallas as pl
from jax.experimental.pallas import tpu as pltpu


def _lovasz_softmax_kernel(gts_ref, probas_i_ref, labels_i_ref,
                           probas_j_ref, labels_jrow_ref, labels_jcol_ref,
                           out_ref, acc_ref):
    # gts_ref:         (1, 128)        f32  lane c = #pixels of class c
    # probas_i_ref:    (TILE_P, C)     f32  owner-pixel tile of probabilities
    # labels_i_ref:    (TILE_P, 1)     i32  owner-pixel tile of labels
    # probas_j_ref:    (C, TILE_J)     f32  comparison tile (transposed probas)
    # labels_jrow_ref: (1, TILE_J)     i32  comparison tile of labels (row)
    # labels_jcol_ref: (TILE_J, 1)     i32  comparison tile of labels (column)
    # out_ref:         (8, 128)        f32  per-i-tile partial loss; [0, c] = class c
    # acc_ref:         (TILE_P, 128)   f32  scratch: lane c = cumfg_c, lane 64+c = cnt_c
    TILE_P, C = probas_i_ref.shape
    TILE_J = labels_jrow_ref.shape[1]
    ti = pl.program_id(0)
    tj = pl.program_id(1)
    num_j = pl.num_programs(1)

    @pl.when(tj == 0)
    def _init():
        acc_ref[...] = jnp.zeros_like(acc_ref)

    probas_i = probas_i_ref[...]
    labels_i = labels_i_ref[...]
    probas_j = probas_j_ref[...]
    labels_jrow = labels_jrow_ref[...]
    labels_jcol = labels_jcol_ref[...]

    # Tie-break mask, hoisted out of the class loop: when errors tie, element j
    # sorts at-or-before element i iff j <= i (global pixel index).
    row_ids = ti * TILE_P + lax.broadcasted_iota(jnp.int32, (TILE_P, TILE_J), 0)
    col_ids = tj * TILE_J + lax.broadcasted_iota(jnp.int32, (TILE_P, TILE_J), 1)
    tie = col_ids <= row_ids

    lane_j = lax.broadcasted_iota(jnp.int32, (TILE_J, 128), 1)

    acc = acc_ref[...]
    # C is small and static here -> unrolled per-class loop.
    for c in range(C):
        fg_i = (labels_i == c).astype(jnp.float32)                    # (TILE_P, 1)
        err_i = jnp.abs(fg_i - probas_i[:, c:c + 1])                  # (TILE_P, 1)
        fg_jrow = (labels_jrow == c).astype(jnp.float32)              # (1, TILE_J)
        err_j = jnp.abs(fg_jrow - probas_j[c:c + 1, :])               # (1, TILE_J)

        # before[i, j] == 1  <=>  element j sorts at-or-before element i.
        # Compares in f32 (bitwise-identical on both sides); 0/1 mask is exact
        # in bf16 at the MXU boundary.
        gt = err_j > err_i
        eq = err_j == err_i
        before_bf = jnp.where(gt | (eq & tie), 1.0, 0.0).astype(jnp.bfloat16)

        # rhs_c: lane c carries fg_c(j) (-> cumfg), lane 64+c carries ones
        # (-> rank).  Built in-kernel from the labels j-tile.
        rhs_mask = ((lane_j == c) & (labels_jcol == c)) | (lane_j == 64 + c)
        rhs_bf = jnp.where(rhs_mask, 1.0, 0.0).astype(jnp.bfloat16)   # (TILE_J, 128)

        # One MXU matmul per class; classes accumulate into disjoint lanes.
        acc = acc + jnp.dot(before_bf, rhs_bf,
                            preferred_element_type=jnp.float32)       # (TILE_P, 128)

    acc_ref[...] = acc

    @pl.when(tj == num_j - 1)
    def _finish():
        gts_row = gts_ref[...]
        sub8 = lax.broadcasted_iota(jnp.int32, (8, 128), 0)
        lane8 = lax.broadcasted_iota(jnp.int32, (8, 128), 1)
        out = jnp.zeros((8, 128), jnp.float32)
        for c in range(C):
            gts = gts_row[0:1, c:c + 1]                               # (1, 1)
            fg_i = (labels_i == c).astype(jnp.float32)                # (TILE_P, 1)
            err_i = jnp.abs(fg_i - probas_i[:, c:c + 1])              # (TILE_P, 1)
            cumfg = acc[:, c:c + 1]                                   # cumsum(fg_sorted) at rank
            cnt = acc[:, 64 + c:65 + c]                               # rank, 1-indexed

            # Direct lovasz_grad:  grad = jac(rank) - jac(rank - 1)
            inter = gts - cumfg
            union = gts + cnt - cumfg                                 # >= 1 always
            jac = 1.0 - inter / union
            inter_p = inter + fg_i                                    # gts - (cumfg - fg_i)
            union_p = union - 1.0 + fg_i                              # gts + (cnt-1) - (cumfg - fg_i)
            # Clamp only triggers for absent classes, which the wrapper masks out.
            jac_p = 1.0 - inter_p / jnp.maximum(union_p, 1.0)
            grad = jac - jac_p

            loss_c = jnp.sum(err_i * grad, axis=0, keepdims=True)     # (1, 1) tile partial
            out = out + jnp.where((sub8 == 0) & (lane8 == c), loss_c, 0.0)
        out_ref[...] = out


def lovasz_softmax_pallas(probas, labels, *, tile_p=128, tile_j=256):
    """probas: [B, C, H, W] float (class probabilities), labels: [B, H, W] int.

    tile_p / tile_j are generation knobs: 128/256 fits every generation's
    default scoped VMEM; on v6e (128 MiB VMEM) tile_p=256 fills the 256-wide
    MXU; on v7x keep the footprint under ~48 MiB (it already is by a wide
    margin with these defaults).
    """
    B, C, H, W = probas.shape
    assert C <= 64, "cumfg lanes [0,C) and cnt lanes [64,64+C) must fit 128 lanes"
    P = B * H * W

    probas_flat = jnp.transpose(probas, (0, 2, 3, 1)).reshape(P, C).astype(jnp.float32)
    labels_flat = labels.reshape(P).astype(jnp.int32)

    # Per-class pixel counts (tiny, XLA side).
    class_ids = jnp.arange(C, dtype=jnp.int32)
    gts = jnp.sum((labels_flat[:, None] == class_ids[None, :]).astype(jnp.float32),
                  axis=0)                                              # (C,)
    gts_row = jnp.zeros((1, 128), jnp.float32).at[0, :C].set(gts)

    # Pad P to a common multiple of the tile sizes with zero-error pixels:
    # label = C (never foreground), probas = 0 -> err = 0, loss contribution 0,
    # and (being last in index order with err 0) they never enter any real
    # pixel's rank.  Mathematically neutral.
    blk = (tile_p * tile_j) // math.gcd(tile_p, tile_j)
    P_pad = ((P + blk - 1) // blk) * blk
    assert P_pad < (1 << 24), "f32 rank accumulation exact only for P < 2^24"
    pad = P_pad - P
    probas_flat = jnp.pad(probas_flat, ((0, pad), (0, 0)))
    labels_flat = jnp.pad(labels_flat, (0, pad), constant_values=C)

    probas_t = jnp.transpose(probas_flat)                              # (C, P_pad)
    labels_col = labels_flat.reshape(P_pad, 1)
    labels_row = labels_flat.reshape(1, P_pad)

    num_i = P_pad // tile_p
    num_j = P_pad // tile_j

    out = pl.pallas_call(
        _lovasz_softmax_kernel,
        out_shape=jax.ShapeDtypeStruct((num_i * 8, 128), jnp.float32),
        grid=(num_i, num_j),
        in_specs=[
            pl.BlockSpec((1, 128), lambda ti, tj: (0, 0)),       # gts row (tiny)
            pl.BlockSpec((tile_p, C), lambda ti, tj: (ti, 0)),   # probas, i-tile
            pl.BlockSpec((tile_p, 1), lambda ti, tj: (ti, 0)),   # labels, i-tile
            pl.BlockSpec((C, tile_j), lambda ti, tj: (0, tj)),   # probas^T, j-tile
            pl.BlockSpec((1, tile_j), lambda ti, tj: (0, tj)),   # labels row, j-tile
            pl.BlockSpec((tile_j, 1), lambda ti, tj: (tj, 0)),   # labels col, j-tile
        ],
        out_specs=pl.BlockSpec((8, 128), lambda ti, tj: (ti, 0)),
        scratch_shapes=[pltpu.VMEM((tile_p, 128), jnp.float32)],
        compiler_params=pltpu.CompilerParams(
            dimension_semantics=("parallel", "arbitrary")),
    )(gts_row, probas_flat, labels_col, probas_t, labels_row, labels_col)

    # Reduce per-i-tile partials and take the mean over present classes.
    per_class = jnp.sum(out, axis=0)[:C]                              # (C,)
    present = gts > 0.0
    n_present = jnp.sum(present.astype(jnp.float32))
    loss = jnp.where(
        n_present > 0.0,
        jnp.sum(jnp.where(present, per_class, 0.0)) / jnp.maximum(n_present, 1.0),
        jnp.float32(0.0))
    return loss


def lovasz_softmax_ref(probas, labels):
    """Pure-JAX reference mirroring the PyTorch code (sort-based)."""
    B, C, H, W = probas.shape
    pf = jnp.transpose(probas, (0, 2, 3, 1)).reshape(-1, C).astype(jnp.float32)
    lf = labels.reshape(-1)
    loss_sum = jnp.float32(0.0)
    n_present = jnp.float32(0.0)
    for c in range(C):
        fg = (lf == c).astype(jnp.float32)
        present = jnp.sum(fg) > 0
        errors = jnp.abs(fg - pf[:, c])
        order = jnp.argsort(-errors)
        errors_sorted = errors[order]
        fg_sorted = fg[order]
        gts = jnp.sum(fg_sorted)
        inter = gts - jnp.cumsum(fg_sorted)
        union = gts + jnp.cumsum(1.0 - fg_sorted)
        jac = 1.0 - inter / union
        grad = jnp.concatenate([jac[:1], jac[1:] - jac[:-1]])
        loss_c = jnp.dot(errors_sorted, grad)
        loss_sum = loss_sum + jnp.where(present, loss_c, 0.0)
        n_present = n_present + present.astype(jnp.float32)
    return jnp.where(n_present > 0, loss_sum / jnp.maximum(n_present, 1.0), 0.0)


if __name__ == "__main__":
    key = jax.random.PRNGKey(0)
    k1, k2 = jax.random.split(key)
    B, C, H, W = 2, 4, 16, 16                       # P = 512 pixels -> grid (4, 2)
    logits = jax.random.normal(k1, (B, C, H, W), jnp.float32)
    probas = jax.nn.softmax(logits, axis=1)         # NCHW class probabilities
    labels = jax.random.randint(k2, (B, H, W), 0, C, jnp.int32)

    loss = lovasz_softmax_pallas(probas, labels)
    loss = jax.block_until_ready(loss)

    ref = lovasz_softmax_ref(probas, labels)
    assert jnp.allclose(loss, ref, atol=1e-4, rtol=1e-4), (loss, ref)
    print("KERNEL_OK")
</pallas_src>

<mosaic_0001>
module attributes {stable_mosaic.version = 11 : i64} {
  func.func @_lovasz_softmax_kernel(%arg0: i32, %arg1: i32, %arg2: memref<1x128xf32, #tpu.memory_space<vmem>>, %arg3: memref<128x4xf32, #tpu.memory_space<vmem>>, %arg4: memref<128x1xi32, #tpu.memory_space<vmem>>, %arg5: memref<4x256xf32, #tpu.memory_space<vmem>>, %arg6: memref<1x256xi32, #tpu.memory_space<vmem>>, %arg7: memref<256x1xi32, #tpu.memory_space<vmem>>, %arg8: memref<8x128xf32, #tpu.memory_space<vmem>>, %arg9: memref<128x128xf32, #tpu.memory_space<vmem>>) attributes {dimension_semantics = [#tpu.dimension_semantics<parallel>, #tpu.dimension_semantics<arbitrary>], iteration_bounds = array<i64: 4, 2>, scalar_prefetch = 0 : i64, scratch_operands = 1 : i64, tpu.core_type = #tpu.core_type<tc>, window_params = [{pipeline_mode = #tpu.pipeline_mode<synchronous>, transform_indices = @transform_0, window_bounds = array<i64: 1, 128>}, {transform_indices = @transform_1, window_bounds = array<i64: 128, 4>}, {transform_indices = @transform_2, window_bounds = array<i64: 128, 1>}, {transform_indices = @transform_3, window_bounds = array<i64: 4, 256>}, {transform_indices = @transform_4, window_bounds = array<i64: 1, 256>}, {transform_indices = @transform_5, window_bounds = array<i64: 256, 1>}, {transform_indices = @transform_6, window_bounds = array<i64: 8, 128>}]} {
    %c0_i32 = arith.constant 0 : i32
    %0 = arith.cmpi eq, %arg1, %c0_i32 : i32
    %1 = arith.extui %0 : i1 to i32
    %c0_i32_0 = arith.constant 0 : i32
    %2 = arith.cmpi ne, %1, %c0_i32_0 : i32
    scf.if %2 {
      %cst_48 = arith.constant 0.000000e+00 : f32
      %187 = vector.broadcast %cst_48 : f32 to vector<128x128xf32>
      %c0_49 = arith.constant 0 : index
      %c0_50 = arith.constant 0 : index
      %188 = vector.load %arg9[%c0_49, %c0_50] : memref<128x128xf32, #tpu.memory_space<vmem>>, vector<128x128xf32>
      tpu.vector_store %arg9[%c0_49, %c0_50], %187 {strides = array<i32>} : memref<128x128xf32, #tpu.memory_space<vmem>>, vector<128x128xf32>,
    } else {
    }
    %c0 = arith.constant 0 : index
    %c0_1 = arith.constant 0 : index
    %3 = vector.load %arg3[%c0, %c0_1] : memref<128x4xf32, #tpu.memory_space<vmem>>, vector<128x4xf32>
    %c0_2 = arith.constant 0 : index
    %c0_3 = arith.constant 0 : index
    %4 = vector.load %arg4[%c0_2, %c0_3] : memref<128x1xi32, #tpu.memory_space<vmem>>, vector<128x1xi32>
    %c0_4 = arith.constant 0 : index
    %c0_5 = arith.constant 0 : index
    %5 = vector.load %arg5[%c0_4, %c0_5] : memref<4x256xf32, #tpu.memory_space<vmem>>, vector<4x256xf32>
    %c0_6 = arith.constant 0 : index
    %c0_7 = arith.constant 0 : index
    %6 = vector.load %arg6[%c0_6, %c0_7] : memref<1x256xi32, #tpu.memory_space<vmem>>, vector<1x256xi32>
    %c0_8 = arith.constant 0 : index
    %c0_9 = arith.constant 0 : index
    %7 = vector.load %arg7[%c0_8, %c0_9] : memref<256x1xi32, #tpu.memory_space<vmem>>, vector<256x1xi32>
    %c128_i32 = arith.constant 128 : i32
    %8 = arith.muli %arg0, %c128_i32 : i32
    %9 = tpu.iota {dimensions = array<i32: 0>} : vector<128x256xi32>
    %10 = vector.broadcast %8 : i32 to vector<128x256xi32>
    %11 = arith.addi %10, %9 : vector<128x256xi32>
    %c256_i32 = arith.constant 256 : i32
    %12 = arith.muli %arg1, %c256_i32 : i32
    %13 = tpu.iota {dimensions = array<i32: 1>} : vector<128x256xi32>
    %14 = vector.broadcast %12 : i32 to vector<128x256xi32>
    %15 = arith.addi %14, %13 : vector<128x256xi32>
    %16 = arith.cmpi sle, %15, %11 : vector<128x256xi32>
    %17 = tpu.iota {dimensions = array<i32: 1>} : vector<256x128xi32>
    %c0_10 = arith.constant 0 : index
    %c0_11 = arith.constant 0 : index
    %18 = vector.load %arg9[%c0_10, %c0_11] : memref<128x128xf32, #tpu.memory_space<vmem>>, vector<128x128xf32>
    %c0_i32_12 = arith.constant 0 : i32
    %19 = vector.broadcast %c0_i32_12 : i32 to vector<128x1xi32>
    %20 = arith.cmpi eq, %4, %19 : vector<128x1xi32>
    %21 = arith.extui %20 : vector<128x1xi1> to vector<128x1xi32>
    %22 = arith.sitofp %21 : vector<128x1xi32> to vector<128x1xf32>
    %23 = vector.extract_strided_slice %3 {offsets = [0, 0], sizes = [128, 1], strides = [1, 1]} : vector<128x4xf32> to vector<128x1xf32>
    %24 = arith.subf %22, %23 : vector<128x1xf32>
    %25 = math.absf %24 : vector<128x1xf32>
    %c0_i32_13 = arith.constant 0 : i32
    %26 = vector.broadcast %c0_i32_13 : i32 to vector<1x256xi32>
    %27 = arith.cmpi eq, %6, %26 : vector<1x256xi32>
    %28 = arith.extui %27 : vector<1x256xi1> to vector<1x256xi32>
    %29 = arith.sitofp %28 : vector<1x256xi32> to vector<1x256xf32>
    %30 = vector.extract_strided_slice %5 {offsets = [0, 0], sizes = [1, 256], strides = [1, 1]} : vector<4x256xf32> to vector<1x256xf32>
    %31 = arith.subf %29, %30 : vector<1x256xf32>
    %32 = math.absf %31 : vector<1x256xf32>
    %33 = vector.broadcast %32 : vector<1x256xf32> to vector<128x256xf32>
    %34 = vector.broadcast %25 : vector<128x1xf32> to vector<128x256xf32>
    %35 = arith.cmpf ogt, %33, %34 : vector<128x256xf32>
    %36 = vector.broadcast %32 : vector<1x256xf32> to vector<128x256xf32>
    %37 = vector.broadcast %25 : vector<128x1xf32> to vector<128x256xf32>
    %38 = arith.cmpf oeq, %36, %37 : vector<128x256xf32>
    %39 = arith.andi %38, %16 : vector<128x256xi1>
    %40 = arith.ori %35, %39 : vector<128x256xi1>
    %cst = arith.constant 1.000000e+00 : f32
    %cst_14 = arith.constant 0.000000e+00 : f32
    %41 = vector.broadcast %cst : f32 to vector<128x256xf32>
    %42 = vector.broadcast %cst_14 : f32 to vector<128x256xf32>
    %43 = arith.select %40, %41, %42 : vector<128x256xi1>, vector<128x256xf32>
    %44 = arith.truncf %43 : vector<128x256xf32> to vector<128x256xbf16>
    %c0_i32_15 = arith.constant 0 : i32
    %45 = vector.broadcast %c0_i32_15 : i32 to vector<256x128xi32>
    %46 = arith.cmpi eq, %17, %45 : vector<256x128xi32>
    %c0_i32_16 = arith.constant 0 : i32
    %47 = vector.broadcast %c0_i32_16 : i32 to vector<256x1xi32>
    %48 = arith.cmpi eq, %7, %47 : vector<256x1xi32>
    %49 = vector.broadcast %48 : vector<256x1xi1> to vector<256x128xi1>
    %50 = arith.andi %46, %49 : vector<256x128xi1>
    %c64_i32 = arith.constant 64 : i32
    %51 = vector.broadcast %c64_i32 : i32 to vector<256x128xi32>
    %52 = arith.cmpi eq, %17, %51 : vector<256x128xi32>
    %53 = arith.ori %50, %52 : vector<256x128xi1>
    %cst_17 = arith.constant 1.000000e+00 : f32
    %cst_18 = arith.constant 0.000000e+00 : f32
    %54 = vector.broadcast %cst_17 : f32 to vector<256x128xf32>
    %55 = vector.broadcast %cst_18 : f32 to vector<256x128xf32>
    %56 = arith.select %53, %54, %55 : vector<256x128xi1>, vector<256x128xf32>
    %57 = arith.truncf %56 : vector<256x128xf32> to vector<256x128xbf16>
    %cst_19 = arith.constant dense<0.000000e+00> : vector<128x128xf32>
    %58 = tpu.matmul %44, %57, %cst_19 {dimension_numbers = #tpu.dot_dimension_numbers<[1], [0], [0], [1], [0, 0, 1, 1], [], []>} : vector<128x256xbf16>, vector<256x128xbf16>, vector<128x128xf32> -> vector<128x128xf32>
    %59 = arith.addf %18, %58 : vector<128x128xf32>
    %c1_i32 = arith.constant 1 : i32
    %60 = vector.broadcast %c1_i32 : i32 to vector<128x1xi32>
    %61 = arith.cmpi eq, %4, %60 : vector<128x1xi32>
    %62 = arith.extui %61 : vector<128x1xi1> to vector<128x1xi32>
    %63 = arith.sitofp %62 : vector<128x1xi32> to vector<128x1xf32>
    %64 = vector.extract_strided_slice %3 {offsets = [0, 1], sizes = [128, 1], strides = [1, 1]} : vector<128x4xf32> to vector<128x1xf32>
    %65 = arith.subf %63, %64 : vector<128x1xf32>
    %66 = math.absf %65 : vector<128x1xf32>
    %c1_i32_20 = arith.constant 1 : i32
    %67 = vector.broadcast %c1_i32_20 : i32 to vector<1x256xi32>
    %68 = arith.cmpi eq, %6, %67 : vector<1x256xi32>
    %69 = arith.extui %68 : vector<1x256xi1> to vector<1x256xi32>
    %70 = arith.sitofp %69 : vector<1x256xi32> to vector<1x256xf32>
    %71 = vector.extract_strided_slice %5 {offsets = [1, 0], sizes = [1, 256], strides = [1, 1]} : vector<4x256xf32> to vector<1x256xf32>
    %72 = arith.subf %70, %71 : vector<1x256xf32>
    %73 = math.absf %72 : vector<1x256xf32>
    %74 = vector.broadcast %73 : vector<1x256xf32> to vector<128x256xf32>
    %75 = vector.broadcast %66 : vector<128x1xf32> to vector<128x256xf32>
    %76 = arith.cmpf ogt, %74, %75 : vector<128x256xf32>
    %77 = vector.broadcast %73 : vector<1x256xf32> to vector<128x256xf32>
    %78 = vector.broadcast %66 : vector<128x1xf32> to vector<128x256xf32>
    %79 = arith.cmpf oeq, %77, %78 : vector<128x256xf32>
    %80 = arith.andi %79, %16 : vector<128x256xi1>
    %81 = arith.ori %76, %80 : vector<128x256xi1>
    %cst_21 = arith.constant 1.000000e+00 : f32
    %cst_22 = arith.constant 0.000000e+00 : f32
    %82 = vector.broadcast %cst_21 : f32 to vector<128x256xf32>
    %83 = vector.broadcast %cst_22 : f32 to vector<128x256xf32>
    %84 = arith.select %81, %82, %83 : vector<128x256xi1>, vector<128x256xf32>
    %85 = arith.truncf %84 : vector<128x256xf32> to vector<128x256xbf16>
    %c1_i32_23 = arith.constant 1 : i32
    %86 = vector.broadcast %c1_i32_23 : i32 to vector<256x128xi32>
    %87 = arith.cmpi eq, %17, %86 : vector<256x128xi32>
    %c1_i32_24 = arith.constant 1 : i32
    %88 = vector.broadcast %c1_i32_24 : i32 to vector<256x1xi32>
    %89 = arith.cmpi eq, %7, %88 : vector<256x1xi32>
    %90 = vector.broadcast %89 : vector<256x1xi1> to vector<256x128xi1>
    %91 = arith.andi %87, %90 : vector<256x128xi1>
    %c65_i32 = arith.constant 65 : i32
    %92 = vector.broadcast %c65_i32 : i32 to vector<256x128xi32>
    %93 = arith.cmpi eq, %17, %92 : vector<256x128xi32>
    %94 = arith.ori %91, %93 : vector<256x128xi1>
    %cst_25 = arith.constant 1.000000e+00 : f32
    %cst_26 = arith.constant 0.000000e+00 : f32
    %95 = vector.broadcast %cst_25 : f32 to vector<256x128xf32>
    %96 = vector.broadcast %cst_26 : f32 to vector<256x128xf32>
    %97 = arith.select %94, %95, %96 : vector<256x128xi1>, vector<256x128xf32>
    %98 = arith.truncf %97 : vector<256x128xf32> to vector<256x128xbf16>
    %cst_27 = arith.constant dense<0.000000e+00> : vector<128x128xf32>
    %99 = tpu.matmul %85, %98, %cst_27 {dimension_numbers = #tpu.dot_dimension_numbers<[1], [0], [0], [1], [0, 0, 1, 1], [], []>} : vector<128x256xbf16>, vector<256x128xbf16>, vector<128x128xf32> -> vector<128x128xf32>
    %100 = arith.addf %59, %99 : vector<128x128xf32>
    %c2_i32 = arith.constant 2 : i32
    %101 = vector.broadcast %c2_i32 : i32 to vector<128x1xi32>
    %102 = arith.cmpi eq, %4, %101 : vector<128x1xi32>
    %103 = arith.extui %102 : vector<128x1xi1> to vector<128x1xi32>
    %104 = arith.sitofp %103 : vector<128x1xi32> to vector<128x1xf32>
    %105 = vector.extract_strided_slice %3 {offsets = [0, 2], sizes = [128, 1], strides = [1, 1]} : vector<128x4xf32> to vector<128x1xf32>
    %106 = arith.subf %104, %105 : vector<128x1xf32>
    %107 = math.absf %106 : vector<128x1xf32>
    %c2_i32_28 = arith.constant 2 : i32
    %108 = vector.broadcast %c2_i32_28 : i32 to vector<1x256xi32>
    %109 = arith.cmpi eq, %6, %108 : vector<1x256xi32>
    %110 = arith.extui %109 : vector<1x256xi1> to vector<1x256xi32>
    %111 = arith.sitofp %110 : vector<1x256xi32> to vector<1x256xf32>
    %112 = vector.extract_strided_slice %5 {offsets = [2, 0], sizes = [1, 256], strides = [1, 1]} : vector<4x256xf32> to vector<1x256xf32>
    %113 = arith.subf %111, %112 : vector<1x256xf32>
    %114 = math.absf %113 : vector<1x256xf32>
    %115 = vector.broadcast %114 : vector<1x256xf32> to vector<128x256xf32>
    %116 = vector.broadcast %107 : vector<128x1xf32> to vector<128x256xf32>
    %117 = arith.cmpf ogt, %115, %116 : vector<128x256xf32>
    %118 = vector.broadcast %114 : vector<1x256xf32> to vector<128x256xf32>
    %119 = vector.broadcast %107 : vector<128x1xf32> to vector<128x256xf32>
    %120 = arith.cmpf oeq, %118, %119 : vector<128x256xf32>
    %121 = arith.andi %120, %16 : vector<128x256xi1>
    %122 = arith.ori %117, %121 : vector<128x256xi1>
    %cst_29 = arith.constant 1.000000e+00 : f32
    %cst_30 = arith.constant 0.000000e+00 : f32
    %123 = vector.broadcast %cst_29 : f32 to vector<128x256xf32>
    %124 = vector.broadcast %cst_30 : f32 to vector<128x256xf32>
    %125 = arith.select %122, %123, %124 : vector<128x256xi1>, vector<128x256xf32>
    %126 = arith.truncf %125 : vector<128x256xf32> to vector<128x256xbf16>
    %c2_i32_31 = arith.constant 2 : i32
    %127 = vector.broadcast %c2_i32_31 : i32 to vector<256x128xi32>
    %128 = arith.cmpi eq, %17, %127 : vector<256x128xi32>
    %c2_i32_32 = arith.constant 2 : i32
    %129 = vector.broadcast %c2_i32_32 : i32 to vector<256x1xi32>
    %130 = arith.cmpi eq, %7, %129 : vector<256x1xi32>
    %131 = vector.broadcast %130 : vector<256x1xi1> to vector<256x128xi1>
    %132 = arith.andi %128, %131 : vector<256x128xi1>
    %c66_i32 = arith.constant 66 : i32
    %133 = vector.broadcast %c66_i32 : i32 to vector<256x128xi32>
    %134 = arith.cmpi eq, %17, %133 : vector<256x128xi32>
    %135 = arith.ori %132, %134 : vector<256x128xi1>
    %cst_33 = arith.constant 1.000000e+00 : f32
    %cst_34 = arith.constant 0.000000e+00 : f32
    %136 = vector.broadcast %cst_33 : f32 to vector<256x128xf32>
    %137 = vector.broadcast %cst_34 : f32 to vector<256x128xf32>
    %138 = arith.select %135, %136, %137 : vector<256x128xi1>, vector<256x128xf32>
    %139 = arith.truncf %138 : vector<256x128xf32> to vector<256x128xbf16>
    %cst_35 = arith.constant dense<0.000000e+00> : vector<128x128xf32>
    %140 = tpu.matmul %126, %139, %cst_35 {dimension_numbers = #tpu.dot_dimension_numbers<[1], [0], [0], [1], [0, 0, 1, 1], [], []>} : vector<128x256xbf16>, vector<256x128xbf16>, vector<128x128xf32> -> vector<128x128xf32>
    %141 = arith.addf %100, %140 : vector<128x128xf32>
    %c3_i32 = arith.constant 3 : i32
    %142 = vector.broadcast %c3_i32 : i32 to vector<128x1xi32>
    %143 = arith.cmpi eq, %4, %142 : vector<128x1xi32>
    %144 = arith.extui %143 : vector<128x1xi1> to vector<128x1xi32>
    %145 = arith.sitofp %144 : vector<128x1xi32> to vector<128x1xf32>
    %146 = vector.extract_strided_slice %3 {offsets = [0, 3], sizes = [128, 1], strides = [1, 1]} : vector<128x4xf32> to vector<128x1xf32>
    %147 = arith.subf %145, %146 : vector<128x1xf32>
    %148 = math.absf %147 : vector<128x1xf32>
    %c3_i32_36 = arith.constant 3 : i32
    %149 = vector.broadcast %c3_i32_36 : i32 to vector<1x256xi32>
    %150 = arith.cmpi eq, %6, %149 : vector<1x256xi32>
    %151 = arith.extui %150 : vector<1x256xi1> to vector<1x256xi32>
    %152 = arith.sitofp %151 : vector<1x256xi32> to vector<1x256xf32>
    %153 = vector.extract_strided_slice %5 {offsets = [3, 0], sizes = [1, 256], strides = [1, 1]} : vector<4x256xf32> to vector<1x256xf32>
    %154 = arith.subf %152, %153 : vector<1x256xf32>
    %155 = math.absf %154 : vector<1x256xf32>
    %156 = vector.broadcast %155 : vector<1x256xf32> to vector<128x256xf32>
    %157 = vector.broadcast %148 : vector<128x1xf32> to vector<128x256xf32>
    %158 = arith.cmpf ogt, %156, %157 : vector<128x256xf32>
    %159 = vector.broadcast %155 : vector<1x256xf32> to vector<128x256xf32>
    %160 = vector.broadcast %148 : vector<128x1xf32> to vector<128x256xf32>
    %161 = arith.cmpf oeq, %159, %160 : vector<128x256xf32>
    %162 = arith.andi %161, %16 : vector<128x256xi1>
    %163 = arith.ori %158, %162 : vector<128x256xi1>
    %cst_37 = arith.constant 1.000000e+00 : f32
    %cst_38 = arith.constant 0.000000e+00 : f32
    %164 = vector.broadcast %cst_37 : f32 to vector<128x256xf32>
    %165 = vector.broadcast %cst_38 : f32 to vector<128x256xf32>
    %166 = arith.select %163, %164, %165 : vector<128x256xi1>, vector<128x256xf32>
    %167 = arith.truncf %166 : vector<128x256xf32> to vector<128x256xbf16>
    %c3_i32_39 = arith.constant 3 : i32
    %168 = vector.broadcast %c3_i32_39 : i32 to vector<256x128xi32>
    %169 = arith.cmpi eq, %17, %168 : vector<256x128xi32>
    %c3_i32_40 = arith.constant 3 : i32
    %170 = vector.broadcast %c3_i32_40 : i32 to vector<256x1xi32>
    %171 = arith.cmpi eq, %7, %170 : vector<256x1xi32>
    %172 = vector.broadcast %171 : vector<256x1xi1> to vector<256x128xi1>
    %173 = arith.andi %169, %172 : vector<256x128xi1>
    %c67_i32 = arith.constant 67 : i32
    %174 = vector.broadcast %c67_i32 : i32 to vector<256x128xi32>
    %175 = arith.cmpi eq, %17, %174 : vector<256x128xi32>
    %176 = arith.ori %173, %175 : vector<256x128xi1>
    %cst_41 = arith.constant 1.000000e+00 : f32
    %cst_42 = arith.constant 0.000000e+00 : f32
    %177 = vector.broadcast %cst_41 : f32 to vector<256x128xf32>
    %178 = vector.broadcast %cst_42 : f32 to vector<256x128xf32>
    %179 = arith.select %176, %177, %178 : vector<256x128xi1>, vector<256x128xf32>
    %180 = arith.truncf %179 : vector<256x128xf32> to vector<256x128xbf16>
    %cst_43 = arith.constant dense<0.000000e+00> : vector<128x128xf32>
    %181 = tpu.matmul %167, %180, %cst_43 {dimension_numbers = #tpu.dot_dimension_numbers<[1], [0], [0], [1], [0, 0, 1, 1], [], []>} : vector<128x256xbf16>, vector<256x128xbf16>, vector<128x128xf32> -> vector<128x128xf32>
    %182 = arith.addf %141, %181 : vector<128x128xf32>
    %c0_44 = arith.constant 0 : index
    %c0_45 = arith.constant 0 : index
    %183 = vector.load %arg9[%c0_44, %c0_45] : memref<128x128xf32, #tpu.memory_space<vmem>>, vector<128x128xf32>
    tpu.vector_store %arg9[%c0_44, %c0_45], %182 {strides = array<i32>} : memref<128x128xf32, #tpu.memory_space<vmem>>, vector<128x128xf32>,
    %c1_i32_46 = arith.constant 1 : i32
    %184 = arith.cmpi eq, %arg1, %c1_i32_46 : i32
    %185 = arith.extui %184 : i1 to i32
    %c0_i32_47 = arith.constant 0 : i32
    %186 = arith.cmpi ne, %185, %c0_i32_47 : i32
    scf.if %186 {
      %c0_48 = arith.constant 0 : index
      %c0_49 = arith.constant 0 : index
      %187 = vector.load %arg2[%c0_48, %c0_49] : memref<1x128xf32, #tpu.memory_space<vmem>>, vector<1x128xf32>
      %188 = tpu.iota {dimensions = array<i32: 0>} : vector<8x128xi32>
      %189 = tpu.iota {dimensions = array<i32: 1>} : vector<8x128xi32>
      %cst_50 = arith.constant 0.000000e+00 : f32
      %190 = vector.broadcast %cst_50 : f32 to vector<8x128xf32>
      %191 = vector.extract_strided_slice %187 {offsets = [0, 0], sizes = [1, 1], strides = [1, 1]} : vector<1x128xf32> to vector<1x1xf32>
      %c0_i32_51 = arith.constant 0 : i32
      %192 = vector.broadcast %c0_i32_51 : i32 to vector<128x1xi32>
      %193 = arith.cmpi eq, %4, %192 : vector<128x1xi32>
      %194 = arith.extui %193 : vector<128x1xi1> to vector<128x1xi32>
      %195 = arith.sitofp %194 : vector<128x1xi32> to vector<128x1xf32>
      %196 = vector.extract_strided_slice %3 {offsets = [0, 0], sizes = [128, 1], strides = [1, 1]} : vector<128x4xf32> to vector<128x1xf32>
      %197 = arith.subf %195, %196 : vector<128x1xf32>
      %198 = math.absf %197 : vector<128x1xf32>
      %199 = vector.extract_strided_slice %182 {offsets = [0, 0], sizes = [128, 1], strides = [1, 1]} : vector<128x128xf32> to vector<128x1xf32>
      %200 = vector.extract_strided_slice %182 {offsets = [0, 64], sizes = [128, 1], strides = [1, 1]} : vector<128x128xf32> to vector<128x1xf32>
      %201 = vector.broadcast %191 : vector<1x1xf32> to vector<128x1xf32>
      %202 = arith.subf %201, %199 : vector<128x1xf32>
      %203 = vector.broadcast %191 : vector<1x1xf32> to vector<128x1xf32>
      %204 = arith.addf %203, %200 : vector<128x1xf32>
      %205 = arith.subf %204, %199 : vector<128x1xf32>
      %206 = arith.divf %202, %205 : vector<128x1xf32>
      %cst_52 = arith.constant 1.000000e+00 : f32
      %207 = vector.broadcast %cst_52 : f32 to vector<128x1xf32>
      %208 = arith.subf %207, %206 : vector<128x1xf32>
      %209 = arith.addf %202, %195 : vector<128x1xf32>
      %cst_53 = arith.constant 1.000000e+00 : f32
      %210 = vector.broadcast %cst_53 : f32 to vector<128x1xf32>
      %211 = arith.subf %205, %210 : vector<128x1xf32>
      %212 = arith.addf %211, %195 : vector<128x1xf32>
      %cst_54 = arith.constant 1.000000e+00 : f32
      %213 = vector.broadcast %cst_54 : f32 to vector<128x1xf32>
      %214 = arith.maximumf %212, %213 : vector<128x1xf32>
      %215 = arith.divf %209, %214 : vector<128x1xf32>
      %cst_55 = arith.constant 1.000000e+00 : f32
      %216 = vector.broadcast %cst_55 : f32 to vector<128x1xf32>
      %217 = arith.subf %216, %215 : vector<128x1xf32>
      %218 = arith.subf %208, %217 : vector<128x1xf32>
      %219 = arith.mulf %198, %218 : vector<128x1xf32>
      %cst_56 = arith.constant dense<0.000000e+00> : vector<1xf32>
      %220 = vector.multi_reduction <add>, %219, %cst_56 [0] : vector<128x1xf32> to vector<1xf32>
      %221 = vector.shape_cast %220 : vector<1xf32> to vector<1x1xf32>
      %c0_i32_57 = arith.constant 0 : i32
      %222 = vector.broadcast %c0_i32_57 : i32 to vector<8x128xi32>
      %223 = arith.cmpi eq, %188, %222 : vector<8x128xi32>
      %c0_i32_58 = arith.constant 0 : i32
      %224 = vector.broadcast %c0_i32_58 : i32 to vector<8x128xi32>
      %225 = arith.cmpi eq, %189, %224 : vector<8x128xi32>
      %226 = arith.andi %223, %225 : vector<8x128xi1>
      %cst_59 = arith.constant 0.000000e+00 : f32
      %227 = vector.shape_cast %221 : vector<1x1xf32> to vector<1x1xf32>
      %228 = vector.broadcast %227 : vector<1x1xf32> to vector<8x128xf32>
      %229 = vector.broadcast %cst_59 : f32 to vector<8x128xf32>
      %230 = arith.select %226, %228, %229 : vector<8x128xi1>, vector<8x128xf32>
      %231 = arith.addf %190, %230 : vector<8x128xf32>
      %232 = vector.extract_strided_slice %187 {offsets = [0, 1], sizes = [1, 1], strides = [1, 1]} : vector<1x128xf32> to vector<1x1xf32>
      %c1_i32_60 = arith.constant 1 : i32
      %233 = vector.broadcast %c1_i32_60 : i32 to vector<128x1xi32>
      %234 = arith.cmpi eq, %4, %233 : vector<128x1xi32>
      %235 = arith.extui %234 : vector<128x1xi1> to vector<128x1xi32>
      %236 = arith.sitofp %235 : vector<128x1xi32> to vector<128x1xf32>
      %237 = vector.extract_strided_slice %3 {offsets = [0, 1], sizes = [128, 1], strides = [1, 1]} : vector<128x4xf32> to vector<128x1xf32>
      %238 = arith.subf %236, %237 : vector<128x1xf32>
      %239 = math.absf %238 : vector<128x1xf32>
      %240 = vector.extract_strided_slice %182 {offsets = [0, 1], sizes = [128, 1], strides = [1, 1]} : vector<128x128xf32> to vector<128x1xf32>
      %241 = vector.extract_strided_slice %182 {offsets = [0, 65], sizes = [128, 1], strides = [1, 1]} : vector<128x128xf32> to vector<128x1xf32>
      %242 = vector.broadcast %232 : vector<1x1xf32> to vector<128x1xf32>
      %243 = arith.subf %242, %240 : vector<128x1xf32>
      %244 = vector.broadcast %232 : vector<1x1xf32> to vector<128x1xf32>
      %245 = arith.addf %244, %241 : vector<128x1xf32>
      %246 = arith.subf %245, %240 : vector<128x1xf32>
      %247 = arith.divf %243, %246 : vector<128x1xf32>
      %cst_61 = arith.constant 1.000000e+00 : f32
      %248 = vector.broadcast %cst_61 : f32 to vector<128x1xf32>
      %249 = arith.subf %248, %247 : vector<128x1xf32>
      %250 = arith.addf %243, %236 : vector<128x1xf32>
      %cst_62 = arith.constant 1.000000e+00 : f32
      %251 = vector.broadcast %cst_62 : f32 to vector<128x1xf32>
      %252 = arith.subf %246, %251 : vector<128x1xf32>
      %253 = arith.addf %252, %236 : vector<128x1xf32>
      %cst_63 = arith.constant 1.000000e+00 : f32
      %254 = vector.broadcast %cst_63 : f32 to vector<128x1xf32>
      %255 = arith.maximumf %253, %254 : vector<128x1xf32>
      %256 = arith.divf %250, %255 : vector<128x1xf32>
      %cst_64 = arith.constant 1.000000e+00 : f32
      %257 = vector.broadcast %cst_64 : f32 to vector<128x1xf32>
      %258 = arith.subf %257, %256 : vector<128x1xf32>
      %259 = arith.subf %249, %258 : vector<128x1xf32>
      %260 = arith.mulf %239, %259 : vector<128x1xf32>
      %cst_65 = arith.constant dense<0.000000e+00> : vector<1xf32>
      %261 = vector.multi_reduction <add>, %260, %cst_65 [0] : vector<128x1xf32> to vector<1xf32>
      %262 = vector.shape_cast %261 : vector<1xf32> to vector<1x1xf32>
      %c0_i32_66 = arith.constant 0 : i32
      %263 = vector.broadcast %c0_i32_66 : i32 to vector<8x128xi32>
      %264 = arith.cmpi eq, %188, %263 : vector<8x128xi32>
      %c1_i32_67 = arith.constant 1 : i32
      %265 = vector.broadcast %c1_i32_67 : i32 to vector<8x128xi32>
      %266 = arith.cmpi eq, %189, %265 : vector<8x128xi32>
      %267 = arith.andi %264, %266 : vector<8x128xi1>
      %cst_68 = arith.constant 0.000000e+00 : f32
      %268 = vector.shape_cast %262 : vector<1x1xf32> to vector<1x1xf32>
      %269 = vector.broadcast %268 : vector<1x1xf32> to vector<8x128xf32>
      %270 = vector.broadcast %cst_68 : f32 to vector<8x128xf32>
      %271 = arith.select %267, %269, %270 : vector<8x128xi1>, vector<8x128xf32>
      %272 = arith.addf %231, %271 : vector<8x128xf32>
      %273 = vector.extract_strided_slice %187 {offsets = [0, 2], sizes = [1, 1], strides = [1, 1]} : vector<1x128xf32> to vector<1x1xf32>
      %c2_i32_69 = arith.constant 2 : i32
      %274 = vector.broadcast %c2_i32_69 : i32 to vector<128x1xi32>
      %275 = arith.cmpi eq, %4, %274 : vector<128x1xi32>
      %276 = arith.extui %275 : vector<128x1xi1> to vector<128x1xi32>
      %277 = arith.sitofp %276 : vector<128x1xi32> to vector<128x1xf32>
      %278 = vector.extract_strided_slice %3 {offsets = [0, 2], sizes = [128, 1], strides = [1, 1]} : vector<128x4xf32> to vector<128x1xf32>
      %279 = arith.subf %277, %278 : vector<128x1xf32>
      %280 = math.absf %279 : vector<128x1xf32>
      %281 = vector.extract_strided_slice %182 {offsets = [0, 2], sizes = [128, 1], strides = [1, 1]} : vector<128x128xf32> to vector<128x1xf32>
      %282 = vector.extract_strided_slice %182 {offsets = [0, 66], sizes = [128, 1], strides = [1, 1]} : vector<128x128xf32> to vector<128x1xf32>
      %283 = vector.broadcast %273 : vector<1x1xf32> to vector<128x1xf32>
      %284 = arith.subf %283, %281 : vector<128x1xf32>
      %285 = vector.broadcast %273 : vector<1x1xf32> to vector<128x1xf32>
      %286 = arith.addf %285, %282 : vector<128x1xf32>
      %287 = arith.subf %286, %281 : vector<128x1xf32>
      %288 = arith.divf %284, %287 : vector<128x1xf32>
      %cst_70 = arith.constant 1.000000e+00 : f32
      %289 = vector.broadcast %cst_70 : f32 to vector<128x1xf32>
      %290 = arith.subf %289, %288 : vector<128x1xf32>
      %291 = arith.addf %284, %277 : vector<128x1xf32>
      %cst_71 = arith.constant 1.000000e+00 : f32
      %292 = vector.broadcast %cst_71 : f32 to vector<128x1xf32>
      %293 = arith.subf %287, %292 : vector<128x1xf32>
      %294 = arith.addf %293, %277 : vector<128x1xf32>
      %cst_72 = arith.constant 1.000000e+00 : f32
      %295 = vector.broadcast %cst_72 : f32 to vector<128x1xf32>
      %296 = arith.maximumf %294, %295 : vector<128x1xf32>
      %297 = arith.divf %291, %296 : vector<128x1xf32>
      %cst_73 = arith.constant 1.000000e+00 : f32
      %298 = vector.broadcast %cst_73 : f32 to vector<128x1xf32>
      %299 = arith.subf %298, %297 : vector<128x1xf32>
      %300 = arith.subf %290, %299 : vector<128x1xf32>
      %301 = arith.mulf %280, %300 : vector<128x1xf32>
      %cst_74 = arith.constant dense<0.000000e+00> : vector<1xf32>
      %302 = vector.multi_reduction <add>, %301, %cst_74 [0] : vector<128x1xf32> to vector<1xf32>
      %303 = vector.shape_cast %302 : vector<1xf32> to vector<1x1xf32>
      %c0_i32_75 = arith.constant 0 : i32
      %304 = vector.broadcast %c0_i32_75 : i32 to vector<8x128xi32>
      %305 = arith.cmpi eq, %188, %304 : vector<8x128xi32>
      %c2_i32_76 = arith.constant 2 : i32
      %306 = vector.broadcast %c2_i32_76 : i32 to vector<8x128xi32>
      %307 = arith.cmpi eq, %189, %306 : vector<8x128xi32>
      %308 = arith.andi %305, %307 : vector<8x128xi1>
      %cst_77 = arith.constant 0.000000e+00 : f32
      %309 = vector.shape_cast %303 : vector<1x1xf32> to vector<1x1xf32>
      %310 = vector.broadcast %309 : vector<1x1xf32> to vector<8x128xf32>
      %311 = vector.broadcast %cst_77 : f32 to vector<8x128xf32>
      %312 = arith.select %308, %310, %311 : vector<8x128xi1>, vector<8x128xf32>
      %313 = arith.addf %272, %312 : vector<8x128xf32>
      %314 = vector.extract_strided_slice %187 {offsets = [0, 3], sizes = [1, 1], strides = [1, 1]} : vector<1x128xf32> to vector<1x1xf32>
      %c3_i32_78 = arith.constant 3 : i32
      %315 = vector.broadcast %c3_i32_78 : i32 to vector<128x1xi32>
      %316 = arith.cmpi eq, %4, %315 : vector<128x1xi32>
      %317 = arith.extui %316 : vector<128x1xi1> to vector<128x1xi32>
      %318 = arith.sitofp %317 : vector<128x1xi32> to vector<128x1xf32>
      %319 = vector.extract_strided_slice %3 {offsets = [0, 3], sizes = [128, 1], strides = [1, 1]} : vector<128x4xf32> to vector<128x1xf32>
      %320 = arith.subf %318, %319 : vector<128x1xf32>
      %321 = math.absf %320 : vector<128x1xf32>
      %322 = vector.extract_strided_slice %182 {offsets = [0, 3], sizes = [128, 1], strides = [1, 1]} : vector<128x128xf32> to vector<128x1xf32>
      %323 = vector.extract_strided_slice %182 {offsets = [0, 67], sizes = [128, 1], strides = [1, 1]} : vector<128x128xf32> to vector<128x1xf32>
      %324 = vector.broadcast %314 : vector<1x1xf32> to vector<128x1xf32>
      %325 = arith.subf %324, %322 : vector<128x1xf32>
      %326 = vector.broadcast %314 : vector<1x1xf32> to vector<128x1xf32>
      %327 = arith.addf %326, %323 : vector<128x1xf32>
      %328 = arith.subf %327, %322 : vector<128x1xf32>
      %329 = arith.divf %325, %328 : vector<128x1xf32>
      %cst_79 = arith.constant 1.000000e+00 : f32
      %330 = vector.broadcast %cst_79 : f32 to vector<128x1xf32>
      %331 = arith.subf %330, %329 : vector<128x1xf32>
      %332 = arith.addf %325, %318 : vector<128x1xf32>
      %cst_80 = arith.constant 1.000000e+00 : f32
      %333 = vector.broadcast %cst_80 : f32 to vector<128x1xf32>
      %334 = arith.subf %328, %333 : vector<128x1xf32>
      %335 = arith.addf %334, %318 : vector<128x1xf32>
      %cst_81 = arith.constant 1.000000e+00 : f32
      %336 = vector.broadcast %cst_81 : f32 to vector<128x1xf32>
      %337 = arith.maximumf %335, %336 : vector<128x1xf32>
      %338 = arith.divf %332, %337 : vector<128x1xf32>
      %cst_82 = arith.constant 1.000000e+00 : f32
      %339 = vector.broadcast %cst_82 : f32 to vector<128x1xf32>
      %340 = arith.subf %339, %338 : vector<128x1xf32>
      %341 = arith.subf %331, %340 : vector<128x1xf32>
      %342 = arith.mulf %321, %341 : vector<128x1xf32>
      %cst_83 = arith.constant dense<0.000000e+00> : vector<1xf32>
      %343 = vector.multi_reduction <add>, %342, %cst_83 [0] : vector<128x1xf32> to vector<1xf32>
      %344 = vector.shape_cast %343 : vector<1xf32> to vector<1x1xf32>
      %c0_i32_84 = arith.constant 0 : i32
      %345 = vector.broadcast %c0_i32_84 : i32 to vector<8x128xi32>
      %346 = arith.cmpi eq, %188, %345 : vector<8x128xi32>
      %c3_i32_85 = arith.constant 3 : i32
      %347 = vector.broadcast %c3_i32_85 : i32 to vector<8x128xi32>
      %348 = arith.cmpi eq, %189, %347 : vector<8x128xi32>
      %349 = arith.andi %346, %348 : vector<8x128xi1>
      %cst_86 = arith.constant 0.000000e+00 : f32
      %350 = vector.shape_cast %344 : vector<1x1xf32> to vector<1x1xf32>
      %351 = vector.broadcast %350 : vector<1x1xf32> to vector<8x128xf32>
      %352 = vector.broadcast %cst_86 : f32 to vector<8x128xf32>
      %353 = arith.select %349, %351, %352 : vector<8x128xi1>, vector<8x128xf32>
      %354 = arith.addf %313, %353 : vector<8x128xf32>
      %c0_87 = arith.constant 0 : index
      %c0_88 = arith.constant 0 : index
      %355 = vector.load %arg8[%c0_87, %c0_88] : memref<8x128xf32, #tpu.memory_space<vmem>>, vector<8x128xf32>
      tpu.vector_store %arg8[%c0_87, %c0_88], %354 {strides = array<i32>} : memref<8x128xf32, #tpu.memory_space<vmem>>, vector<8x128xf32>,
    } else {
    }
    return
  }
  func.func @transform_0(%arg0: i32, %arg1: i32) -> (i32, i32) {
    %c0_i32 = arith.constant 0 : i32
    %c0_i32_0 = arith.constant 0 : i32
    %c0_i32_1 = arith.constant 0 : i32
    return %c0_i32, %c0_i32_0 : i32, i32
  }
  func.func @transform_1(%arg0: i32, %arg1: i32) -> (i32, i32) {
    %c0_i32 = arith.constant 0 : i32
    %c0_i32_0 = arith.constant 0 : i32
    return %arg0, %c0_i32 : i32, i32
  }
  func.func @transform_2(%arg0: i32, %arg1: i32) -> (i32, i32) {
    %c0_i32 = arith.constant 0 : i32
    %c0_i32_0 = arith.constant 0 : i32
    return %arg0, %c0_i32 : i32, i32
  }
  func.func @transform_3(%arg0: i32, %arg1: i32) -> (i32, i32) {
    %c0_i32 = arith.constant 0 : i32
    %c0_i32_0 = arith.constant 0 : i32
    return %c0_i32, %arg1 : i32, i32
  }
  func.func @transform_4(%arg0: i32, %arg1: i32) -> (i32, i32) {
    %c0_i32 = arith.constant 0 : i32
    %c0_i32_0 = arith.constant 0 : i32
    return %c0_i32, %arg1 : i32, i32
  }
  func.func @transform_5(%arg0: i32, %arg1: i32) -> (i32, i32) {
    %c0_i32 = arith.constant 0 : i32
    %c0_i32_0 = arith.constant 0 : i32
    return %arg1, %c0_i32 : i32, i32
  }
  func.func @transform_6(%arg0: i32, %arg1: i32) -> (i32, i32) {
    %c0_i32 = arith.constant 0 : i32
    %c0_i32_0 = arith.constant 0 : i32
    return %arg0, %c0_i32 : i32, i32
  }
}

</mosaic_0001>

<llo_original>
// kernel: tpu_custom_call.1
$region0: #{tpu_custom_call.1}
  #allocation0 [shape = 'u32[]', space=smem, size = 0x4, offset = 0x4, fixed_abs, tag = 'smem constant byte address 0x4 - core index']
  #allocation1 [shape = 'u32[144,128]{1,0:T(1,128)}', space=vmem, size = 0x12000, scoped, tag = 'internal scratch']
  #allocation2 [shape = 'f32[128,128]{1,0:T(8,128)}', space=vmem, size = 0x10000, scoped, tag = 'scratch operand']
  %s0 = inlined_call_operand.vmem [shape: f32[1,128], index: 0, kind: input, shape index: {}]
  %s1 = inlined_call_operand.vmem [shape: f32[512,4], index: 1, kind: input, shape index: {}]
  %s2 = inlined_call_operand.vmem [shape: s32[512,1], index: 2, kind: input, shape index: {}]
  %s3 = inlined_call_operand.vmem [shape: f32[4,512], index: 3, kind: input, shape index: {}]
  %s4 = inlined_call_operand.vmem [shape: s32[1,512], index: 4, kind: input, shape index: {}]
  %s5 = inlined_call_operand.vmem [shape: s32[512,1], index: 5, kind: input, shape index: {}]
  %s6 = inlined_call_operand.hbm [shape: f32[32,128], index: 6, kind: output, shape index: {}]
  %s7 = sld [smem:[#allocation0]]
  $region65: #{tpu_custom_call.1} parent=0
    _
  %s9 = ssub.s32 1, %s7
  %s10 = scalar_select 0, %s9, %s7
  $region1: #{tpu_custom_call.1} parent=0
    #allocation3 [shape = 'u8[8192]{0}', space=vmem, size = 0x2000, scoped, tag = 'output window, operand 0']
    #allocation4 [shape = 's32[2]{0}', space=sflag, size = 0x8, scoped, tag = 'scoped memory for tpu_custom_call.1']
    %11 = vsyncpa [#allocation4], 0
    %s12 = scalar_lea.sflag [#allocation4], 1
    %13 = vsyncpa %s12, 0
    loop: start=0, step=1, limit=10
    $region2: #{tpu_custom_call.1} parent=1 // loop_pre_header
      _
    $region3: #{tpu_custom_call.1} parent=1 // loop_header
      %s15 = sphi 0, %s19
      %p16 = scmp.ge.s32.totalorder %s15, 10
      %s22 = sphi 0, %s34
      %s23 = sphi 0, %s30
      %s24 = sphi 0, %s22
      %s25 = sphi 0, %s23
      %s26 = sphi 0, %s24
      %s27 = sphi 0, %s25
      %s35 = sphi 0, %s35
      %s37 = sphi 0, %s35
      %s38 = sphi 0, %s37
      %s52 = sphi 0, %s38
      %s58 = sphi 0, %s60
      %s61 = sphi 0, %s58
      %s62 = sphi 0, %s61
      %s78 = sphi 0, %s62
      %s84 = sphi 0, %s86
      %s87 = sphi 0, %s84
      %s88 = sphi 0, %s87
      %s104 = sphi 0, %s88
      %s110 = sphi 0, %s112
      %s113 = sphi 0, %s110
      %s114 = sphi 0, %s113
      %s130 = sphi 0, %s114
      %s136 = sphi 0, %s138
      %s139 = sphi 0, %s136
      %s140 = sphi 0, %s139
      %s156 = sphi 0, %s140
      %s162 = sphi 0, %s164
      %s165 = sphi 0, %s162
      %s166 = sphi 0, %s165
      %s182 = sphi 0, %s166
      %s188 = sphi 0, %s190
      %s191 = sphi 0, %s188
      %s192 = sphi 0, %s191
      %s208 = sphi 0, %s192
    $region4: #{tpu_custom_call.1} parent=1 // loop_header_branch
      %18 = sbr.rel (%p16) target = $region8
    $region5: #{tpu_custom_call.1} parent=1 // loop_body
      %s20 = ssub.s32 %s15, 1
      %s21 = ssub.s32 %s15, 2
      %s28 = sadd.s32 1, %s23
      %p29 = scmp.ge.s32.totalorder %s28, 2
      %s30 = scalar_select %p29, 0, %s28
      %s31 = sadd.s32 1, %s22
      %s32 = scalar_select %p29, %s31, %s22
      %p33 = scmp.ge.s32.totalorder %s32, 4
      %s34 = scalar_select %p33, 0, %s32
      %s36 = sadd.s32 %s35, 1
      %p39 = scmp.eq.s32.totalorder %s15, 7
      %p40 = scmp.ne.s32.totalorder %s35, %s37
      %p41 = scmp.eq.s32.totalorder %s15, 0
      %p42 = por %p40, %p41
      %p43 = scmp.ne.s32.totalorder %s35, %s37
      %p44 = scmp.eq.s32.totalorder %s20, 7
      %p45 = por %p43, %p44
      %p46 = scmp.ne.s32.totalorder %s37, %s38
      %p47 = scmp.eq.s32.totalorder %s20, 0
      %p48 = por %p46, %p47
      %p49 = scmp.ne.s32.totalorder %s37, %s38
      %p50 = scmp.eq.s32.totalorder %s21, 7
      %p51 = por %p49, %p50
      %p53 = scmp.ne.s32.totalorder %s38, %s52
      %p54 = scmp.eq.s32.totalorder %s21, 0
      %p55 = por %p53, %p54
      %s56 = ssub.s32 %s22, %s34
      %p57 = scmp.eq.s32.totalorder %s56, 0
      %s59 = sadd.s32 %s58, 1
      %s60 = scalar_select %p57, %s58, %s59
      %p63 = pneg %p57
      %p64 = scmp.eq.s32.totalorder %s15, 7
      %p65 = por %p63, %p64
      %p66 = scmp.ne.s32.totalorder %s58, %s61
      %p67 = scmp.eq.s32.totalorder %s15, 0
      %p68 = por %p66, %p67
      %p69 = scmp.ne.s32.totalorder %s58, %s61
      %p70 = scmp.eq.s32.totalorder %s20, 7
      %p71 = por %p69, %p70
      %p72 = scmp.ne.s32.totalorder %s61, %s62
      %p73 = scmp.eq.s32.totalorder %s20, 0
      %p74 = por %p72, %p73
      %p75 = scmp.ne.s32.totalorder %s61, %s62
      %p76 = scmp.eq.s32.totalorder %s21, 7
      %p77 = por %p75, %p76
      %p79 = scmp.ne.s32.totalorder %s62, %s78
      %p80 = scmp.eq.s32.totalorder %s21, 0
      %p81 = por %p79, %p80
      %s82 = ssub.s32 %s22, %s34
      %p83 = scmp.eq.s32.totalorder %s82, 0
      %s85 = sadd.s32 %s84, 1
      %s86 = scalar_select %p83, %s84, %s85
      %p89 = pneg %p83
      %p90 = scmp.eq.s32.totalorder %s15, 7
      %p91 = por %p89, %p90
      %p92 = scmp.ne.s32.totalorder %s84, %s87
      %p93 = scmp.eq.s32.totalorder %s15, 0
      %p94 = por %p92, %p93
      %p95 = scmp.ne.s32.totalorder %s84, %s87
      %p96 = scmp.eq.s32.totalorder %s20, 7
      %p97 = por %p95, %p96
      %p98 = scmp.ne.s32.totalorder %s87, %s88
      %p99 = scmp.eq.s32.totalorder %s20, 0
      %p100 = por %p98, %p99
      %p101 = scmp.ne.s32.totalorder %s87, %s88
      %p102 = scmp.eq.s32.totalorder %s21, 7
      %p103 = por %p101, %p102
      %p105 = scmp.ne.s32.totalorder %s88, %s104
      %p106 = scmp.eq.s32.totalorder %s21, 0
      %p107 = por %p105, %p106
      %s108 = ssub.s32 %s23, %s30
      %p109 = scmp.eq.s32.totalorder %s108, 0
      %s111 = sadd.s32 %s110, 1
      %s112 = scalar_select %p109, %s110, %s111
      %p115 = pneg %p109
      %p116 = scmp.eq.s32.totalorder %s15, 7
      %p117 = por %p115, %p116
      %p118 = scmp.ne.s32.totalorder %s110, %s113
      %p119 = scmp.eq.s32.totalorder %s15, 0
      %p120 = por %p118, %p119
      %p121 = scmp.ne.s32.totalorder %s110, %s113
      %p122 = scmp.eq.s32.totalorder %s20, 7
      %p123 = por %p121, %p122
      %p124 = scmp.ne.s32.totalorder %s113, %s114
      %p125 = scmp.eq.s32.totalorder %s20, 0
      %p126 = por %p124, %p125
      %p127 = scmp.ne.s32.totalorder %s113, %s114
      %p128 = scmp.eq.s32.totalorder %s21, 7
      %p129 = por %p127, %p128
      %p131 = scmp.ne.s32.totalorder %s114, %s130
      %p132 = scmp.eq.s32.totalorder %s21, 0
      %p133 = por %p131, %p132
      %s134 = ssub.s32 %s23, %s30
      %p135 = scmp.eq.s32.totalorder %s134, 0
      %s137 = sadd.s32 %s136, 1
      %s138 = scalar_select %p135, %s136, %s137
      %p141 = pneg %p135
      %p142 = scmp.eq.s32.totalorder %s15, 7
      %p143 = por %p141, %p142
      %p144 = scmp.ne.s32.totalorder %s136, %s139
      %p145 = scmp.eq.s32.totalorder %s15, 0
      %p146 = por %p144, %p145
      %p147 = scmp.ne.s32.totalorder %s136, %s139
      %p148 = scmp.eq.s32.totalorder %s20, 7
      %p149 = por %p147, %p148
      %p150 = scmp.ne.s32.totalorder %s139, %s140
      %p151 = scmp.eq.s32.totalorder %s20, 0
      %p152 = por %p150, %p151
      %p153 = scmp.ne.s32.totalorder %s139, %s140
      %p154 = scmp.eq.s32.totalorder %s21, 7
      %p155 = por %p153, %p154
      %p157 = scmp.ne.s32.totalorder %s140, %s156
      %p158 = scmp.eq.s32.totalorder %s21, 0
      %p159 = por %p157, %p158
      %s160 = ssub.s32 %s23, %s30
      %p161 = scmp.eq.s32.totalorder %s160, 0
      %s163 = sadd.s32 %s162, 1
      %s164 = scalar_select %p161, %s162, %s163
      %p167 = pneg %p161
      %p168 = scmp.eq.s32.totalorder %s15, 7
      %p169 = por %p167, %p168
      %p170 = scmp.ne.s32.totalorder %s162, %s165
      %p171 = scmp.eq.s32.totalorder %s15, 0
      %p172 = por %p170, %p171
      %p173 = scmp.ne.s32.totalorder %s162, %s165
      %p174 = scmp.eq.s32.totalorder %s20, 7
      %p175 = por %p173, %p174
      %p176 = scmp.ne.s32.totalorder %s165, %s166
      %p177 = scmp.eq.s32.totalorder %s20, 0
      %p178 = por %p176, %p177
      %p179 = scmp.ne.s32.totalorder %s165, %s166
      %p180 = scmp.eq.s32.totalorder %s21, 7
      %p181 = por %p179, %p180
      %p183 = scmp.ne.s32.totalorder %s166, %s182
      %p184 = scmp.eq.s32.totalorder %s21, 0
      %p185 = por %p183, %p184
      %s186 = ssub.s32 %s22, %s34
      %p187 = scmp.eq.s32.totalorder %s186, 0
      %s189 = sadd.s32 %s188, 1
      %s190 = scalar_select %p187, %s188, %s189
      %p193 = pneg %p187
      %p194 = scmp.eq.s32.totalorder %s15, 7
      %p195 = por %p193, %p194
      %p196 = scmp.ne.s32.totalorder %s188, %s191
      %p197 = scmp.eq.s32.totalorder %s15, 0
      %p198 = por %p196, %p197
      %p199 = scmp.ne.s32.totalorder %s188, %s191
      %p200 = scmp.eq.s32.totalorder %s20, 7
      %p201 = por %p199, %p200
      %p202 = scmp.ne.s32.totalorder %s191, %s192
      %p203 = scmp.eq.s32.totalorder %s20, 0
      %p204 = por %p202, %p203
      %p205 = scmp.ne.s32.totalorder %s191, %s192
      %p206 = scmp.eq.s32.totalorder %s21, 7
      %p207 = por %p205, %p206
      %p209 = scmp.ne.s32.totalorder %s192, %s208
      %p210 = scmp.eq.s32.totalorder %s21, 0
      %p211 = por %p209, %p210
      %p212 = scmp.le.s32.totalorder 1, %s15
      %p213 = scmp.lt.s32.totalorder %s15, 9
      %p214 = pnand %p212, %p213
      %p215 = pneg %p214
      // Predicated region
      $region9: #{tpu_custom_call.1} parent=5 // pred_check
        _
      $region10: #{tpu_custom_call.1} parent=5 // pred_check_branch
        %217 = sbr.rel (%p214) target = $region12
      $region11: #{tpu_custom_call.1} parent=5 // pred_region
        %s218 = ssub.s32 %s15, 1
        // Predicated region
        $region13: #{tpu_custom_call.1} parent=11 // pred_check
          %p219 = pneg %p48
        $region14: #{tpu_custom_call.1} parent=11 // pred_check_branch
          %221 = sbr.rel (%p219) target = $region16
        $region15: #{tpu_custom_call.1} parent=11 // pred_region
          _
        $region16: #{tpu_custom_call.1} parent=11 // pred_fallthru
          _
      $region12: #{tpu_custom_call.1} parent=5 // pred_fallthru
        _
      %p222 = scmp.lt.s32.totalorder %s15, 8
      // Predicated region
      $region17: #{tpu_custom_call.1} parent=5 // pred_check
        %p223 = pneg %p222
      $region18: #{tpu_custom_call.1} parent=5 // pred_check_branch
        %225 = sbr.rel (%p223) target = $region20
      $region19: #{tpu_custom_call.1} parent=5 // pred_region
        // Predicated region
        $region21: #{tpu_custom_call.1} parent=19 // pred_check
          %p226 = pneg %p68
        $region22: #{tpu_custom_call.1} parent=19 // pred_check_branch
          %228 = sbr.rel (%p226) target = $region24
        $region23: #{tpu_custom_call.1} parent=19 // pred_region
          %s229 = smul.u32 16, %s22
          %p230 = scmp.lt.s32.totalorder %s229, 63
          %s231 = scalar_select %p230, %s229, 63
          %s232 = smul.addr %s231, 8
          %s233 = scalar_lea.vmem %s1, %s232
          %s234 = smul.u32 16, %s22
        $region24: #{tpu_custom_call.1} parent=19 // pred_fallthru
          _
        // Predicated region
        $region25: #{tpu_custom_call.1} parent=19 // pred_check
          %p235 = pneg %p94
        $region26: #{tpu_custom_call.1} parent=19 // pred_check_branch
          %237 = sbr.rel (%p235) target = $region28
        $region27: #{tpu_custom_call.1} parent=19 // pred_region
          %s238 = smul.u32 16, %s22
          %p239 = scmp.lt.s32.totalorder %s238, 63
          %s240 = scalar_select %p239, %s238, 63
          %s241 = smul.addr %s240, 8
          %s242 = scalar_lea.vmem %s2, %s241
          %s243 = smul.u32 16, %s22
        $region28: #{tpu_custom_call.1} parent=19 // pred_fallthru
          _
        // Predicated region
        $region29: #{tpu_custom_call.1} parent=19 // pred_check
          %p244 = pneg %p120
        $region30: #{tpu_custom_call.1} parent=19 // pred_check_branch
          %246 = sbr.rel (%p244) target = $region32
        $region31: #{tpu_custom_call.1} parent=19 // pred_region
          %s247 = smul.u32 2, %s23
          %p248 = scmp.lt.s32.totalorder %s247, 3
          %s249 = scalar_select %p248, %s247, 3
          %s250 = smul.addr %s249, 4
          %s251 = scalar_lea.vmem %s3, %s250
          %s252 = smul.u32 2, %s23
        $region32: #{tpu_custom_call.1} parent=19 // pred_fallthru
          _
        // Predicated region
        $region33: #{tpu_custom_call.1} parent=19 // pred_check
          %p253 = pneg %p146
        $region34: #{tpu_custom_call.1} parent=19 // pred_check_branch
          %255 = sbr.rel (%p253) target = $region36
        $region35: #{tpu_custom_call.1} parent=19 // pred_region
          %s256 = smul.u32 2, %s23
          %p257 = scmp.lt.s32.totalorder %s256, 3
          %s258 = scalar_select %p257, %s256, 3
          %s259 = scalar_lea.vmem %s4, %s258
          %s260 = smul.u32 2, %s23
        $region36: #{tpu_custom_call.1} parent=19 // pred_fallthru
          _
        // Predicated region
        $region37: #{tpu_custom_call.1} parent=19 // pred_check
          %p261 = pneg %p172
        $region38: #{tpu_custom_call.1} parent=19 // pred_check_branch
          %263 = sbr.rel (%p261) target = $region40
        $region39: #{tpu_custom_call.1} parent=19 // pred_region
          %s264 = smul.u32 32, %s23
          %p265 = scmp.lt.s32.totalorder %s264, 63
          %s266 = scalar_select %p265, %s264, 63
          %s267 = smul.addr %s266, 8
          %s268 = scalar_lea.vmem %s5, %s267
          %s269 = smul.u32 32, %s23
        $region40: #{tpu_custom_call.1} parent=19 // pred_fallthru
          _
      $region20: #{tpu_custom_call.1} parent=5 // pred_fallthru
        _
      %p270 = scmp.le.s32.totalorder 1, %s15
      %p271 = scmp.lt.s32.totalorder %s15, 9
      %p272 = pnand %p270, %p271
      %p273 = pneg %p272
      // Predicated region
      $region41: #{tpu_custom_call.1} parent=5 // pred_check
        _
      $region42: #{tpu_custom_call.1} parent=5 // pred_check_branch
        %275 = sbr.rel (%p272) target = $region44
      $region43: #{tpu_custom_call.1} parent=5 // pred_region
        %s276 = ssub.s32 %s15, 1
        %p277 = pneg %p48
        %p278 = pneg %p45
        %s279 = smul.u32 16, %s24
        %p280 = scmp.lt.s32.totalorder %s279, 63
        %s281 = scalar_select %p280, %s279, 63
        %s282 = smul.addr %s281, 8
        %s283 = scalar_lea.vmem %s1, %s282
        %p284 = pneg %p74
        %p285 = pneg %p71
        %s286 = smul.u32 16, %s24
        %p287 = scmp.lt.s32.totalorder %s286, 63
        %s288 = scalar_select %p287, %s286, 63
        %s289 = smul.addr %s288, 8
        %s290 = scalar_lea.vmem %s2, %s289
        %p291 = pneg %p100
        %p292 = pneg %p97
        %s293 = smul.u32 2, %s25
        %p294 = scmp.lt.s32.totalorder %s293, 3
        %s295 = scalar_select %p294, %s293, 3
        %s296 = smul.addr %s295, 4
        %s297 = scalar_lea.vmem %s3, %s296
        %p298 = pneg %p126
        %p299 = pneg %p123
        %s300 = smul.u32 2, %s25
        %p301 = scmp.lt.s32.totalorder %s300, 3
        %s302 = scalar_select %p301, %s300, 3
        %s303 = scalar_lea.vmem %s4, %s302
        %p304 = pneg %p152
        %p305 = pneg %p149
        %s306 = smul.u32 32, %s25
        %p307 = scmp.lt.s32.totalorder %s306, 63
        %s308 = scalar_select %p307, %s306, 63
        %s309 = smul.addr %s308, 8
        %s310 = scalar_lea.vmem %s5, %s309
        %p311 = pneg %p178
        %p312 = pneg %p175
        %p313 = pneg %p204
        %p314 = pneg %p201
        %s315 = sand.u32 %s191, 1
        %s316 = scalar_lea.sflag [#allocation4], %s315
        %s317 = sand.u32 %s191, 1
        %s318 = smul.addr %s317, 8
        %s319 = scalar_lea.vmem [#allocation3], %s318
        %s320 = smul.u32 16, %s24
        %p321 = scmp.lt.s32.totalorder %s320, 63
        %s322 = scalar_select %p321, %s320, 63
        %s323 = smul.addr %s322, 8
        %s324 = scalar_lea.vmem %s1, %s323
        %s325 = smul.u32 16, %s24
        %s326 = smul.u32 16, %s24
        %p327 = scmp.lt.s32.totalorder %s326, 63
        %s328 = scalar_select %p327, %s326, 63
        %s329 = smul.addr %s328, 8
        %s330 = scalar_lea.vmem %s2, %s329
        %s331 = smul.u32 16, %s24
        %s332 = smul.u32 2, %s25
        %p333 = scmp.lt.s32.totalorder %s332, 3
        %s334 = scalar_select %p333, %s332, 3
        %s335 = smul.addr %s334, 4
        %s336 = scalar_lea.vmem %s3, %s335
        %s337 = smul.u32 2, %s25
        %s338 = smul.u32 2, %s25
        %p339 = scmp.lt.s32.totalorder %s338, 3
        %s340 = scalar_select %p339, %s338, 3
        %s341 = scalar_lea.vmem %s4, %s340
        %s342 = smul.u32 2, %s25
        %s343 = smul.u32 32, %s25
        %p344 = scmp.lt.s32.totalorder %s343, 63
        %s345 = scalar_select %p344, %s343, 63
        %s346 = smul.addr %s345, 8
        %s347 = scalar_lea.vmem %s5, %s346
        %s348 = smul.u32 32, %s25
        %p350 = scmp.eq.s32.totalorder %s25, 0
        // Predicated region
        $region45: #{tpu_custom_call.1} parent=43 // pred_check
          %p351 = pneg %p350
        $region46: #{tpu_custom_call.1} parent=43 // pred_check_branch
          %353 = sbr.rel (%p351) target = $region48
        $region47: #{tpu_custom_call.1} parent=43 // pred_region
          %354 = vst [vmem:[#allocation2] sm:$0xff] 0.0
          %355 = vst [vmem:[#allocation2 + $0x8] sm:$0xff] 0.0
          %356 = vst [vmem:[#allocation2 + $0x10] sm:$0xff] 0.0
          %357 = vst [vmem:[#allocation2 + $0x18] sm:$0xff] 0.0
          %358 = vst [vmem:[#allocation2 + $0x20] sm:$0xff] 0.0
          %359 = vst [vmem:[#allocation2 + $0x28] sm:$0xff] 0.0
          %360 = vst [vmem:[#allocation2 + $0x30] sm:$0xff] 0.0
          %361 = vst [vmem:[#allocation2 + $0x38] sm:$0xff] 0.0
          %362 = vst [vmem:[#allocation2 + $0x40] sm:$0xff] 0.0
          %363 = vst [vmem:[#allocation2 + $0x48] sm:$0xff] 0.0
          %364 = vst [vmem:[#allocation2 + $0x50] sm:$0xff] 0.0
          %365 = vst [vmem:[#allocation2 + $0x58] sm:$0xff] 0.0
          %366 = vst [vmem:[#allocation2 + $0x60] sm:$0xff] 0.0
          %367 = vst [vmem:[#allocation2 + $0x68] sm:$0xff] 0.0
          %368 = vst [vmem:[#allocation2 + $0x70] sm:$0xff] 0.0
          %369 = vst [vmem:[#allocation2 + $0x78] sm:$0xff] 0.0
        $region48: #{tpu_custom_call.1} parent=43 // pred_fallthru
          _
        %v370 = vld [vmem:[%s324] sm:$0xff]
        %v371 = vld [vmem:[%s324 + $0x8] sm:$0xff]
        %v372 = vld [vmem:[%s324 + $0x10] sm:$0xff]
        %v373 = vld [vmem:[%s324 + $0x18] sm:$0xff]
        %v374 = vld [vmem:[%s324 + $0x20] sm:$0xff]
        %v375 = vld [vmem:[%s324 + $0x28] sm:$0xff]
        %v376 = vld [vmem:[%s324 + $0x30] sm:$0xff]
        %v377 = vld [vmem:[%s324 + $0x38] sm:$0xff]
        %v378 = vld [vmem:[%s324 + $0x40] sm:$0xff]
        %v379 = vld [vmem:[%s324 + $0x48] sm:$0xff]
        %v380 = vld [vmem:[%s324 + $0x50] sm:$0xff]
        %v381 = vld [vmem:[%s324 + $0x58] sm:$0xff]
        %v382 = vld [vmem:[%s324 + $0x60] sm:$0xff]
        %v383 = vld [vmem:[%s324 + $0x68] sm:$0xff]
        %v384 = vld [vmem:[%s324 + $0x70] sm:$0xff]
        %v385 = vld [vmem:[%s324 + $0x78] sm:$0xff]
        %v386 = vld [vmem:[%s330] sm:$0xff]
        %v387 = vld [vmem:[%s330 + $0x8] sm:$0xff]
        %v388 = vld [vmem:[%s330 + $0x10] sm:$0xff]
        %v389 = vld [vmem:[%s330 + $0x18] sm:$0xff]
        %v390 = vld [vmem:[%s330 + $0x20] sm:$0xff]
        %v391 = vld [vmem:[%s330 + $0x28] sm:$0xff]
        %v392 = vld [vmem:[%s330 + $0x30] sm:$0xff]
        %v393 = vld [vmem:[%s330 + $0x38] sm:$0xff]
        %v394 = vld [vmem:[%s330 + $0x40] sm:$0xff]
        %v395 = vld [vmem:[%s330 + $0x48] sm:$0xff]
        %v396 = vld [vmem:[%s330 + $0x50] sm:$0xff]
        %v397 = vld [vmem:[%s330 + $0x58] sm:$0xff]
        %v398 = vld [vmem:[%s330 + $0x60] sm:$0xff]
        %v399 = vld [vmem:[%s330 + $0x68] sm:$0xff]
        %v400 = vld [vmem:[%s330 + $0x70] sm:$0xff]
        %v401 = vld [vmem:[%s330 + $0x78] sm:$0xff]
        %v402 = vld [vmem:[%s336] sm:$0xff]
        %v403 = vld [vmem:[%s341] sm:$0x3]
        %v404 = vld [vmem:[%s347] sm:$0xff]
        %v405 = vld [vmem:[%s347 + $0x8] sm:$0xff]
        %v406 = vld [vmem:[%s347 + $0x10] sm:$0xff]
        %v407 = vld [vmem:[%s347 + $0x18] sm:$0xff]
        %v408 = vld [vmem:[%s347 + $0x20] sm:$0xff]
        %v409 = vld [vmem:[%s347 + $0x28] sm:$0xff]
        %v410 = vld [vmem:[%s347 + $0x30] sm:$0xff]
        %v411 = vld [vmem:[%s347 + $0x38] sm:$0xff]
        %v412 = vld [vmem:[%s347 + $0x40] sm:$0xff]
        %v413 = vld [vmem:[%s347 + $0x48] sm:$0xff]
        %v414 = vld [vmem:[%s347 + $0x50] sm:$0xff]
        %v415 = vld [vmem:[%s347 + $0x58] sm:$0xff]
        %v416 = vld [vmem:[%s347 + $0x60] sm:$0xff]
        %v417 = vld [vmem:[%s347 + $0x68] sm:$0xff]
        %v418 = vld [vmem:[%s347 + $0x70] sm:$0xff]
        %v419 = vld [vmem:[%s347 + $0x78] sm:$0xff]
        %v420 = vld [vmem:[%s347 + $0x80] sm:$0xff]
        %v421 = vld [vmem:[%s347 + $0x88] sm:$0xff]
        %v422 = vld [vmem:[%s347 + $0x90] sm:$0xff]
        %v423 = vld [vmem:[%s347 + $0x98] sm:$0xff]
        %v424 = vld [vmem:[%s347 + $0xa0] sm:$0xff]
        %v425 = vld [vmem:[%s347 + $0xa8] sm:$0xff]
        %v426 = vld [vmem:[%s347 + $0xb0] sm:$0xff]
        %v427 = vld [vmem:[%s347 + $0xb8] sm:$0xff]
        %v428 = vld [vmem:[%s347 + $0xc0] sm:$0xff]
        %v429 = vld [vmem:[%s347 + $0xc8] sm:$0xff]
        %v430 = vld [vmem:[%s347 + $0xd0] sm:$0xff]
        %v431 = vld [vmem:[%s347 + $0xd8] sm:$0xff]
        %v432 = vld [vmem:[%s347 + $0xe0] sm:$0xff]
        %v433 = vld [vmem:[%s347 + $0xe8] sm:$0xff]
        %v434 = vld [vmem:[%s347 + $0xf0] sm:$0xff]
        %v435 = vld [vmem:[%s347 + $0xf8] sm:$0xff]
        %s436 = smul.u32 %s24, 128
        %v437 = vlaneseq
        %v438 = vshrl.u32 %v437, 7
        %v439 = vadd.s32 %v438, 8
        %v440 = vadd.s32 %v438, 16
        %v441 = vadd.s32 %v438, 24
        %v442 = vadd.s32 %v438, 32
        %v443 = vadd.s32 %v438, 40
        %v444 = vadd.s32 %v438, 48
        %v445 = vadd.s32 %v438, 56
        %v446 = vadd.s32 %v438, 64
        %v447 = vadd.s32 %v438, 72
        %v448 = vadd.s32 %v438, 80
        %v449 = vadd.s32 %v438, 88
        %v450 = vadd.s32 %v438, 96
        %v451 = vadd.s32 %v438, 104
        %v452 = vadd.s32 %v438, 112
        %v453 = vadd.s32 %v438, 120
        %v454 = vstv %s436
        %v455 = vadd.s32 %v454, %v438
        %v456 = vadd.s32 %v454, %v439
        %v457 = vadd.s32 %v454, %v440
        %v458 = vadd.s32 %v454, %v441
        %v459 = vadd.s32 %v454, %v442
        %v460 = vadd.s32 %v454, %v443
        %v461 = vadd.s32 %v454, %v444
        %v462 = vadd.s32 %v454, %v445
        %v463 = vadd.s32 %v454, %v446
        %v464 = vadd.s32 %v454, %v447
        %v465 = vadd.s32 %v454, %v448
        %v466 = vadd.s32 %v454, %v449
        %v467 = vadd.s32 %v454, %v450
        %v468 = vadd.s32 %v454, %v451
        %v469 = vadd.s32 %v454, %v452
        %v470 = vadd.s32 %v454, %v453
        %s471 = smul.u32 %s25, 256
        %v472 = vlaneseq
        %v473 = vand.u32 %v472, 127
        %v474 = vadd.s32 %v473, 128
        %v475 = vstv %s471
        %v476 = vadd.s32 %v475, %v473
        %v477 = vadd.s32 %v475, %v474
        %vm478 = vcmp.le.s32.totalorder %v476, %v455
        %vm479 = vcmp.le.s32.totalorder %v477, %v455
        %vm480 = vcmp.le.s32.totalorder %v476, %v456
        %vm481 = vcmp.le.s32.totalorder %v477, %v456
        %vm482 = vcmp.le.s32.totalorder %v476, %v457
        %vm483 = vcmp.le.s32.totalorder %v477, %v457
        %vm484 = vcmp.le.s32.totalorder %v476, %v458
        %vm485 = vcmp.le.s32.totalorder %v477, %v458
        %vm486 = vcmp.le.s32.totalorder %v476, %v459
        %vm487 = vcmp.le.s32.totalorder %v477, %v459
        %vm488 = vcmp.le.s32.totalorder %v476, %v460
        %vm489 = vcmp.le.s32.totalorder %v477, %v460
        %vm490 = vcmp.le.s32.totalorder %v476, %v461
        %vm491 = vcmp.le.s32.totalorder %v477, %v461
        %vm492 = vcmp.le.s32.totalorder %v476, %v462
        %vm493 = vcmp.le.s32.totalorder %v477, %v462
        %vm494 = vcmp.le.s32.totalorder %v476, %v463
        %vm495 = vcmp.le.s32.totalorder %v477, %v463
        %vm496 = vcmp.le.s32.totalorder %v476, %v464
        %vm497 = vcmp.le.s32.totalorder %v477, %v464
        %vm498 = vcmp.le.s32.totalorder %v476, %v465
        %vm499 = vcmp.le.s32.totalorder %v477, %v465
        %vm500 = vcmp.le.s32.totalorder %v476, %v466
        %vm501 = vcmp.le.s32.totalorder %v477, %v466
        %vm502 = vcmp.le.s32.totalorder %v476, %v467
        %vm503 = vcmp.le.s32.totalorder %v477, %v467
        %vm504 = vcmp.le.s32.totalorder %v476, %v468
        %vm505 = vcmp.le.s32.totalorder %v477, %v468
        %vm506 = vcmp.le.s32.totalorder %v476, %v469
        %vm507 = vcmp.le.s32.totalorder %v477, %v469
        %vm508 = vcmp.le.s32.totalorder %v476, %v470
        %vm509 = vcmp.le.s32.totalorder %v477, %v470
        %v510 = vld [vmem:[#allocation2] sm:$0xff]
        %v511 = vld [vmem:[#allocation2 + $0x8] sm:$0xff]
        %v512 = vld [vmem:[#allocation2 + $0x10] sm:$0xff]
        %v513 = vld [vmem:[#allocation2 + $0x18] sm:$0xff]
        %v514 = vld [vmem:[#allocation2 + $0x20] sm:$0xff]
        %v515 = vld [vmem:[#allocation2 + $0x28] sm:$0xff]
        %v516 = vld [vmem:[#allocation2 + $0x30] sm:$0xff]
        %v517 = vld [vmem:[#allocation2 + $0x38] sm:$0xff]
        %v518 = vld [vmem:[#allocation2 + $0x40] sm:$0xff]
        %v519 = vld [vmem:[#allocation2 + $0x48] sm:$0xff]
        %v520 = vld [vmem:[#allocation2 + $0x50] sm:$0xff]
        %v521 = vld [vmem:[#allocation2 + $0x58] sm:$0xff]
        %v522 = vld [vmem:[#allocation2 + $0x60] sm:$0xff]
        %v523 = vld [vmem:[#allocation2 + $0x68] sm:$0xff]
        %v524 = vld [vmem:[#allocation2 + $0x70] sm:$0xff]
        %v525 = vld [vmem:[#allocation2 + $0x78] sm:$0xff]
        %vm526 = vcmp.eq.s32.totalorder %v386, 0
        %vm527 = vcmp.eq.s32.totalorder %v387, 0
        %vm528 = vcmp.eq.s32.totalorder %v388, 0
        %vm529 = vcmp.eq.s32.totalorder %v389, 0
        %vm530 = vcmp.eq.s32.totalorder %v390, 0
        %vm531 = vcmp.eq.s32.totalorder %v391, 0
        %vm532 = vcmp.eq.s32.totalorder %v392, 0
        %vm533 = vcmp.eq.s32.totalorder %v393, 0
        %vm534 = vcmp.eq.s32.totalorder %v394, 0
        %vm535 = vcmp.eq.s32.totalorder %v395, 0
        %vm536 = vcmp.eq.s32.totalorder %v396, 0
        %vm537 = vcmp.eq.s32.totalorder %v397, 0
        %vm538 = vcmp.eq.s32.totalorder %v398, 0
        %vm539 = vcmp.eq.s32.totalorder %v399, 0
        %vm540 = vcmp.eq.s32.totalorder %v400, 0
        %vm541 = vcmp.eq.s32.totalorder %v401, 0
        %v542 = vsel %vm526, 1, 0
        %v543 = vsel %vm527, 1, 0
        %v544 = vsel %vm528, 1, 0
        %v545 = vsel %vm529, 1, 0
        %v546 = vsel %vm530, 1, 0
        %v547 = vsel %vm531, 1, 0
        %v548 = vsel %vm532, 1, 0
        %v549 = vsel %vm533, 1, 0
        %v550 = vsel %vm534, 1, 0
        %v551 = vsel %vm535, 1, 0
        %v552 = vsel %vm536, 1, 0
        %v553 = vsel %vm537, 1, 0
        %v554 = vsel %vm538, 1, 0
        %v555 = vsel %vm539, 1, 0
        %v556 = vsel %vm540, 1, 0
        %v557 = vsel %vm541, 1, 0
        %v558 = vcvt.s32.f32 %v542
        %v559 = vcvt.s32.f32 %v543
        %v560 = vcvt.s32.f32 %v544
        %v561 = vcvt.s32.f32 %v545
        %v562 = vcvt.s32.f32 %v546
        %v563 = vcvt.s32.f32 %v547
        %v564 = vcvt.s32.f32 %v548
        %v565 = vcvt.s32.f32 %v549
        %v566 = vcvt.s32.f32 %v550
        %v567 = vcvt.s32.f32 %v551
        %v568 = vcvt.s32.f32 %v552
        %v569 = vcvt.s32.f32 %v553
        %v570 = vcvt.s32.f32 %v554
        %v571 = vcvt.s32.f32 %v555
        %v572 = vcvt.s32.f32 %v556
        %v573 = vcvt.s32.f32 %v557
        %v574 = vsub.f32 %v558, %v370
        %v575 = vsub.f32 %v559, %v371
        %v576 = vsub.f32 %v560, %v372
        %v577 = vsub.f32 %v561, %v373
        %v578 = vsub.f32 %v562, %v374
        %v579 = vsub.f32 %v563, %v375
        %v580 = vsub.f32 %v564, %v376
        %v581 = vsub.f32 %v565, %v377
        %v582 = vsub.f32 %v566, %v378
        %v583 = vsub.f32 %v567, %v379
        %v584 = vsub.f32 %v568, %v380
        %v585 = vsub.f32 %v569, %v381
        %v586 = vsub.f32 %v570, %v382
        %v587 = vsub.f32 %v571, %v383
        %v588 = vsub.f32 %v572, %v384
        %v589 = vsub.f32 %v573, %v385
        %v590 = vand.u32 2147483647, %v574
        %v591 = vand.u32 2147483647, %v575
        %v592 = vand.u32 2147483647, %v576
        %v593 = vand.u32 2147483647, %v577
        %v594 = vand.u32 2147483647, %v578
        %v595 = vand.u32 2147483647, %v579
        %v596 = vand.u32 2147483647, %v580
        %v597 = vand.u32 2147483647, %v581
        %v598 = vand.u32 2147483647, %v582
        %v599 = vand.u32 2147483647, %v583
        %v600 = vand.u32 2147483647, %v584
        %v601 = vand.u32 2147483647, %v585
        %v602 = vand.u32 2147483647, %v586
        %v603 = vand.u32 2147483647, %v587
        %v604 = vand.u32 2147483647, %v588
        %v605 = vand.u32 2147483647, %v589
        %vm606 = vcmp.eq.s32.totalorder %v403, 0
        %v607 = vsel %vm606, 1, 0
        %v608 = vcvt.s32.f32 %v607
        %v611 = vunpack.c.l.s4 1966171168
        %v612 = vunpack.c.0.s8 %v611
        %v613 = vlaneseq
        %v614 = vshrl.u32 %v613, 7
        %v615 = vsub.s32 %v612, %v614
        %v616 = vrot.slane %v402, %v615
        %v618 = vunpack.c.l.s4 1966171168
        %v619 = vunpack.c.0.s8 %v618
        %v620 = vlaneseq
        %v621 = vshrl.u32 %v620, 7
        %v622 = vsub.s32 %v619, %v621
        %v623 = vrot.slane %v616, %v622
        %v625 = vsub.f32 %v608, %v623
        %v626 = vand.u32 2147483647, %v625
        %v628 = vlaneseq
        %v629 = vshrl.u32 %v628, 7
        %v630 = vsub.s32 0, %v629
        %v631 = vrot.slane %v626, %v630
        %v632 = vlaneseq
        %v633 = vshrl.u32 %v632, 7
        %v634 = vsub.s32 1, %v633
        %v635 = vrot.slane %v626, %v634
        %639 = vset.pattern.permute.xlu0 0
        %640 = vperm.xlu0 %639, %v590
        %v641 = vpop.permute.xlu0 %640
        %644 = vset.pattern.permute.xlu0 0
        %645 = vperm.xlu0 %644, %v591
        %v646 = vpop.permute.xlu0 %645
        %649 = vset.pattern.permute.xlu0 0
        %650 = vperm.xlu0 %649, %v592
        %v651 = vpop.permute.xlu0 %650
        %654 = vset.pattern.permute.xlu0 0
        %655 = vperm.xlu0 %654, %v593
        %v656 = vpop.permute.xlu0 %655
        %659 = vset.pattern.permute.xlu0 0
        %660 = vperm.xlu0 %659, %v594
        %v661 = vpop.permute.xlu0 %660
        %664 = vset.pattern.permute.xlu0 0
        %665 = vperm.xlu0 %664, %v595
        %v666 = vpop.permute.xlu0 %665
        %669 = vset.pattern.permute.xlu0 0
        %670 = vperm.xlu0 %669, %v596
        %v671 = vpop.permute.xlu0 %670
        %674 = vset.pattern.permute.xlu0 0
        %675 = vperm.xlu0 %674, %v597
        %v676 = vpop.permute.xlu0 %675
        %679 = vset.pattern.permute.xlu0 0
        %680 = vperm.xlu0 %679, %v598
        %v681 = vpop.permute.xlu0 %680
        %684 = vset.pattern.permute.xlu0 0
        %685 = vperm.xlu0 %684, %v599
        %v686 = vpop.permute.xlu0 %685
        %689 = vset.pattern.permute.xlu0 0
        %690 = vperm.xlu0 %689, %v600
        %v691 = vpop.permute.xlu0 %690
        %694 = vset.pattern.permute.xlu0 0
        %695 = vperm.xlu0 %694, %v601
        %v696 = vpop.permute.xlu0 %695
        %699 = vset.pattern.permute.xlu0 0
        %700 = vperm.xlu0 %699, %v602
        %v701 = vpop.permute.xlu0 %700
        %704 = vset.pattern.permute.xlu0 0
        %705 = vperm.xlu0 %704, %v603
        %v706 = vpop.permute.xlu0 %705
        %709 = vset.pattern.permute.xlu0 0
        %710 = vperm.xlu0 %709, %v604
        %v711 = vpop.permute.xlu0 %710
        %714 = vset.pattern.permute.xlu0 0
        %715 = vperm.xlu0 %714, %v605
        %v716 = vpop.permute.xlu0 %715
        %vm718 = vcmp.gt.f32.partialorder %v631, %v641
        %vm719 = vcmp.gt.f32.partialorder %v635, %v641
        %vm720 = vcmp.gt.f32.partialorder %v631, %v646
        %vm721 = vcmp.gt.f32.partialorder %v635, %v646
        %vm722 = vcmp.gt.f32.partialorder %v631, %v651
        %vm723 = vcmp.gt.f32.partialorder %v635, %v651
        %vm724 = vcmp.gt.f32.partialorder %v631, %v656
        %vm725 = vcmp.gt.f32.partialorder %v635, %v656
        %vm726 = vcmp.gt.f32.partialorder %v631, %v661
        %vm727 = vcmp.gt.f32.partialorder %v635, %v661
        %vm728 = vcmp.gt.f32.partialorder %v631, %v666
        %vm729 = vcmp.gt.f32.partialorder %v635, %v666
        %vm730 = vcmp.gt.f32.partialorder %v631, %v671
        %vm731 = vcmp.gt.f32.partialorder %v635, %v671
        %vm732 = vcmp.gt.f32.partialorder %v631, %v676
        %vm733 = vcmp.gt.f32.partialorder %v635, %v676
        %vm734 = vcmp.gt.f32.partialorder %v631, %v681
        %vm735 = vcmp.gt.f32.partialorder %v635, %v681
        %vm736 = vcmp.gt.f32.partialorder %v631, %v686
        %vm737 = vcmp.gt.f32.partialorder %v635, %v686
        %vm738 = vcmp.gt.f32.partialorder %v631, %v691
        %vm739 = vcmp.gt.f32.partialorder %v635, %v691
        %vm740 = vcmp.gt.f32.partialorder %v631, %v696
        %vm741 = vcmp.gt.f32.partialorder %v635, %v696
        %vm742 = vcmp.gt.f32.partialorder %v631, %v701
        %vm743 = vcmp.gt.f32.partialorder %v635, %v701
        %vm744 = vcmp.gt.f32.partialorder %v631, %v706
        %vm745 = vcmp.gt.f32.partialorder %v635, %v706
        %vm746 = vcmp.gt.f32.partialorder %v631, %v711
        %vm747 = vcmp.gt.f32.partialorder %v635, %v711
        %vm748 = vcmp.gt.f32.partialorder %v631, %v716
        %vm749 = vcmp.gt.f32.partialorder %v635, %v716
        %vm750 = vcmp.eq.f32.partialorder %v631, %v641
        %vm751 = vcmp.eq.f32.partialorder %v635, %v641
        %vm752 = vcmp.eq.f32.partialorder %v631, %v646
        %vm753 = vcmp.eq.f32.partialorder %v635, %v646
        %vm754 = vcmp.eq.f32.partialorder %v631, %v651
        %vm755 = vcmp.eq.f32.partialorder %v635, %v651
        %vm756 = vcmp.eq.f32.partialorder %v631, %v656
        %vm757 = vcmp.eq.f32.partialorder %v635, %v656
        %vm758 = vcmp.eq.f32.partialorder %v631, %v661
        %vm759 = vcmp.eq.f32.partialorder %v635, %v661
        %vm760 = vcmp.eq.f32.partialorder %v631, %v666
        %vm761 = vcmp.eq.f32.partialorder %v635, %v666
        %vm762 = vcmp.eq.f32.partialorder %v631, %v671
        %vm763 = vcmp.eq.f32.partialorder %v635, %v671
        %vm764 = vcmp.eq.f32.partialorder %v631, %v676
        %vm765 = vcmp.eq.f32.partialorder %v635, %v676
        %vm766 = vcmp.eq.f32.partialorder %v631, %v681
        %vm767 = vcmp.eq.f32.partialorder %v635, %v681
        %vm768 = vcmp.eq.f32.partialorder %v631, %v686
        %vm769 = vcmp.eq.f32.partialorder %v635, %v686
        %vm770 = vcmp.eq.f32.partialorder %v631, %v691
        %vm771 = vcmp.eq.f32.partialorder %v635, %v691
        %vm772 = vcmp.eq.f32.partialorder %v631, %v696
        %vm773 = vcmp.eq.f32.partialorder %v635, %v696
        %vm774 = vcmp.eq.f32.partialorder %v631, %v701
        %vm775 = vcmp.eq.f32.partialorder %v635, %v701
        %vm776 = vcmp.eq.f32.partialorder %v631, %v706
        %vm777 = vcmp.eq.f32.partialorder %v635, %v706
        %vm778 = vcmp.eq.f32.partialorder %v631, %v711
        %vm779 = vcmp.eq.f32.partialorder %v635, %v711
        %vm780 = vcmp.eq.f32.partialorder %v631, %v716
        %vm781 = vcmp.eq.f32.partialorder %v635, %v716
        %vm782 = vmand %vm750, %vm478
        %vm783 = vmand %vm751, %vm479
        %vm784 = vmand %vm752, %vm480
        %vm785 = vmand %vm753, %vm481
        %vm786 = vmand %vm754, %vm482
        %vm787 = vmand %vm755, %vm483
        %vm788 = vmand %vm756, %vm484
        %vm789 = vmand %vm757, %vm485
        %vm790 = vmand %vm758, %vm486
        %vm791 = vmand %vm759, %vm487
        %vm792 = vmand %vm760, %vm488
        %vm793 = vmand %vm761, %vm489
        %vm794 = vmand %vm762, %vm490
        %vm795 = vmand %vm763, %vm491
        %vm796 = vmand %vm764, %vm492
        %vm797 = vmand %vm765, %vm493
        %vm798 = vmand %vm766, %vm494
        %vm799 = vmand %vm767, %vm495
        %vm800 = vmand %vm768, %vm496
        %vm801 = vmand %vm769, %vm497
        %vm802 = vmand %vm770, %vm498
        %vm803 = vmand %vm771, %vm499
        %vm804 = vmand %vm772, %vm500
        %vm805 = vmand %vm773, %vm501
        %vm806 = vmand %vm774, %vm502
        %vm807 = vmand %vm775, %vm503
        %vm808 = vmand %vm776, %vm504
        %vm809 = vmand %vm777, %vm505
        %vm810 = vmand %vm778, %vm506
        %vm811 = vmand %vm779, %vm507
        %vm812 = vmand %vm780, %vm508
        %vm813 = vmand %vm781, %vm509
        %vm814 = vmor %vm718, %vm782
        %vm815 = vmor %vm719, %vm783
        %vm816 = vmor %vm720, %vm784
        %vm817 = vmor %vm721, %vm785
        %vm818 = vmor %vm722, %vm786
        %vm819 = vmor %vm723, %vm787
        %vm820 = vmor %vm724, %vm788
        %vm821 = vmor %vm725, %vm789
        %vm822 = vmor %vm726, %vm790
        %vm823 = vmor %vm727, %vm791
        %vm824 = vmor %vm728, %vm792
        %vm825 = vmor %vm729, %vm793
        %vm826 = vmor %vm730, %vm794
        %vm827 = vmor %vm731, %vm795
        %vm828 = vmor %vm732, %vm796
        %vm829 = vmor %vm733, %vm797
        %vm830 = vmor %vm734, %vm798
        %vm831 = vmor %vm735, %vm799
        %vm832 = vmor %vm736, %vm800
        %vm833 = vmor %vm737, %vm801
        %vm834 = vmor %vm738, %vm802
        %vm835 = vmor %vm739, %vm803
        %vm836 = vmor %vm740, %vm804
        %vm837 = vmor %vm741, %vm805
        %vm838 = vmor %vm742, %vm806
        %vm839 = vmor %vm743, %vm807
        %vm840 = vmor %vm744, %vm808
        %vm841 = vmor %vm745, %vm809
        %vm842 = vmor %vm746, %vm810
        %vm843 = vmor %vm747, %vm811
        %vm844 = vmor %vm748, %vm812
        %vm845 = vmor %vm749, %vm813
        %v846 = vsel %vm814, 1.0, 0.0
        %v847 = vsel %vm815, 1.0, 0.0
        %v848 = vsel %vm816, 1.0, 0.0
        %v849 = vsel %vm817, 1.0, 0.0
        %v850 = vsel %vm818, 1.0, 0.0
        %v851 = vsel %vm819, 1.0, 0.0
        %v852 = vsel %vm820, 1.0, 0.0
        %v853 = vsel %vm821, 1.0, 0.0
        %v854 = vsel %vm822, 1.0, 0.0
        %v855 = vsel %vm823, 1.0, 0.0
        %v856 = vsel %vm824, 1.0, 0.0
        %v857 = vsel %vm825, 1.0, 0.0
        %v858 = vsel %vm826, 1.0, 0.0
        %v859 = vsel %vm827, 1.0, 0.0
        %v860 = vsel %vm828, 1.0, 0.0
        %v861 = vsel %vm829, 1.0, 0.0
        %v862 = vsel %vm830, 1.0, 0.0
        %v863 = vsel %vm831, 1.0, 0.0
        %v864 = vsel %vm832, 1.0, 0.0
        %v865 = vsel %vm833, 1.0, 0.0
        %v866 = vsel %vm834, 1.0, 0.0
        %v867 = vsel %vm835, 1.0, 0.0
        %v868 = vsel %vm836, 1.0, 0.0
        %v869 = vsel %vm837, 1.0, 0.0
        %v870 = vsel %vm838, 1.0, 0.0
        %v871 = vsel %vm839, 1.0, 0.0
        %v872 = vsel %vm840, 1.0, 0.0
        %v873 = vsel %vm841, 1.0, 0.0
        %v874 = vsel %vm842, 1.0, 0.0
        %v875 = vsel %vm843, 1.0, 0.0
        %v876 = vsel %vm844, 1.0, 0.0
        %v877 = vsel %vm845, 1.0, 0.0
        %v878 = vpack.c.bf16 %v848, %v846
        %v879 = vpack.c.bf16 %v849, %v847
        %v880 = vpack.c.bf16 %v852, %v850
        %v881 = vpack.c.bf16 %v853, %v851
        %v882 = vpack.c.bf16 %v856, %v854
        %v883 = vpack.c.bf16 %v857, %v855
        %v884 = vpack.c.bf16 %v860, %v858
        %v885 = vpack.c.bf16 %v861, %v859
        %v886 = vpack.c.bf16 %v864, %v862
        %v887 = vpack.c.bf16 %v865, %v863
        %v888 = vpack.c.bf16 %v868, %v866
        %v889 = vpack.c.bf16 %v869, %v867
        %v890 = vpack.c.bf16 %v872, %v870
        %v891 = vpack.c.bf16 %v873, %v871
        %v892 = vpack.c.bf16 %v876, %v874
        %v893 = vpack.c.bf16 %v877, %v875
        %vm894 = vcmp.eq.s32.totalorder %v473, 0
        %vm895 = vcmp.eq.s32.totalorder %v404, 0
        %vm896 = vcmp.eq.s32.totalorder %v405, 0
        %vm897 = vcmp.eq.s32.totalorder %v406, 0
        %vm898 = vcmp.eq.s32.totalorder %v407, 0
        %vm899 = vcmp.eq.s32.totalorder %v408, 0
        %vm900 = vcmp.eq.s32.totalorder %v409, 0
        %vm901 = vcmp.eq.s32.totalorder %v410, 0
        %vm902 = vcmp.eq.s32.totalorder %v411, 0
        %vm903 = vcmp.eq.s32.totalorder %v412, 0
        %vm904 = vcmp.eq.s32.totalorder %v413, 0
        %vm905 = vcmp.eq.s32.totalorder %v414, 0
        %vm906 = vcmp.eq.s32.totalorder %v415, 0
        %vm907 = vcmp.eq.s32.totalorder %v416, 0
        %vm908 = vcmp.eq.s32.totalorder %v417, 0
        %vm909 = vcmp.eq.s32.totalorder %v418, 0
        %vm910 = vcmp.eq.s32.totalorder %v419, 0
        %vm911 = vcmp.eq.s32.totalorder %v420, 0
        %vm912 = vcmp.eq.s32.totalorder %v421, 0
        %vm913 = vcmp.eq.s32.totalorder %v422, 0
        %vm914 = vcmp.eq.s32.totalorder %v423, 0
        %vm915 = vcmp.eq.s32.totalorder %v424, 0
        %vm916 = vcmp.eq.s32.totalorder %v425, 0
        %vm917 = vcmp.eq.s32.totalorder %v426, 0
        %vm918 = vcmp.eq.s32.totalorder %v427, 0
        %vm919 = vcmp.eq.s32.totalorder %v428, 0
        %vm920 = vcmp.eq.s32.totalorder %v429, 0
        %vm921 = vcmp.eq.s32.totalorder %v430, 0
        %vm922 = vcmp.eq.s32.totalorder %v431, 0
        %vm923 = vcmp.eq.s32.totalorder %v432, 0
        %vm924 = vcmp.eq.s32.totalorder %v433, 0
        %vm925 = vcmp.eq.s32.totalorder %v434, 0
        %vm926 = vcmp.eq.s32.totalorder %v435, 0
        %v927 = vsel %vm895, 1, 0
        %v928 = vsel %vm896, 1, 0
        %v929 = vsel %vm897, 1, 0
        %v930 = vsel %vm898, 1, 0
        %v931 = vsel %vm899, 1, 0
        %v932 = vsel %vm900, 1, 0
        %v933 = vsel %vm901, 1, 0
        %v934 = vsel %vm902, 1, 0
        %v935 = vsel %vm903, 1, 0
        %v936 = vsel %vm904, 1, 0
        %v937 = vsel %vm905, 1, 0
        %v938 = vsel %vm906, 1, 0
        %v939 = vsel %vm907, 1, 0
        %v940 = vsel %vm908, 1, 0
        %v941 = vsel %vm909, 1, 0
        %v942 = vsel %vm910, 1, 0
        %v943 = vsel %vm911, 1, 0
        %v944 = vsel %vm912, 1, 0
        %v945 = vsel %vm913, 1, 0
        %v946 = vsel %vm914, 1, 0
        %v947 = vsel %vm915, 1, 0
        %v948 = vsel %vm916, 1, 0
        %v949 = vsel %vm917, 1, 0
        %v950 = vsel %vm918, 1, 0
        %v951 = vsel %vm919, 1, 0
        %v952 = vsel %vm920, 1, 0
        %v953 = vsel %vm921, 1, 0
        %v954 = vsel %vm922, 1, 0
        %v955 = vsel %vm923, 1, 0
        %v956 = vsel %vm924, 1, 0
        %v957 = vsel %vm925, 1, 0
        %v958 = vsel %vm926, 1, 0
        %959 = vset.pattern.permute.xlu0 0
        %960 = vperm.xlu0 %959, %v927
        %v961 = vpop.permute.xlu0 %960
        %962 = vset.pattern.permute.xlu0 0
        %963 = vperm.xlu0 %962, %v928
        %v964 = vpop.permute.xlu0 %963
        %965 = vset.pattern.permute.xlu0 0
        %966 = vperm.xlu0 %965, %v929
        %v967 = vpop.permute.xlu0 %966
        %968 = vset.pattern.permute.xlu0 0
        %969 = vperm.xlu0 %968, %v930
        %v970 = vpop.permute.xlu0 %969
        %971 = vset.pattern.permute.xlu0 0
        %972 = vperm.xlu0 %971, %v931
        %v973 = vpop.permute.xlu0 %972
        %974 = vset.pattern.permute.xlu0 0
        %975 = vperm.xlu0 %974, %v932
        %v976 = vpop.permute.xlu0 %975
        %977 = vset.pattern.permute.xlu0 0
        %978 = vperm.xlu0 %977, %v933
        %v979 = vpop.permute.xlu0 %978
        %980 = vset.pattern.permute.xlu0 0
        %981 = vperm.xlu0 %980, %v934
        %v982 = vpop.permute.xlu0 %981
        %983 = vset.pattern.permute.xlu0 0
        %984 = vperm.xlu0 %983, %v935
        %v985 = vpop.permute.xlu0 %984
        %986 = vset.pattern.permute.xlu0 0
        %987 = vperm.xlu0 %986, %v936
        %v988 = vpop.permute.xlu0 %987
        %989 = vset.pattern.permute.xlu0 0
        %990 = vperm.xlu0 %989, %v937
        %v991 = vpop.permute.xlu0 %990
        %992 = vset.pattern.permute.xlu0 0
        %993 = vperm.xlu0 %992, %v938
        %v994 = vpop.permute.xlu0 %993
        %995 = vset.pattern.permute.xlu0 0
        %996 = vperm.xlu0 %995, %v939
        %v997 = vpop.permute.xlu0 %996
        %998 = vset.pattern.permute.xlu0 0
        %999 = vperm.xlu0 %998, %v940
        %v1000 = vpop.permute.xlu0 %999
        %1001 = vset.pattern.permute.xlu0 0
        %1002 = vperm.xlu0 %1001, %v941
        %v1003 = vpop.permute.xlu0 %1002
        %1004 = vset.pattern.permute.xlu0 0
        %1005 = vperm.xlu0 %1004, %v942
        %v1006 = vpop.permute.xlu0 %1005
        %1007 = vset.pattern.permute.xlu0 0
        %1008 = vperm.xlu0 %1007, %v943
        %v1009 = vpop.permute.xlu0 %1008
        %1010 = vset.pattern.permute.xlu0 0
        %1011 = vperm.xlu0 %1010, %v944
        %v1012 = vpop.permute.xlu0 %1011
        %1013 = vset.pattern.permute.xlu0 0
        %1014 = vperm.xlu0 %1013, %v945
        %v1015 = vpop.permute.xlu0 %1014
        %1016 = vset.pattern.permute.xlu0 0
        %1017 = vperm.xlu0 %1016, %v946
        %v1018 = vpop.permute.xlu0 %1017
        %1019 = vset.pattern.permute.xlu0 0
        %1020 = vperm.xlu0 %1019, %v947
        %v1021 = vpop.permute.xlu0 %1020
        %1022 = vset.pattern.permute.xlu0 0
        %1023 = vperm.xlu0 %1022, %v948
        %v1024 = vpop.permute.xlu0 %1023
        %1025 = vset.pattern.permute.xlu0 0
        %1026 = vperm.xlu0 %1025, %v949
        %v1027 = vpop.permute.xlu0 %1026
        %1028 = vset.pattern.permute.xlu0 0
        %1029 = vperm.xlu0 %1028, %v950
        %v1030 = vpop.permute.xlu0 %1029
        %1031 = vset.pattern.permute.xlu0 0
        %1032 = vperm.xlu0 %1031, %v951
        %v1033 = vpop.permute.xlu0 %1032
        %1034 = vset.pattern.permute.xlu0 0
        %1035 = vperm.xlu0 %1034, %v952
        %v1036 = vpop.permute.xlu0 %1035
        %1037 = vset.pattern.permute.xlu0 0
        %1038 = vperm.xlu0 %1037, %v953
        %v1039 = vpop.permute.xlu0 %1038
        %1040 = vset.pattern.permute.xlu0 0
        %1041 = vperm.xlu0 %1040, %v954
        %v1042 = vpop.permute.xlu0 %1041
        %1043 = vset.pattern.permute.xlu0 0
        %1044 = vperm.xlu0 %1043, %v955
        %v1045 = vpop.permute.xlu0 %1044
        %1046 = vset.pattern.permute.xlu0 0
        %1047 = vperm.xlu0 %1046, %v956
        %v1048 = vpop.permute.xlu0 %1047
        %1049 = vset.pattern.permute.xlu0 0
        %1050 = vperm.xlu0 %1049, %v957
        %v1051 = vpop.permute.xlu0 %1050
        %1052 = vset.pattern.permute.xlu0 0
        %1053 = vperm.xlu0 %1052, %v958
        %v1054 = vpop.permute.xlu0 %1053
        %vm1055 = vcmp.eq.s32.totalorder %v961, 1
        %vm1056 = vcmp.eq.s32.totalorder %v964, 1
        %vm1057 = vcmp.eq.s32.totalorder %v967, 1
        %vm1058 = vcmp.eq.s32.totalorder %v970, 1
        %vm1059 = vcmp.eq.s32.totalorder %v973, 1
        %vm1060 = vcmp.eq.s32.totalorder %v976, 1
        %vm1061 = vcmp.eq.s32.totalorder %v979, 1
        %vm1062 = vcmp.eq.s32.totalorder %v982, 1
        %vm1063 = vcmp.eq.s32.totalorder %v985, 1
        %vm1064 = vcmp.eq.s32.totalorder %v988, 1
        %vm1065 = vcmp.eq.s32.totalorder %v991, 1
        %vm1066 = vcmp.eq.s32.totalorder %v994, 1
        %vm1067 = vcmp.eq.s32.totalorder %v997, 1
        %vm1068 = vcmp.eq.s32.totalorder %v1000, 1
        %vm1069 = vcmp.eq.s32.totalorder %v1003, 1
        %vm1070 = vcmp.eq.s32.totalorder %v1006, 1
        %vm1071 = vcmp.eq.s32.totalorder %v1009, 1
        %vm1072 = vcmp.eq.s32.totalorder %v1012, 1
        %vm1073 = vcmp.eq.s32.totalorder %v1015, 1
        %vm1074 = vcmp.eq.s32.totalorder %v1018, 1
        %vm1075 = vcmp.eq.s32.totalorder %v1021, 1
        %vm1076 = vcmp.eq.s32.totalorder %v1024, 1
        %vm1077 = vcmp.eq.s32.totalorder %v1027, 1
        %vm1078 = vcmp.eq.s32.totalorder %v1030, 1
        %vm1079 = vcmp.eq.s32.totalorder %v1033, 1
        %vm1080 = vcmp.eq.s32.totalorder %v1036, 1
        %vm1081 = vcmp.eq.s32.totalorder %v1039, 1
        %vm1082 = vcmp.eq.s32.totalorder %v1042, 1
        %vm1083 = vcmp.eq.s32.totalorder %v1045, 1
        %vm1084 = vcmp.eq.s32.totalorder %v1048, 1
        %vm1085 = vcmp.eq.s32.totalorder %v1051, 1
        %vm1086 = vcmp.eq.s32.totalorder %v1054, 1
        %vm1087 = vmand %vm894, %vm1055
        %vm1088 = vmand %vm894, %vm1056
        %vm1089 = vmand %vm894, %vm1057
        %vm1090 = vmand %vm894, %vm1058
        %vm1091 = vmand %vm894, %vm1059
        %vm1092 = vmand %vm894, %vm1060
        %vm1093 = vmand %vm894, %vm1061
        %vm1094 = vmand %vm894, %vm1062
        %vm1095 = vmand %vm894, %vm1063
        %vm1096 = vmand %vm894, %vm1064
        %vm1097 = vmand %vm894, %vm1065
        %vm1098 = vmand %vm894, %vm1066
        %vm1099 = vmand %vm894, %vm1067
        %vm1100 = vmand %vm894, %vm1068
        %vm1101 = vmand %vm894, %vm1069
        %vm1102 = vmand %vm894, %vm1070
        %vm1103 = vmand %vm894, %vm1071
        %vm1104 = vmand %vm894, %vm1072
        %vm1105 = vmand %vm894, %vm1073
        %vm1106 = vmand %vm894, %vm1074
        %vm1107 = vmand %vm894, %vm1075
        %vm1108 = vmand %vm894, %vm1076
        %vm1109 = vmand %vm894, %vm1077
        %vm1110 = vmand %vm894, %vm1078
        %vm1111 = vmand %vm894, %vm1079
        %vm1112 = vmand %vm894, %vm1080
        %vm1113 = vmand %vm894, %vm1081
        %vm1114 = vmand %vm894, %vm1082
        %vm1115 = vmand %vm894, %vm1083
        %vm1116 = vmand %vm894, %vm1084
        %vm1117 = vmand %vm894, %vm1085
        %vm1118 = vmand %vm894, %vm1086
        %vm1119 = vcmp.eq.s32.totalorder %v473, 64
        %vm1120 = vmor %vm1087, %vm1119
        %vm1121 = vmor %vm1088, %vm1119
        %vm1122 = vmor %vm1089, %vm1119
        %vm1123 = vmor %vm1090, %vm1119
        %vm1124 = vmor %vm1091, %vm1119
        %vm1125 = vmor %vm1092, %vm1119
        %vm1126 = vmor %vm1093, %vm1119
        %vm1127 = vmor %vm1094, %vm1119
        %vm1128 = vmor %vm1095, %vm1119
        %vm1129 = vmor %vm1096, %vm1119
        %vm1130 = vmor %vm1097, %vm1119
        %vm1131 = vmor %vm1098, %vm1119
        %vm1132 = vmor %vm1099, %vm1119
        %vm1133 = vmor %vm1100, %vm1119
        %vm1134 = vmor %vm1101, %vm1119
        %vm1135 = vmor %vm1102, %vm1119
        %vm1136 = vmor %vm1103, %vm1119
        %vm1137 = vmor %vm1104, %vm1119
        %vm1138 = vmor %vm1105, %vm1119
        %vm1139 = vmor %vm1106, %vm1119
        %vm1140 = vmor %vm1107, %vm1119
        %vm1141 = vmor %vm1108, %vm1119
        %vm1142 = vmor %vm1109, %vm1119
        %vm1143 = vmor %vm1110, %vm1119
        %vm1144 = vmor %vm1111, %vm1119
        %vm1145 = vmor %vm1112, %vm1119
        %vm1146 = vmor %vm1113, %vm1119
        %vm1147 = vmor %vm1114, %vm1119
        %vm1148 = vmor %vm1115, %vm1119
        %vm1149 = vmor %vm1116, %vm1119
        %vm1150 = vmor %vm1117, %vm1119
        %vm1151 = vmor %vm1118, %vm1119
        %v1152 = vsel %vm1120, 1.0, 0.0
        %v1153 = vsel %vm1121, 1.0, 0.0
        %v1154 = vsel %vm1122, 1.0, 0.0
        %v1155 = vsel %vm1123, 1.0, 0.0
        %v1156 = vsel %vm1124, 1.0, 0.0
        %v1157 = vsel %vm1125, 1.0, 0.0
        %v1158 = vsel %vm1126, 1.0, 0.0
        %v1159 = vsel %vm1127, 1.0, 0.0
        %v1160 = vsel %vm1128, 1.0, 0.0
        %v1161 = vsel %vm1129, 1.0, 0.0
        %v1162 = vsel %vm1130, 1.0, 0.0
        %v1163 = vsel %vm1131, 1.0, 0.0
        %v1164 = vsel %vm1132, 1.0, 0.0
        %v1165 = vsel %vm1133, 1.0, 0.0
        %v1166 = vsel %vm1134, 1.0, 0.0
        %v1167 = vsel %vm1135, 1.0, 0.0
        %v1168 = vsel %vm1136, 1.0, 0.0
        %v1169 = vsel %vm1137, 1.0, 0.0
        %v1170 = vsel %vm1138, 1.0, 0.0
        %v1171 = vsel %vm1139, 1.0, 0.0
        %v1172 = vsel %vm1140, 1.0, 0.0
        %v1173 = vsel %vm1141, 1.0, 0.0
        %v1174 = vsel %vm1142, 1.0, 0.0
        %v1175 = vsel %vm1143, 1.0, 0.0
        %v1176 = vsel %vm1144, 1.0, 0.0
        %v1177 = vsel %vm1145, 1.0, 0.0
        %v1178 = vsel %vm1146, 1.0, 0.0
        %v1179 = vsel %vm1147, 1.0, 0.0
        %v1180 = vsel %vm1148, 1.0, 0.0
        %v1181 = vsel %vm1149, 1.0, 0.0
        %v1182 = vsel %vm1150, 1.0, 0.0
        %v1183 = vsel %vm1151, 1.0, 0.0
        %v1184 = vpack.c.bf16 %v1153, %v1152
        %v1185 = vpack.c.bf16 %v1155, %v1154
        %v1186 = vpack.c.bf16 %v1157, %v1156
        %v1187 = vpack.c.bf16 %v1159, %v1158
        %v1188 = vpack.c.bf16 %v1161, %v1160
        %v1189 = vpack.c.bf16 %v1163, %v1162
        %v1190 = vpack.c.bf16 %v1165, %v1164
        %v1191 = vpack.c.bf16 %v1167, %v1166
        %v1192 = vpack.c.bf16 %v1169, %v1168
        %v1193 = vpack.c.bf16 %v1171, %v1170
        %v1194 = vpack.c.bf16 %v1173, %v1172
        %v1195 = vpack.c.bf16 %v1175, %v1174
        %v1196 = vpack.c.bf16 %v1177, %v1176
        %v1197 = vpack.c.bf16 %v1179, %v1178
        %v1198 = vpack.c.bf16 %v1181, %v1180
        %v1199 = vpack.c.bf16 %v1183, %v1182
        %1200 = vmatprep.subr.bf16.mxu0 0
        %1201 = vmatpush1.bf16.msra.mxu0 %v1184
        %1202 = vmatprep.subr.bf16.mxu0 0
        %1203 = vmatpush1.bf16.msra.mxu0 %v1185
        %1204 = vmatprep.subr.bf16.mxu0 0
        %1205 = vmatpush1.bf16.msra.mxu0 %v1186
        %1206 = vmatprep.subr.bf16.mxu0 0
        %1207 = vmatpush1.bf16.msra.mxu0 %v1187
        %1208 = vmatprep.subr.bf16.mxu0 0
        %1209 = vmatpush1.bf16.msra.mxu0 %v1188
        %1210 = vmatprep.subr.bf16.mxu0 0
        %1211 = vmatpush1.bf16.msra.mxu0 %v1189
        %1212 = vmatprep.subr.bf16.mxu0 0
        %1213 = vmatpush1.bf16.msra.mxu0 %v1190
        %1214 = vmatprep.subr.bf16.mxu0 0
        %1215 = vmatpush1.bf16.msra.mxu0 %v1191
        %1216 = vmatprep.subr.bf16.mxu0 0
        %1217 = vmatpush1.bf16.msra.mxu0 %v1192
        %1218 = vmatprep.subr.bf16.mxu0 0
        %1219 = vmatpush1.bf16.msra.mxu0 %v1193
        %1220 = vmatprep.subr.bf16.mxu0 0
        %1221 = vmatpush1.bf16.msra.mxu0 %v1194
        %1222 = vmatprep.subr.bf16.mxu0 0
        %1223 = vmatpush1.bf16.msra.mxu0 %v1195
        %1224 = vmatprep.subr.bf16.mxu0 0
        %1225 = vmatpush1.bf16.msra.mxu0 %v1196
        %1226 = vmatprep.subr.bf16.mxu0 0
        %1227 = vmatpush1.bf16.msra.mxu0 %v1197
        %1228 = vmatprep.subr.bf16.mxu0 0
        %1229 = vmatpush1.bf16.msra.mxu0 %v1198
        %1230 = vmatprep.subr.bf16.mxu0 0
        %1231 = vmatpush1.bf16.msra.mxu0 %v1199
        %1232 = vmatprep.mubr.bf16.mxu0 %v879
        %1233 = vmatmul.mubr.bf16.gmra.mrb[0].mxu0 %v878
        %v1234 = vpop.f32.mrb[0].mxu0
        %v1235 = vadd.f32 0.0, %v1234
        %v1236 = vpop.f32.mrb[0].mxu0
        %v1237 = vpop.f32.mrb[0].mxu0
        %v1238 = vadd.f32 0.0, %v1237
        %v1239 = vpop.f32.mrb[0].mxu0
        %1240 = vmatprep.mubr.bf16.mxu0 %v881
        %1241 = vmatmul.mubr.bf16.gmra.mrb[0].mxu0 %v880
        %v1242 = vpop.f32.mrb[0].mxu0
        %v1243 = vadd.f32 0.0, %v1242
        %v1244 = vpop.f32.mrb[0].mxu0
        %v1245 = vpop.f32.mrb[0].mxu0
        %v1246 = vadd.f32 0.0, %v1245
        %v1247 = vpop.f32.mrb[0].mxu0
        %1248 = vmatprep.mubr.bf16.mxu0 %v883
        %1249 = vmatmul.mubr.bf16.gmra.mrb[0].mxu0 %v882
        %v1250 = vpop.f32.mrb[0].mxu0
        %v1251 = vadd.f32 0.0, %v1250
        %v1252 = vpop.f32.mrb[0].mxu0
        %v1253 = vpop.f32.mrb[0].mxu0
        %v1254 = vadd.f32 0.0, %v1253
        %v1255 = vpop.f32.mrb[0].mxu0
        %1256 = vmatprep.mubr.bf16.mxu0 %v885
        %1257 = vmatmul.mubr.bf16.gmra.mrb[0].mxu0 %v884
        %v1258 = vpop.f32.mrb[0].mxu0
        %v1259 = vadd.f32 0.0, %v1258
        %v1260 = vpop.f32.mrb[0].mxu0
        %v1261 = vpop.f32.mrb[0].mxu0
        %v1262 = vadd.f32 0.0, %v1261
        %v1263 = vpop.f32.mrb[0].mxu0
        %1264 = vmatprep.mubr.bf16.mxu0 %v887
        %1265 = vmatmul.mubr.bf16.gmra.mrb[0].mxu0 %v886
        %v1266 = vpop.f32.mrb[0].mxu0
        %v1267 = vadd.f32 0.0, %v1266
        %v1268 = vpop.f32.mrb[0].mxu0
        %v1269 = vpop.f32.mrb[0].mxu0
        %v1270 = vadd.f32 0.0, %v1269
        %v1271 = vpop.f32.mrb[0].mxu0
        %1272 = vmatprep.mubr.bf16.mxu0 %v889
        %1273 = vmatmul.mubr.bf16.gmra.mrb[0].mxu0 %v888
        %v1274 = vpop.f32.mrb[0].mxu0
        %v1275 = vadd.f32 0.0, %v1274
        %v1276 = vpop.f32.mrb[0].mxu0
        %v1277 = vpop.f32.mrb[0].mxu0
        %v1278 = vadd.f32 0.0, %v1277
        %v1279 = vpop.f32.mrb[0].mxu0
        %1280 = vmatprep.mubr.bf16.mxu0 %v891
        %1281 = vmatmul.mubr.bf16.gmra.mrb[0].mxu0 %v890
        %v1282 = vpop.f32.mrb[0].mxu0
        %v1283 = vadd.f32 0.0, %v1282
        %v1284 = vpop.f32.mrb[0].mxu0
        %v1285 = vpop.f32.mrb[0].mxu0
        %v1286 = vadd.f32 0.0, %v1285
        %v1287 = vpop.f32.mrb[0].mxu0
        %1288 = vmatprep.mubr.bf16.mxu0 %v893
        %1289 = vmatmul.mubr.bf16.gmra.mrb[0].mxu0 %v892
        %v1290 = vpop.f32.mrb[0].mxu0
        %v1291 = vadd.f32 0.0, %v1290
        %v1292 = vpop.f32.mrb[0].mxu0
        %v1293 = vpop.f32.mrb[0].mxu0
        %v1294 = vadd.f32 0.0, %v1293
        %v1295 = vpop.f32.mrb[0].mxu0
        %1296 = vdwg.mxu0
        %v1297 = vadd.f32 %v510, %v1235
        %v1298 = vadd.f32 %v511, %v1238
        %v1299 = vadd.f32 %v512, %v1243
        %v1300 = vadd.f32 %v513, %v1246
        %v1301 = vadd.f32 %v514, %v1251
        %v1302 = vadd.f32 %v515, %v1254
        %v1303 = vadd.f32 %v516, %v1259
        %v1304 = vadd.f32 %v517, %v1262
        %v1305 = vadd.f32 %v518, %v1267
        %v1306 = vadd.f32 %v519, %v1270
        %v1307 = vadd.f32 %v520, %v1275
        %v1308 = vadd.f32 %v521, %v1278
        %v1309 = vadd.f32 %v522, %v1283
        %v1310 = vadd.f32 %v523, %v1286
        %v1311 = vadd.f32 %v524, %v1291
        %v1312 = vadd.f32 %v525, %v1294
        %vm1313 = vcmp.eq.s32.totalorder %v386, 1
        %vm1314 = vcmp.eq.s32.totalorder %v387, 1
        %vm1315 = vcmp.eq.s32.totalorder %v388, 1
        %vm1316 = vcmp.eq.s32.totalorder %v389, 1
        %vm1317 = vcmp.eq.s32.totalorder %v390, 1
        %vm1318 = vcmp.eq.s32.totalorder %v391, 1
        %vm1319 = vcmp.eq.s32.totalorder %v392, 1
        %vm1320 = vcmp.eq.s32.totalorder %v393, 1
        %vm1321 = vcmp.eq.s32.totalorder %v394, 1
        %vm1322 = vcmp.eq.s32.totalorder %v395, 1
        %vm1323 = vcmp.eq.s32.totalorder %v396, 1
        %vm1324 = vcmp.eq.s32.totalorder %v397, 1
        %vm1325 = vcmp.eq.s32.totalorder %v398, 1
        %vm1326 = vcmp.eq.s32.totalorder %v399, 1
        %vm1327 = vcmp.eq.s32.totalorder %v400, 1
        %vm1328 = vcmp.eq.s32.totalorder %v401, 1
        %v1329 = vsel %vm1313, 1, 0
        %v1330 = vsel %vm1314, 1, 0
        %v1331 = vsel %vm1315, 1, 0
        %v1332 = vsel %vm1316, 1, 0
        %v1333 = vsel %vm1317, 1, 0
        %v1334 = vsel %vm1318, 1, 0
        %v1335 = vsel %vm1319, 1, 0
        %v1336 = vsel %vm1320, 1, 0
        %v1337 = vsel %vm1321, 1, 0
        %v1338 = vsel %vm1322, 1, 0
        %v1339 = vsel %vm1323, 1, 0
        %v1340 = vsel %vm1324, 1, 0
        %v1341 = vsel %vm1325, 1, 0
        %v1342 = vsel %vm1326, 1, 0
        %v1343 = vsel %vm1327, 1, 0
        %v1344 = vsel %vm1328, 1, 0
        %v1345 = vcvt.s32.f32 %v1329
        %v1346 = vcvt.s32.f32 %v1330
        %v1347 = vcvt.s32.f32 %v1331
        %v1348 = vcvt.s32.f32 %v1332
        %v1349 = vcvt.s32.f32 %v1333
        %v1350 = vcvt.s32.f32 %v1334
        %v1351 = vcvt.s32.f32 %v1335
        %v1352 = vcvt.s32.f32 %v1336
        %v1353 = vcvt.s32.f32 %v1337
        %v1354 = vcvt.s32.f32 %v1338
        %v1355 = vcvt.s32.f32 %v1339
        %v1356 = vcvt.s32.f32 %v1340
        %v1357 = vcvt.s32.f32 %v1341
        %v1358 = vcvt.s32.f32 %v1342
        %v1359 = vcvt.s32.f32 %v1343
        %v1360 = vcvt.s32.f32 %v1344
        %1377 = vrot.lane.b32.xlu0 %v370, 127
        %v1378 = vpop.permute.xlu0 %1377
        %1379 = vrot.lane.b32.xlu0 %v371, 127
        %v1380 = vpop.permute.xlu0 %1379
        %1381 = vrot.lane.b32.xlu0 %v372, 127
        %v1382 = vpop.permute.xlu0 %1381
        %1383 = vrot.lane.b32.xlu0 %v373, 127
        %v1384 = vpop.permute.xlu0 %1383
        %1385 = vrot.lane.b32.xlu0 %v374, 127
        %v1386 = vpop.permute.xlu0 %1385
        %1387 = vrot.lane.b32.xlu0 %v375, 127
        %v1388 = vpop.permute.xlu0 %1387
        %1389 = vrot.lane.b32.xlu0 %v376, 127
        %v1390 = vpop.permute.xlu0 %1389
        %1391 = vrot.lane.b32.xlu0 %v377, 127
        %v1392 = vpop.permute.xlu0 %1391
        %1393 = vrot.lane.b32.xlu0 %v378, 127
        %v1394 = vpop.permute.xlu0 %1393
        %1395 = vrot.lane.b32.xlu0 %v379, 127
        %v1396 = vpop.permute.xlu0 %1395
        %1397 = vrot.lane.b32.xlu0 %v380, 127
        %v1398 = vpop.permute.xlu0 %1397
        %1399 = vrot.lane.b32.xlu0 %v381, 127
        %v1400 = vpop.permute.xlu0 %1399
        %1401 = vrot.lane.b32.xlu0 %v382, 127
        %v1402 = vpop.permute.xlu0 %1401
        %1403 = vrot.lane.b32.xlu0 %v383, 127
        %v1404 = vpop.permute.xlu0 %1403
        %1405 = vrot.lane.b32.xlu0 %v384, 127
        %v1406 = vpop.permute.xlu0 %1405
        %1407 = vrot.lane.b32.xlu0 %v385, 127
        %v1408 = vpop.permute.xlu0 %1407
        %v1425 = vsub.f32 %v1345, %v1378
        %v1426 = vsub.f32 %v1346, %v1380
        %v1427 = vsub.f32 %v1347, %v1382
        %v1428 = vsub.f32 %v1348, %v1384
        %v1429 = vsub.f32 %v1349, %v1386
        %v1430 = vsub.f32 %v1350, %v1388
        %v1431 = vsub.f32 %v1351, %v1390
        %v1432 = vsub.f32 %v1352, %v1392
        %v1433 = vsub.f32 %v1353, %v1394
        %v1434 = vsub.f32 %v1354, %v1396
        %v1435 = vsub.f32 %v1355, %v1398
        %v1436 = vsub.f32 %v1356, %v1400
        %v1437 = vsub.f32 %v1357, %v1402
        %v1438 = vsub.f32 %v1358, %v1404
        %v1439 = vsub.f32 %v1359, %v1406
        %v1440 = vsub.f32 %v1360, %v1408
        %v1441 = vand.u32 2147483647, %v1425
        %v1442 = vand.u32 2147483647, %v1426
        %v1443 = vand.u32 2147483647, %v1427
        %v1444 = vand.u32 2147483647, %v1428
        %v1445 = vand.u32 2147483647, %v1429
        %v1446 = vand.u32 2147483647, %v1430
        %v1447 = vand.u32 2147483647, %v1431
        %v1448 = vand.u32 2147483647, %v1432
        %v1449 = vand.u32 2147483647, %v1433
        %v1450 = vand.u32 2147483647, %v1434
        %v1451 = vand.u32 2147483647, %v1435
        %v1452 = vand.u32 2147483647, %v1436
        %v1453 = vand.u32 2147483647, %v1437
        %v1454 = vand.u32 2147483647, %v1438
        %v1455 = vand.u32 2147483647, %v1439
        %v1456 = vand.u32 2147483647, %v1440
        %vm1457 = vcmp.eq.s32.totalorder %v403, 1
        %v1458 = vsel %vm1457, 1, 0
        %v1459 = vcvt.s32.f32 %v1458
        %v1460 = vcombine.high %v616, %v616
        %v1462 = vunpack.c.l.s4 1966171168
        %v1463 = vunpack.c.0.s8 %v1462
        %v1464 = vlaneseq
        %v1465 = vshrl.u32 %v1464, 7
        %v1466 = vsub.s32 %v1463, %v1465
        %v1467 = vrot.slane %v1460, %v1466
        %v1469 = vsub.f32 %v1459, %v1467
        %v1470 = vand.u32 2147483647, %v1469
        %v1472 = vlaneseq
        %v1473 = vshrl.u32 %v1472, 7
        %v1474 = vsub.s32 0, %v1473
        %v1475 = vrot.slane %v1470, %v1474
        %v1476 = vlaneseq
        %v1477 = vshrl.u32 %v1476, 7
        %v1478 = vsub.s32 1, %v1477
        %v1479 = vrot.slane %v1470, %v1478
        %1483 = vset.pattern.permute.xlu0 0
        %1484 = vperm.xlu0 %1483, %v1441
        %v1485 = vpop.permute.xlu0 %1484
        %1488 = vset.pattern.permute.xlu0 0
        %1489 = vperm.xlu0 %1488, %v1442
        %v1490 = vpop.permute.xlu0 %1489
        %1493 = vset.pattern.permute.xlu0 0
        %1494 = vperm.xlu0 %1493, %v1443
        %v1495 = vpop.permute.xlu0 %1494
        %1498 = vset.pattern.permute.xlu0 0
        %1499 = vperm.xlu0 %1498, %v1444
        %v1500 = vpop.permute.xlu0 %1499
        %1503 = vset.pattern.permute.xlu0 0
        %1504 = vperm.xlu0 %1503, %v1445
        %v1505 = vpop.permute.xlu0 %1504
        %1508 = vset.pattern.permute.xlu0 0
        %1509 = vperm.xlu0 %1508, %v1446
        %v1510 = vpop.permute.xlu0 %1509
        %1513 = vset.pattern.permute.xlu0 0
        %1514 = vperm.xlu0 %1513, %v1447
        %v1515 = vpop.permute.xlu0 %1514
        %1518 = vset.pattern.permute.xlu0 0
        %1519 = vperm.xlu0 %1518, %v1448
        %v1520 = vpop.permute.xlu0 %1519
        %1523 = vset.pattern.permute.xlu0 0
        %1524 = vperm.xlu0 %1523, %v1449
        %v1525 = vpop.permute.xlu0 %1524
        %1528 = vset.pattern.permute.xlu0 0
        %1529 = vperm.xlu0 %1528, %v1450
        %v1530 = vpop.permute.xlu0 %1529
        %1533 = vset.pattern.permute.xlu0 0
        %1534 = vperm.xlu0 %1533, %v1451
        %v1535 = vpop.permute.xlu0 %1534
        %1538 = vset.pattern.permute.xlu0 0
        %1539 = vperm.xlu0 %1538, %v1452
        %v1540 = vpop.permute.xlu0 %1539
        %1543 = vset.pattern.permute.xlu0 0
        %1544 = vperm.xlu0 %1543, %v1453
        %v1545 = vpop.permute.xlu0 %1544
        %1548 = vset.pattern.permute.xlu0 0
        %1549 = vperm.xlu0 %1548, %v1454
        %v1550 = vpop.permute.xlu0 %1549
        %1553 = vset.pattern.permute.xlu0 0
        %1554 = vperm.xlu0 %1553, %v1455
        %v1555 = vpop.permute.xlu0 %1554
        %1558 = vset.pattern.permute.xlu0 0
        %1559 = vperm.xlu0 %1558, %v1456
        %v1560 = vpop.permute.xlu0 %1559
        %vm1562 = vcmp.gt.f32.partialorder %v1475, %v1485
        %vm1563 = vcmp.gt.f32.partialorder %v1479, %v1485
        %vm1564 = vcmp.gt.f32.partialorder %v1475, %v1490
        %vm1565 = vcmp.gt.f32.partialorder %v1479, %v1490
        %vm1566 = vcmp.gt.f32.partialorder %v1475, %v1495
        %vm1567 = vcmp.gt.f32.partialorder %v1479, %v1495
        %vm1568 = vcmp.gt.f32.partialorder %v1475, %v1500
        %vm1569 = vcmp.gt.f32.partialorder %v1479, %v1500
        %vm1570 = vcmp.gt.f32.partialorder %v1475, %v1505
        %vm1571 = vcmp.gt.f32.partialorder %v1479, %v1505
        %vm1572 = vcmp.gt.f32.partialorder %v1475, %v1510
        %vm1573 = vcmp.gt.f32.partialorder %v1479, %v1510
        %vm1574 = vcmp.gt.f32.partialorder %v1475, %v1515
        %vm1575 = vcmp.gt.f32.partialorder %v1479, %v1515
        %vm1576 = vcmp.gt.f32.partialorder %v1475, %v1520
        %vm1577 = vcmp.gt.f32.partialorder %v1479, %v1520
        %vm1578 = vcmp.gt.f32.partialorder %v1475, %v1525
        %vm1579 = vcmp.gt.f32.partialorder %v1479, %v1525
        %vm1580 = vcmp.gt.f32.partialorder %v1475, %v1530
        %vm1581 = vcmp.gt.f32.partialorder %v1479, %v1530
        %vm1582 = vcmp.gt.f32.partialorder %v1475, %v1535
        %vm1583 = vcmp.gt.f32.partialorder %v1479, %v1535
        %vm1584 = vcmp.gt.f32.partialorder %v1475, %v1540
        %vm1585 = vcmp.gt.f32.partialorder %v1479, %v1540
        %vm1586 = vcmp.gt.f32.partialorder %v1475, %v1545
        %vm1587 = vcmp.gt.f32.partialorder %v1479, %v1545
        %vm1588 = vcmp.gt.f32.partialorder %v1475, %v1550
        %vm1589 = vcmp.gt.f32.partialorder %v1479, %v1550
        %vm1590 = vcmp.gt.f32.partialorder %v1475, %v1555
        %vm1591 = vcmp.gt.f32.partialorder %v1479, %v1555
        %vm1592 = vcmp.gt.f32.partialorder %v1475, %v1560
        %vm1593 = vcmp.gt.f32.partialorder %v1479, %v1560
        %vm1594 = vcmp.eq.f32.partialorder %v1475, %v1485
        %vm1595 = vcmp.eq.f32.partialorder %v1479, %v1485
        %vm1596 = vcmp.eq.f32.partialorder %v1475, %v1490
        %vm1597 = vcmp.eq.f32.partialorder %v1479, %v1490
        %vm1598 = vcmp.eq.f32.partialorder %v1475, %v1495
        %vm1599 = vcmp.eq.f32.partialorder %v1479, %v1495
        %vm1600 = vcmp.eq.f32.partialorder %v1475, %v1500
        %vm1601 = vcmp.eq.f32.partialorder %v1479, %v1500
        %vm1602 = vcmp.eq.f32.partialorder %v1475, %v1505
        %vm1603 = vcmp.eq.f32.partialorder %v1479, %v1505
        %vm1604 = vcmp.eq.f32.partialorder %v1475, %v1510
        %vm1605 = vcmp.eq.f32.partialorder %v1479, %v1510
        %vm1606 = vcmp.eq.f32.partialorder %v1475, %v1515
        %vm1607 = vcmp.eq.f32.partialorder %v1479, %v1515
        %vm1608 = vcmp.eq.f32.partialorder %v1475, %v1520
        %vm1609 = vcmp.eq.f32.partialorder %v1479, %v1520
        %vm1610 = vcmp.eq.f32.partialorder %v1475, %v1525
        %vm1611 = vcmp.eq.f32.partialorder %v1479, %v1525
        %vm1612 = vcmp.eq.f32.partialorder %v1475, %v1530
        %vm1613 = vcmp.eq.f32.partialorder %v1479, %v1530
        %vm1614 = vcmp.eq.f32.partialorder %v1475, %v1535
        %vm1615 = vcmp.eq.f32.partialorder %v1479, %v1535
        %vm1616 = vcmp.eq.f32.partialorder %v1475, %v1540
        %vm1617 = vcmp.eq.f32.partialorder %v1479, %v1540
        %vm1618 = vcmp.eq.f32.partialorder %v1475, %v1545
        %vm1619 = vcmp.eq.f32.partialorder %v1479, %v1545
        %vm1620 = vcmp.eq.f32.partialorder %v1475, %v1550
        %vm1621 = vcmp.eq.f32.partialorder %v1479, %v1550
        %vm1622 = vcmp.eq.f32.partialorder %v1475, %v1555
        %vm1623 = vcmp.eq.f32.partialorder %v1479, %v1555
        %vm1624 = vcmp.eq.f32.partialorder %v1475, %v1560
        %vm1625 = vcmp.eq.f32.partialorder %v1479, %v1560
        %vm1626 = vmand %vm1594, %vm478
        %vm1627 = vmand %vm1595, %vm479
        %vm1628 = vmand %vm1596, %vm480
        %vm1629 = vmand %vm1597, %vm481
        %vm1630 = vmand %vm1598, %vm482
        %vm1631 = vmand %vm1599, %vm483
        %vm1632 = vmand %vm1600, %vm484
        %vm1633 = vmand %vm1601, %vm485
        %vm1634 = vmand %vm1602, %vm486
        %vm1635 = vmand %vm1603, %vm487
        %vm1636 = vmand %vm1604, %vm488
        %vm1637 = vmand %vm1605, %vm489
        %vm1638 = vmand %vm1606, %vm490
        %vm1639 = vmand %vm1607, %vm491
        %vm1640 = vmand %vm1608, %vm492
        %vm1641 = vmand %vm1609, %vm493
        %vm1642 = vmand %vm1610, %vm494
        %vm1643 = vmand %vm1611, %vm495
        %vm1644 = vmand %vm1612, %vm496
        %vm1645 = vmand %vm1613, %vm497
        %vm1646 = vmand %vm1614, %vm498
        %vm1647 = vmand %vm1615, %vm499
        %vm1648 = vmand %vm1616, %vm500
        %vm1649 = vmand %vm1617, %vm501
        %vm1650 = vmand %vm1618, %vm502
        %vm1651 = vmand %vm1619, %vm503
        %vm1652 = vmand %vm1620, %vm504
        %vm1653 = vmand %vm1621, %vm505
        %vm1654 = vmand %vm1622, %vm506
        %vm1655 = vmand %vm1623, %vm507
        %vm1656 = vmand %vm1624, %vm508
        %vm1657 = vmand %vm1625, %vm509
        %vm1658 = vmor %vm1562, %vm1626
        %vm1659 = vmor %vm1563, %vm1627
        %vm1660 = vmor %vm1564, %vm1628
        %vm1661 = vmor %vm1565, %vm1629
        %vm1662 = vmor %vm1566, %vm1630
        %vm1663 = vmor %vm1567, %vm1631
        %vm1664 = vmor %vm1568, %vm1632
        %vm1665 = vmor %vm1569, %vm1633
        %vm1666 = vmor %vm1570, %vm1634
        %vm1667 = vmor %vm1571, %vm1635
        %vm1668 = vmor %vm1572, %vm1636
        %vm1669 = vmor %vm1573, %vm1637
        %vm1670 = vmor %vm1574, %vm1638
        %vm1671 = vmor %vm1575, %vm1639
        %vm1672 = vmor %vm1576, %vm1640
        %vm1673 = vmor %vm1577, %vm1641
        %vm1674 = vmor %vm1578, %vm1642
        %vm1675 = vmor %vm1579, %vm1643
        %vm1676 = vmor %vm1580, %vm1644
        %vm1677 = vmor %vm1581, %vm1645
        %vm1678 = vmor %vm1582, %vm1646
        %vm1679 = vmor %vm1583, %vm1647
        %vm1680 = vmor %vm1584, %vm1648
        %vm1681 = vmor %vm1585, %vm1649
        %vm1682 = vmor %vm1586, %vm1650
        %vm1683 = vmor %vm1587, %vm1651
        %vm1684 = vmor %vm1588, %vm1652
        %vm1685 = vmor %vm1589, %vm1653
        %vm1686 = vmor %vm1590, %vm1654
        %vm1687 = vmor %vm1591, %vm1655
        %vm1688 = vmor %vm1592, %vm1656
        %vm1689 = vmor %vm1593, %vm1657
        %v1690 = vsel %vm1658, 1.0, 0.0
        %v1691 = vsel %vm1659, 1.0, 0.0
        %v1692 = vsel %vm1660, 1.0, 0.0
        %v1693 = vsel %vm1661, 1.0, 0.0
        %v1694 = vsel %vm1662, 1.0, 0.0
        %v1695 = vsel %vm1663, 1.0, 0.0
        %v1696 = vsel %vm1664, 1.0, 0.0
        %v1697 = vsel %vm1665, 1.0, 0.0
        %v1698 = vsel %vm1666, 1.0, 0.0
        %v1699 = vsel %vm1667, 1.0, 0.0
        %v1700 = vsel %vm1668, 1.0, 0.0
        %v1701 = vsel %vm1669, 1.0, 0.0
        %v1702 = vsel %vm1670, 1.0, 0.0
        %v1703 = vsel %vm1671, 1.0, 0.0
        %v1704 = vsel %vm1672, 1.0, 0.0
        %v1705 = vsel %vm1673, 1.0, 0.0
        %v1706 = vsel %vm1674, 1.0, 0.0
        %v1707 = vsel %vm1675, 1.0, 0.0
        %v1708 = vsel %vm1676, 1.0, 0.0
        %v1709 = vsel %vm1677, 1.0, 0.0
        %v1710 = vsel %vm1678, 1.0, 0.0
        %v1711 = vsel %vm1679, 1.0, 0.0
        %v1712 = vsel %vm1680, 1.0, 0.0
        %v1713 = vsel %vm1681, 1.0, 0.0
        %v1714 = vsel %vm1682, 1.0, 0.0
        %v1715 = vsel %vm1683, 1.0, 0.0
        %v1716 = vsel %vm1684, 1.0, 0.0
        %v1717 = vsel %vm1685, 1.0, 0.0
        %v1718 = vsel %vm1686, 1.0, 0.0
        %v1719 = vsel %vm1687, 1.0, 0.0
        %v1720 = vsel %vm1688, 1.0, 0.0
        %v1721 = vsel %vm1689, 1.0, 0.0
        %v1722 = vpack.c.bf16 %v1692, %v1690
        %v1723 = vpack.c.bf16 %v1693, %v1691
        %v1724 = vpack.c.bf16 %v1696, %v1694
        %v1725 = vpack.c.bf16 %v1697, %v1695
        %v1726 = vpack.c.bf16 %v1700, %v1698
        %v1727 = vpack.c.bf16 %v1701, %v1699
        %v1728 = vpack.c.bf16 %v1704, %v1702
        %v1729 = vpack.c.bf16 %v1705, %v1703
        %v1730 = vpack.c.bf16 %v1708, %v1706
        %v1731 = vpack.c.bf16 %v1709, %v1707
        %v1732 = vpack.c.bf16 %v1712, %v1710
        %v1733 = vpack.c.bf16 %v1713, %v1711
        %v1734 = vpack.c.bf16 %v1716, %v1714
        %v1735 = vpack.c.bf16 %v1717, %v1715
        %v1736 = vpack.c.bf16 %v1720, %v1718
        %v1737 = vpack.c.bf16 %v1721, %v1719
        %vm1738 = vcmp.eq.s32.totalorder %v473, 1
        %vm1739 = vcmp.eq.s32.totalorder %v404, 1
        %vm1740 = vcmp.eq.s32.totalorder %v405, 1
        %vm1741 = vcmp.eq.s32.totalorder %v406, 1
        %vm1742 = vcmp.eq.s32.totalorder %v407, 1
        %vm1743 = vcmp.eq.s32.totalorder %v408, 1
        %vm1744 = vcmp.eq.s32.totalorder %v409, 1
        %vm1745 = vcmp.eq.s32.totalorder %v410, 1
        %vm1746 = vcmp.eq.s32.totalorder %v411, 1
        %vm1747 = vcmp.eq.s32.totalorder %v412, 1
        %vm1748 = vcmp.eq.s32.totalorder %v413, 1
        %vm1749 = vcmp.eq.s32.totalorder %v414, 1
        %vm1750 = vcmp.eq.s32.totalorder %v415, 1
        %vm1751 = vcmp.eq.s32.totalorder %v416, 1
        %vm1752 = vcmp.eq.s32.totalorder %v417, 1
        %vm1753 = vcmp.eq.s32.totalorder %v418, 1
        %vm1754 = vcmp.eq.s32.totalorder %v419, 1
        %vm1755 = vcmp.eq.s32.totalorder %v420, 1
        %vm1756 = vcmp.eq.s32.totalorder %v421, 1
        %vm1757 = vcmp.eq.s32.totalorder %v422, 1
        %vm1758 = vcmp.eq.s32.totalorder %v423, 1
        %vm1759 = vcmp.eq.s32.totalorder %v424, 1
        %vm1760 = vcmp.eq.s32.totalorder %v425, 1
        %vm1761 = vcmp.eq.s32.totalorder %v426, 1
        %vm1762 = vcmp.eq.s32.totalorder %v427, 1
        %vm1763 = vcmp.eq.s32.totalorder %v428, 1
        %vm1764 = vcmp.eq.s32.totalorder %v429, 1
        %vm1765 = vcmp.eq.s32.totalorder %v430, 1
        %vm1766 = vcmp.eq.s32.totalorder %v431, 1
        %vm1767 = vcmp.eq.s32.totalorder %v432, 1
        %vm1768 = vcmp.eq.s32.totalorder %v433, 1
        %vm1769 = vcmp.eq.s32.totalorder %v434, 1
        %vm1770 = vcmp.eq.s32.totalorder %v435, 1
        %v1771 = vsel %vm1739, 1, 0
        %v1772 = vsel %vm1740, 1, 0
        %v1773 = vsel %vm1741, 1, 0
        %v1774 = vsel %vm1742, 1, 0
        %v1775 = vsel %vm1743, 1, 0
        %v1776 = vsel %vm1744, 1, 0
        %v1777 = vsel %vm1745, 1, 0
        %v1778 = vsel %vm1746, 1, 0
        %v1779 = vsel %vm1747, 1, 0
        %v1780 = vsel %vm1748, 1, 0
        %v1781 = vsel %vm1749, 1, 0
        %v1782 = vsel %vm1750, 1, 0
        %v1783 = vsel %vm1751, 1, 0
        %v1784 = vsel %vm1752, 1, 0
        %v1785 = vsel %vm1753, 1, 0
        %v1786 = vsel %vm1754, 1, 0
        %v1787 = vsel %vm1755, 1, 0
        %v1788 = vsel %vm1756, 1, 0
        %v1789 = vsel %vm1757, 1, 0
        %v1790 = vsel %vm1758, 1, 0
        %v1791 = vsel %vm1759, 1, 0
        %v1792 = vsel %vm1760, 1, 0
        %v1793 = vsel %vm1761, 1, 0
        %v1794 = vsel %vm1762, 1, 0
        %v1795 = vsel %vm1763, 1, 0
        %v1796 = vsel %vm1764, 1, 0
        %v1797 = vsel %vm1765, 1, 0
        %v1798 = vsel %vm1766, 1, 0
        %v1799 = vsel %vm1767, 1, 0
        %v1800 = vsel %vm1768, 1, 0
        %v1801 = vsel %vm1769, 1, 0
        %v1802 = vsel %vm1770, 1, 0
        %1803 = vset.pattern.permute.xlu0 0
        %1804 = vperm.xlu0 %1803, %v1771
        %v1805 = vpop.permute.xlu0 %1804
        %1806 = vset.pattern.permute.xlu0 0
        %1807 = vperm.xlu0 %1806, %v1772
        %v1808 = vpop.permute.xlu0 %1807
        %1809 = vset.pattern.permute.xlu0 0
        %1810 = vperm.xlu0 %1809, %v1773
        %v1811 = vpop.permute.xlu0 %1810
        %1812 = vset.pattern.permute.xlu0 0
        %1813 = vperm.xlu0 %1812, %v1774
        %v1814 = vpop.permute.xlu0 %1813
        %1815 = vset.pattern.permute.xlu0 0
        %1816 = vperm.xlu0 %1815, %v1775
        %v1817 = vpop.permute.xlu0 %1816
        %1818 = vset.pattern.permute.xlu0 0
        %1819 = vperm.xlu0 %1818, %v1776
        %v1820 = vpop.permute.xlu0 %1819
        %1821 = vset.pattern.permute.xlu0 0
        %1822 = vperm.xlu0 %1821, %v1777
        %v1823 = vpop.permute.xlu0 %1822
        %1824 = vset.pattern.permute.xlu0 0
        %1825 = vperm.xlu0 %1824, %v1778
        %v1826 = vpop.permute.xlu0 %1825
        %1827 = vset.pattern.permute.xlu0 0
        %1828 = vperm.xlu0 %1827, %v1779
        %v1829 = vpop.permute.xlu0 %1828
        %1830 = vset.pattern.permute.xlu0 0
        %1831 = vperm.xlu0 %1830, %v1780
        %v1832 = vpop.permute.xlu0 %1831
        %1833 = vset.pattern.permute.xlu0 0
        %1834 = vperm.xlu0 %1833, %v1781
        %v1835 = vpop.permute.xlu0 %1834
        %1836 = vset.pattern.permute.xlu0 0
        %1837 = vperm.xlu0 %1836, %v1782
        %v1838 = vpop.permute.xlu0 %1837
        %1839 = vset.pattern.permute.xlu0 0
        %1840 = vperm.xlu0 %1839, %v1783
        %v1841 = vpop.permute.xlu0 %1840
        %1842 = vset.pattern.permute.xlu0 0
        %1843 = vperm.xlu0 %1842, %v1784
        %v1844 = vpop.permute.xlu0 %1843
        %1845 = vset.pattern.permute.xlu0 0
        %1846 = vperm.xlu0 %1845, %v1785
        %v1847 = vpop.permute.xlu0 %1846
        %1848 = vset.pattern.permute.xlu0 0
        %1849 = vperm.xlu0 %1848, %v1786
        %v1850 = vpop.permute.xlu0 %1849
        %1851 = vset.pattern.permute.xlu0 0
        %1852 = vperm.xlu0 %1851, %v1787
        %v1853 = vpop.permute.xlu0 %1852
        %1854 = vset.pattern.permute.xlu0 0
        %1855 = vperm.xlu0 %1854, %v1788
        %v1856 = vpop.permute.xlu0 %1855
        %1857 = vset.pattern.permute.xlu0 0
        %1858 = vperm.xlu0 %1857, %v1789
        %v1859 = vpop.permute.xlu0 %1858
        %1860 = vset.pattern.permute.xlu0 0
        %1861 = vperm.xlu0 %1860, %v1790
        %v1862 = vpop.permute.xlu0 %1861
        %1863 = vset.pattern.permute.xlu0 0
        %1864 = vperm.xlu0 %1863, %v1791
        %v1865 = vpop.permute.xlu0 %1864
        %1866 = vset.pattern.permute.xlu0 0
        %1867 = vperm.xlu0 %1866, %v1792
        %v1868 = vpop.permute.xlu0 %1867
        %1869 = vset.pattern.permute.xlu0 0
        %1870 = vperm.xlu0 %1869, %v1793
        %v1871 = vpop.permute.xlu0 %1870
        %1872 = vset.pattern.permute.xlu0 0
        %1873 = vperm.xlu0 %1872, %v1794
        %v1874 = vpop.permute.xlu0 %1873
        %1875 = vset.pattern.permute.xlu0 0
        %1876 = vperm.xlu0 %1875, %v1795
        %v1877 = vpop.permute.xlu0 %1876
        %1878 = vset.pattern.permute.xlu0 0
        %1879 = vperm.xlu0 %1878, %v1796
        %v1880 = vpop.permute.xlu0 %1879
        %1881 = vset.pattern.permute.xlu0 0
        %1882 = vperm.xlu0 %1881, %v1797
        %v1883 = vpop.permute.xlu0 %1882
        %1884 = vset.pattern.permute.xlu0 0
        %1885 = vperm.xlu0 %1884, %v1798
        %v1886 = vpop.permute.xlu0 %1885
        %1887 = vset.pattern.permute.xlu0 0
        %1888 = vperm.xlu0 %1887, %v1799
        %v1889 = vpop.permute.xlu0 %1888
        %1890 = vset.pattern.permute.xlu0 0
        %1891 = vperm.xlu0 %1890, %v1800
        %v1892 = vpop.permute.xlu0 %1891
        %1893 = vset.pattern.permute.xlu0 0
        %1894 = vperm.xlu0 %1893, %v1801
        %v1895 = vpop.permute.xlu0 %1894
        %1896 = vset.pattern.permute.xlu0 0
        %1897 = vperm.xlu0 %1896, %v1802
        %v1898 = vpop.permute.xlu0 %1897
        %vm1899 = vcmp.eq.s32.totalorder %v1805, 1
        %vm1900 = vcmp.eq.s32.totalorder %v1808, 1
        %vm1901 = vcmp.eq.s32.totalorder %v1811, 1
        %vm1902 = vcmp.eq.s32.totalorder %v1814, 1
        %vm1903 = vcmp.eq.s32.totalorder %v1817, 1
        %vm1904 = vcmp.eq.s32.totalorder %v1820, 1
        %vm1905 = vcmp.eq.s32.totalorder %v1823, 1
        %vm1906 = vcmp.eq.s32.totalorder %v1826, 1
        %vm1907 = vcmp.eq.s32.totalorder %v1829, 1
        %vm1908 = vcmp.eq.s32.totalorder %v1832, 1
        %vm1909 = vcmp.eq.s32.totalorder %v1835, 1
        %vm1910 = vcmp.eq.s32.totalorder %v1838, 1
        %vm1911 = vcmp.eq.s32.totalorder %v1841, 1
        %vm1912 = vcmp.eq.s32.totalorder %v1844, 1
        %vm1913 = vcmp.eq.s32.totalorder %v1847, 1
        %vm1914 = vcmp.eq.s32.totalorder %v1850, 1
        %vm1915 = vcmp.eq.s32.totalorder %v1853, 1
        %vm1916 = vcmp.eq.s32.totalorder %v1856, 1
        %vm1917 = vcmp.eq.s32.totalorder %v1859, 1
        %vm1918 = vcmp.eq.s32.totalorder %v1862, 1
        %vm1919 = vcmp.eq.s32.totalorder %v1865, 1
        %vm1920 = vcmp.eq.s32.totalorder %v1868, 1
        %vm1921 = vcmp.eq.s32.totalorder %v1871, 1
        %vm1922 = vcmp.eq.s32.totalorder %v1874, 1
        %vm1923 = vcmp.eq.s32.totalorder %v1877, 1
        %vm1924 = vcmp.eq.s32.totalorder %v1880, 1
        %vm1925 = vcmp.eq.s32.totalorder %v1883, 1
        %vm1926 = vcmp.eq.s32.totalorder %v1886, 1
        %vm1927 = vcmp.eq.s32.totalorder %v1889, 1
        %vm1928 = vcmp.eq.s32.totalorder %v1892, 1
        %vm1929 = vcmp.eq.s32.totalorder %v1895, 1
        %vm1930 = vcmp.eq.s32.totalorder %v1898, 1
        %vm1931 = vmand %vm1738, %vm1899
        %vm1932 = vmand %vm1738, %vm1900
        %vm1933 = vmand %vm1738, %vm1901
        %vm1934 = vmand %vm1738, %vm1902
        %vm1935 = vmand %vm1738, %vm1903
        %vm1936 = vmand %vm1738, %vm1904
        %vm1937 = vmand %vm1738, %vm1905
        %vm1938 = vmand %vm1738, %vm1906
        %vm1939 = vmand %vm1738, %vm1907
        %vm1940 = vmand %vm1738, %vm1908
        %vm1941 = vmand %vm1738, %vm1909
        %vm1942 = vmand %vm1738, %vm1910
        %vm1943 = vmand %vm1738, %vm1911
        %vm1944 = vmand %vm1738, %vm1912
        %vm1945 = vmand %vm1738, %vm1913
        %vm1946 = vmand %vm1738, %vm1914
        %vm1947 = vmand %vm1738, %vm1915
        %vm1948 = vmand %vm1738, %vm1916
        %vm1949 = vmand %vm1738, %vm1917
        %vm1950 = vmand %vm1738, %vm1918
        %vm1951 = vmand %vm1738, %vm1919
        %vm1952 = vmand %vm1738, %vm1920
        %vm1953 = vmand %vm1738, %vm1921
        %vm1954 = vmand %vm1738, %vm1922
        %vm1955 = vmand %vm1738, %vm1923
        %vm1956 = vmand %vm1738, %vm1924
        %vm1957 = vmand %vm1738, %vm1925
        %vm1958 = vmand %vm1738, %vm1926
        %vm1959 = vmand %vm1738, %vm1927
        %vm1960 = vmand %vm1738, %vm1928
        %vm1961 = vmand %vm1738, %vm1929
        %vm1962 = vmand %vm1738, %vm1930
        %vm1963 = vcmp.eq.s32.totalorder %v473, 65
        %vm1964 = vmor %vm1931, %vm1963
        %vm1965 = vmor %vm1932, %vm1963
        %vm1966 = vmor %vm1933, %vm1963
        %vm1967 = vmor %vm1934, %vm1963
        %vm1968 = vmor %vm1935, %vm1963
        %vm1969 = vmor %vm1936, %vm1963
        %vm1970 = vmor %vm1937, %vm1963
        %vm1971 = vmor %vm1938, %vm1963
        %vm1972 = vmor %vm1939, %vm1963
        %vm1973 = vmor %vm1940, %vm1963
        %vm1974 = vmor %vm1941, %vm1963
        %vm1975 = vmor %vm1942, %vm1963
        %vm1976 = vmor %vm1943, %vm1963
        %vm1977 = vmor %vm1944, %vm1963
        %vm1978 = vmor %vm1945, %vm1963
        %vm1979 = vmor %vm1946, %vm1963
        %vm1980 = vmor %vm1947, %vm1963
        %vm1981 = vmor %vm1948, %vm1963
        %vm1982 = vmor %vm1949, %vm1963
        %vm1983 = vmor %vm1950, %vm1963
        %vm1984 = vmor %vm1951, %vm1963
        %vm1985 = vmor %vm1952, %vm1963
        %vm1986 = vmor %vm1953, %vm1963
        %vm1987 = vmor %vm1954, %vm1963
        %vm1988 = vmor %vm1955, %vm1963
        %vm1989 = vmor %vm1956, %vm1963
        %vm1990 = vmor %vm1957, %vm1963
        %vm1991 = vmor %vm1958, %vm1963
        %vm1992 = vmor %vm1959, %vm1963
        %vm1993 = vmor %vm1960, %vm1963
        %vm1994 = vmor %vm1961, %vm1963
        %vm1995 = vmor %vm1962, %vm1963
        %v1996 = vsel %vm1964, 1.0, 0.0
        %v1997 = vsel %vm1965, 1.0, 0.0
        %v1998 = vsel %vm1966, 1.0, 0.0
        %v1999 = vsel %vm1967, 1.0, 0.0
        %v2000 = vsel %vm1968, 1.0, 0.0
        %v2001 = vsel %vm1969, 1.0, 0.0
        %v2002 = vsel %vm1970, 1.0, 0.0
        %v2003 = vsel %vm1971, 1.0, 0.0
        %v2004 = vsel %vm1972, 1.0, 0.0
        %v2005 = vsel %vm1973, 1.0, 0.0
        %v2006 = vsel %vm1974, 1.0, 0.0
        %v2007 = vsel %vm1975, 1.0, 0.0
        %v2008 = vsel %vm1976, 1.0, 0.0
        %v2009 = vsel %vm1977, 1.0, 0.0
        %v2010 = vsel %vm1978, 1.0, 0.0
        %v2011 = vsel %vm1979, 1.0, 0.0
        %v2012 = vsel %vm1980, 1.0, 0.0
        %v2013 = vsel %vm1981, 1.0, 0.0
        %v2014 = vsel %vm1982, 1.0, 0.0
        %v2015 = vsel %vm1983, 1.0, 0.0
        %v2016 = vsel %vm1984, 1.0, 0.0
        %v2017 = vsel %vm1985, 1.0, 0.0
        %v2018 = vsel %vm1986, 1.0, 0.0
        %v2019 = vsel %vm1987, 1.0, 0.0
        %v2020 = vsel %vm1988, 1.0, 0.0
        %v2021 = vsel %vm1989, 1.0, 0.0
        %v2022 = vsel %vm1990, 1.0, 0.0
        %v2023 = vsel %vm1991, 1.0, 0.0
        %v2024 = vsel %vm1992, 1.0, 0.0
        %v2025 = vsel %vm1993, 1.0, 0.0
        %v2026 = vsel %vm1994, 1.0, 0.0
        %v2027 = vsel %vm1995, 1.0, 0.0
        %v2028 = vpack.c.bf16 %v1997, %v1996
        %v2029 = vpack.c.bf16 %v1999, %v1998
        %v2030 = vpack.c.bf16 %v2001, %v2000
        %v2031 = vpack.c.bf16 %v2003, %v2002
        %v2032 = vpack.c.bf16 %v2005, %v2004
        %v2033 = vpack.c.bf16 %v2007, %v2006
        %v2034 = vpack.c.bf16 %v2009, %v2008
        %v2035 = vpack.c.bf16 %v2011, %v2010
        %v2036 = vpack.c.bf16 %v2013, %v2012
        %v2037 = vpack.c.bf16 %v2015, %v2014
        %v2038 = vpack.c.bf16 %v2017, %v2016
        %v2039 = vpack.c.bf16 %v2019, %v2018
        %v2040 = vpack.c.bf16 %v2021, %v2020
        %v2041 = vpack.c.bf16 %v2023, %v2022
        %v2042 = vpack.c.bf16 %v2025, %v2024
        %v2043 = vpack.c.bf16 %v2027, %v2026
        %2044 = vmatprep.subr.bf16.mxu0 0
        %2045 = vmatpush1.bf16.msra.mxu0 %v2028
        %2046 = vmatprep.subr.bf16.mxu0 0
        %2047 = vmatpush1.bf16.msra.mxu0 %v2029
        %2048 = vmatprep.subr.bf16.mxu0 0
        %2049 = vmatpush1.bf16.msra.mxu0 %v2030
        %2050 = vmatprep.subr.bf16.mxu0 0
        %2051 = vmatpush1.bf16.msra.mxu0 %v2031
        %2052 = vmatprep.subr.bf16.mxu0 0
        %2053 = vmatpush1.bf16.msra.mxu0 %v2032
        %2054 = vmatprep.subr.bf16.mxu0 0
        %2055 = vmatpush1.bf16.msra.mxu0 %v2033
        %2056 = vmatprep.subr.bf16.mxu0 0
        %2057 = vmatpush1.bf16.msra.mxu0 %v2034
        %2058 = vmatprep.subr.bf16.mxu0 0
        %2059 = vmatpush1.bf16.msra.mxu0 %v2035
        %2060 = vmatprep.subr.bf16.mxu0 0
        %2061 = vmatpush1.bf16.msra.mxu0 %v2036
        %2062 = vmatprep.subr.bf16.mxu0 0
        %2063 = vmatpush1.bf16.msra.mxu0 %v2037
        %2064 = vmatprep.subr.bf16.mxu0 0
        %2065 = vmatpush1.bf16.msra.mxu0 %v2038
        %2066 = vmatprep.subr.bf16.mxu0 0
        %2067 = vmatpush1.bf16.msra.mxu0 %v2039
        %2068 = vmatprep.subr.bf16.mxu0 0
        %2069 = vmatpush1.bf16.msra.mxu0 %v2040
        %2070 = vmatprep.subr.bf16.mxu0 0
        %2071 = vmatpush1.bf16.msra.mxu0 %v2041
        %2072 = vmatprep.subr.bf16.mxu0 0
        %2073 = vmatpush1.bf16.msra.mxu0 %v2042
        %2074 = vmatprep.subr.bf16.mxu0 0
        %2075 = vmatpush1.bf16.msra.mxu0 %v2043
        %2076 = vmatprep.mubr.bf16.mxu0 %v1723
        %2077 = vmatmul.mubr.bf16.gmra.mrb[0].mxu0 %v1722
        %v2078 = vpop.f32.mrb[0].mxu0
        %v2079 = vadd.f32 0.0, %v2078
        %v2080 = vpop.f32.mrb[0].mxu0
        %v2081 = vpop.f32.mrb[0].mxu0
        %v2082 = vadd.f32 0.0, %v2081
        %v2083 = vpop.f32.mrb[0].mxu0
        %2084 = vmatprep.mubr.bf16.mxu0 %v1725
        %2085 = vmatmul.mubr.bf16.gmra.mrb[0].mxu0 %v1724
        %v2086 = vpop.f32.mrb[0].mxu0
        %v2087 = vadd.f32 0.0, %v2086
        %v2088 = vpop.f32.mrb[0].mxu0
        %v2089 = vpop.f32.mrb[0].mxu0
        %v2090 = vadd.f32 0.0, %v2089
        %v2091 = vpop.f32.mrb[0].mxu0
        %2092 = vmatprep.mubr.bf16.mxu0 %v1727
        %2093 = vmatmul.mubr.bf16.gmra.mrb[0].mxu0 %v1726
        %v2094 = vpop.f32.mrb[0].mxu0
        %v2095 = vadd.f32 0.0, %v2094
        %v2096 = vpop.f32.mrb[0].mxu0
        %v2097 = vpop.f32.mrb[0].mxu0
        %v2098 = vadd.f32 0.0, %v2097
        %v2099 = vpop.f32.mrb[0].mxu0
        %2100 = vmatprep.mubr.bf16.mxu0 %v1729
        %2101 = vmatmul.mubr.bf16.gmra.mrb[0].mxu0 %v1728
        %v2102 = vpop.f32.mrb[0].mxu0
        %v2103 = vadd.f32 0.0, %v2102
        %v2104 = vpop.f32.mrb[0].mxu0
        %v2105 = vpop.f32.mrb[0].mxu0
        %v2106 = vadd.f32 0.0, %v2105
        %v2107 = vpop.f32.mrb[0].mxu0
        %2108 = vmatprep.mubr.bf16.mxu0 %v1731
        %2109 = vmatmul.mubr.bf16.gmra.mrb[0].mxu0 %v1730
        %v2110 = vpop.f32.mrb[0].mxu0
        %v2111 = vadd.f32 0.0, %v2110
        %v2112 = vpop.f32.mrb[0].mxu0
        %v2113 = vpop.f32.mrb[0].mxu0
        %v2114 = vadd.f32 0.0, %v2113
        %v2115 = vpop.f32.mrb[0].mxu0
        %2116 = vmatprep.mubr.bf16.mxu0 %v1733
        %2117 = vmatmul.mubr.bf16.gmra.mrb[0].mxu0 %v1732
        %v2118 = vpop.f32.mrb[0].mxu0
        %v2119 = vadd.f32 0.0, %v2118
        %v2120 = vpop.f32.mrb[0].mxu0
        %v2121 = vpop.f32.mrb[0].mxu0
        %v2122 = vadd.f32 0.0, %v2121
        %v2123 = vpop.f32.mrb[0].mxu0
        %2124 = vmatprep.mubr.bf16.mxu0 %v1735
        %2125 = vmatmul.mubr.bf16.gmra.mrb[0].mxu0 %v1734
        %v2126 = vpop.f32.mrb[0].mxu0
        %v2127 = vadd.f32 0.0, %v2126
        %v2128 = vpop.f32.mrb[0].mxu0
        %v2129 = vpop.f32.mrb[0].mxu0
        %v2130 = vadd.f32 0.0, %v2129
        %v2131 = vpop.f32.mrb[0].mxu0
        %2132 = vmatprep.mubr.bf16.mxu0 %v1737
        %2133 = vmatmul.mubr.bf16.gmra.mrb[0].mxu0 %v1736
        %v2134 = vpop.f32.mrb[0].mxu0
        %v2135 = vadd.f32 0.0, %v2134
        %v2136 = vpop.f32.mrb[0].mxu0
        %v2137 = vpop.f32.mrb[0].mxu0
        %v2138 = vadd.f32 0.0, %v2137
        %v2139 = vpop.f32.mrb[0].mxu0
        %2140 = vdwg.mxu0
        %v2141 = vadd.f32 %v1297, %v2079
        %v2142 = vadd.f32 %v1298, %v2082
        %v2143 = vadd.f32 %v1299, %v2087
        %v2144 = vadd.f32 %v1300, %v2090
        %v2145 = vadd.f32 %v1301, %v2095
        %v2146 = vadd.f32 %v1302, %v2098
        %v2147 = vadd.f32 %v1303, %v2103
        %v2148 = vadd.f32 %v1304, %v2106
        %v2149 = vadd.f32 %v1305, %v2111
        %v2150 = vadd.f32 %v1306, %v2114
        %v2151 = vadd.f32 %v1307, %v2119
        %v2152 = vadd.f32 %v1308, %v2122
        %v2153 = vadd.f32 %v1309, %v2127
        %v2154 = vadd.f32 %v1310, %v2130
        %v2155 = vadd.f32 %v1311, %v2135
        %v2156 = vadd.f32 %v1312, %v2138
        %vm2157 = vcmp.eq.s32.totalorder %v386, 2
        %vm2158 = vcmp.eq.s32.totalorder %v387, 2
        %vm2159 = vcmp.eq.s32.totalorder %v388, 2
        %vm2160 = vcmp.eq.s32.totalorder %v389, 2
        %vm2161 = vcmp.eq.s32.totalorder %v390, 2
        %vm2162 = vcmp.eq.s32.totalorder %v391, 2
        %vm2163 = vcmp.eq.s32.totalorder %v392, 2
        %vm2164 = vcmp.eq.s32.totalorder %v393, 2
        %vm2165 = vcmp.eq.s32.totalorder %v394, 2
        %vm2166 = vcmp.eq.s32.totalorder %v395, 2
        %vm2167 = vcmp.eq.s32.totalorder %v396, 2
        %vm2168 = vcmp.eq.s32.totalorder %v397, 2
        %vm2169 = vcmp.eq.s32.totalorder %v398, 2
        %vm2170 = vcmp.eq.s32.totalorder %v399, 2
        %vm2171 = vcmp.eq.s32.totalorder %v400, 2
        %vm2172 = vcmp.eq.s32.totalorder %v401, 2
        %v2173 = vsel %vm2157, 1, 0
        %v2174 = vsel %vm2158, 1, 0
        %v2175 = vsel %vm2159, 1, 0
        %v2176 = vsel %vm2160, 1, 0
        %v2177 = vsel %vm2161, 1, 0
        %v2178 = vsel %vm2162, 1, 0
        %v2179 = vsel %vm2163, 1, 0
        %v2180 = vsel %vm2164, 1, 0
        %v2181 = vsel %vm2165, 1, 0
        %v2182 = vsel %vm2166, 1, 0
        %v2183 = vsel %vm2167, 1, 0
        %v2184 = vsel %vm2168, 1, 0
        %v2185 = vsel %vm2169, 1, 0
        %v2186 = vsel %vm2170, 1, 0
        %v2187 = vsel %vm2171, 1, 0
        %v2188 = vsel %vm2172, 1, 0
        %v2189 = vcvt.s32.f32 %v2173
        %v2190 = vcvt.s32.f32 %v2174
        %v2191 = vcvt.s32.f32 %v2175
        %v2192 = vcvt.s32.f32 %v2176
        %v2193 = vcvt.s32.f32 %v2177
        %v2194 = vcvt.s32.f32 %v2178
        %v2195 = vcvt.s32.f32 %v2179
        %v2196 = vcvt.s32.f32 %v2180
        %v2197 = vcvt.s32.f32 %v2181
        %v2198 = vcvt.s32.f32 %v2182
        %v2199 = vcvt.s32.f32 %v2183
        %v2200 = vcvt.s32.f32 %v2184
        %v2201 = vcvt.s32.f32 %v2185
        %v2202 = vcvt.s32.f32 %v2186
        %v2203 = vcvt.s32.f32 %v2187
        %v2204 = vcvt.s32.f32 %v2188
        %2205 = vrot.lane.b32.xlu0 %v370, 126
        %v2206 = vpop.permute.xlu0 %2205
        %2207 = vrot.lane.b32.xlu0 %v371, 126
        %v2208 = vpop.permute.xlu0 %2207
        %2209 = vrot.lane.b32.xlu0 %v372, 126
        %v2210 = vpop.permute.xlu0 %2209
        %2211 = vrot.lane.b32.xlu0 %v373, 126
        %v2212 = vpop.permute.xlu0 %2211
        %2213 = vrot.lane.b32.xlu0 %v374, 126
        %v2214 = vpop.permute.xlu0 %2213
        %2215 = vrot.lane.b32.xlu0 %v375, 126
        %v2216 = vpop.permute.xlu0 %2215
        %2217 = vrot.lane.b32.xlu0 %v376, 126
        %v2218 = vpop.permute.xlu0 %2217
        %2219 = vrot.lane.b32.xlu0 %v377, 126
        %v2220 = vpop.permute.xlu0 %2219
        %2221 = vrot.lane.b32.xlu0 %v378, 126
        %v2222 = vpop.permute.xlu0 %2221
        %2223 = vrot.lane.b32.xlu0 %v379, 126
        %v2224 = vpop.permute.xlu0 %2223
        %2225 = vrot.lane.b32.xlu0 %v380, 126
        %v2226 = vpop.permute.xlu0 %2225
        %2227 = vrot.lane.b32.xlu0 %v381, 126
        %v2228 = vpop.permute.xlu0 %2227
        %2229 = vrot.lane.b32.xlu0 %v382, 126
        %v2230 = vpop.permute.xlu0 %2229
        %2231 = vrot.lane.b32.xlu0 %v383, 126
        %v2232 = vpop.permute.xlu0 %2231
        %2233 = vrot.lane.b32.xlu0 %v384, 126
        %v2234 = vpop.permute.xlu0 %2233
        %2235 = vrot.lane.b32.xlu0 %v385, 126
        %v2236 = vpop.permute.xlu0 %2235
        %v2253 = vsub.f32 %v2189, %v2206
        %v2254 = vsub.f32 %v2190, %v2208
        %v2255 = vsub.f32 %v2191, %v2210
        %v2256 = vsub.f32 %v2192, %v2212
        %v2257 = vsub.f32 %v2193, %v2214
        %v2258 = vsub.f32 %v2194, %v2216
        %v2259 = vsub.f32 %v2195, %v2218
        %v2260 = vsub.f32 %v2196, %v2220
        %v2261 = vsub.f32 %v2197, %v2222
        %v2262 = vsub.f32 %v2198, %v2224
        %v2263 = vsub.f32 %v2199, %v2226
        %v2264 = vsub.f32 %v2200, %v2228
        %v2265 = vsub.f32 %v2201, %v2230
        %v2266 = vsub.f32 %v2202, %v2232
        %v2267 = vsub.f32 %v2203, %v2234
        %v2268 = vsub.f32 %v2204, %v2236
        %v2269 = vand.u32 2147483647, %v2253
        %v2270 = vand.u32 2147483647, %v2254
        %v2271 = vand.u32 2147483647, %v2255
        %v2272 = vand.u32 2147483647, %v2256
        %v2273 = vand.u32 2147483647, %v2257
        %v2274 = vand.u32 2147483647, %v2258
        %v2275 = vand.u32 2147483647, %v2259
        %v2276 = vand.u32 2147483647, %v2260
        %v2277 = vand.u32 2147483647, %v2261
        %v2278 = vand.u32 2147483647, %v2262
        %v2279 = vand.u32 2147483647, %v2263
        %v2280 = vand.u32 2147483647, %v2264
        %v2281 = vand.u32 2147483647, %v2265
        %v2282 = vand.u32 2147483647, %v2266
        %v2283 = vand.u32 2147483647, %v2267
        %v2284 = vand.u32 2147483647, %v2268
        %vm2285 = vcmp.eq.s32.totalorder %v403, 2
        %v2286 = vsel %vm2285, 1, 0
        %v2287 = vcvt.s32.f32 %v2286
        %v2288 = vcombine.high %v623, %v623
        %v2290 = vsub.f32 %v2287, %v2288
        %v2291 = vand.u32 2147483647, %v2290
        %v2293 = vlaneseq
        %v2294 = vshrl.u32 %v2293, 7
        %v2295 = vsub.s32 0, %v2294
        %v2296 = vrot.slane %v2291, %v2295
        %v2297 = vlaneseq
        %v2298 = vshrl.u32 %v2297, 7
        %v2299 = vsub.s32 1, %v2298
        %v2300 = vrot.slane %v2291, %v2299
        %2304 = vset.pattern.permute.xlu0 0
        %2305 = vperm.xlu0 %2304, %v2269
        %v2306 = vpop.permute.xlu0 %2305
        %2309 = vset.pattern.permute.xlu0 0
        %2310 = vperm.xlu0 %2309, %v2270
        %v2311 = vpop.permute.xlu0 %2310
        %2314 = vset.pattern.permute.xlu0 0
        %2315 = vperm.xlu0 %2314, %v2271
        %v2316 = vpop.permute.xlu0 %2315
        %2319 = vset.pattern.permute.xlu0 0
        %2320 = vperm.xlu0 %2319, %v2272
        %v2321 = vpop.permute.xlu0 %2320
        %2324 = vset.pattern.permute.xlu0 0
        %2325 = vperm.xlu0 %2324, %v2273
        %v2326 = vpop.permute.xlu0 %2325
        %2329 = vset.pattern.permute.xlu0 0
        %2330 = vperm.xlu0 %2329, %v2274
        %v2331 = vpop.permute.xlu0 %2330
        %2334 = vset.pattern.permute.xlu0 0
        %2335 = vperm.xlu0 %2334, %v2275
        %v2336 = vpop.permute.xlu0 %2335
        %2339 = vset.pattern.permute.xlu0 0
        %2340 = vperm.xlu0 %2339, %v2276
        %v2341 = vpop.permute.xlu0 %2340
        %2344 = vset.pattern.permute.xlu0 0
        %2345 = vperm.xlu0 %2344, %v2277
        %v2346 = vpop.permute.xlu0 %2345
        %2349 = vset.pattern.permute.xlu0 0
        %2350 = vperm.xlu0 %2349, %v2278
        %v2351 = vpop.permute.xlu0 %2350
        %2354 = vset.pattern.permute.xlu0 0
        %2355 = vperm.xlu0 %2354, %v2279
        %v2356 = vpop.permute.xlu0 %2355
        %2359 = vset.pattern.permute.xlu0 0
        %2360 = vperm.xlu0 %2359, %v2280
        %v2361 = vpop.permute.xlu0 %2360
        %2364 = vset.pattern.permute.xlu0 0
        %2365 = vperm.xlu0 %2364, %v2281
        %v2366 = vpop.permute.xlu0 %2365
        %2369 = vset.pattern.permute.xlu0 0
        %2370 = vperm.xlu0 %2369, %v2282
        %v2371 = vpop.permute.xlu0 %2370
        %2374 = vset.pattern.permute.xlu0 0
        %2375 = vperm.xlu0 %2374, %v2283
        %v2376 = vpop.permute.xlu0 %2375
        %2379 = vset.pattern.permute.xlu0 0
        %2380 = vperm.xlu0 %2379, %v2284
        %v2381 = vpop.permute.xlu0 %2380
        %vm2383 = vcmp.gt.f32.partialorder %v2296, %v2306
        %vm2384 = vcmp.gt.f32.partialorder %v2300, %v2306
        %vm2385 = vcmp.gt.f32.partialorder %v2296, %v2311
        %vm2386 = vcmp.gt.f32.partialorder %v2300, %v2311
        %vm2387 = vcmp.gt.f32.partialorder %v2296, %v2316
        %vm2388 = vcmp.gt.f32.partialorder %v2300, %v2316
        %vm2389 = vcmp.gt.f32.partialorder %v2296, %v2321
        %vm2390 = vcmp.gt.f32.partialorder %v2300, %v2321
        %vm2391 = vcmp.gt.f32.partialorder %v2296, %v2326
        %vm2392 = vcmp.gt.f32.partialorder %v2300, %v2326
        %vm2393 = vcmp.gt.f32.partialorder %v2296, %v2331
        %vm2394 = vcmp.gt.f32.partialorder %v2300, %v2331
        %vm2395 = vcmp.gt.f32.partialorder %v2296, %v2336
        %vm2396 = vcmp.gt.f32.partialorder %v2300, %v2336
        %vm2397 = vcmp.gt.f32.partialorder %v2296, %v2341
        %vm2398 = vcmp.gt.f32.partialorder %v2300, %v2341
        %vm2399 = vcmp.gt.f32.partialorder %v2296, %v2346
        %vm2400 = vcmp.gt.f32.partialorder %v2300, %v2346
        %vm2401 = vcmp.gt.f32.partialorder %v2296, %v2351
        %vm2402 = vcmp.gt.f32.partialorder %v2300, %v2351
        %vm2403 = vcmp.gt.f32.partialorder %v2296, %v2356
        %vm2404 = vcmp.gt.f32.partialorder %v2300, %v2356
        %vm2405 = vcmp.gt.f32.partialorder %v2296, %v2361
        %vm2406 = vcmp.gt.f32.partialorder %v2300, %v2361
        %vm2407 = vcmp.gt.f32.partialorder %v2296, %v2366
        %vm2408 = vcmp.gt.f32.partialorder %v2300, %v2366
        %vm2409 = vcmp.gt.f32.partialorder %v2296, %v2371
        %vm2410 = vcmp.gt.f32.partialorder %v2300, %v2371
        %vm2411 = vcmp.gt.f32.partialorder %v2296, %v2376
        %vm2412 = vcmp.gt.f32.partialorder %v2300, %v2376
        %vm2413 = vcmp.gt.f32.partialorder %v2296, %v2381
        %vm2414 = vcmp.gt.f32.partialorder %v2300, %v2381
        %vm2415 = vcmp.eq.f32.partialorder %v2296, %v2306
        %vm2416 = vcmp.eq.f32.partialorder %v2300, %v2306
        %vm2417 = vcmp.eq.f32.partialorder %v2296, %v2311
        %vm2418 = vcmp.eq.f32.partialorder %v2300, %v2311
        %vm2419 = vcmp.eq.f32.partialorder %v2296, %v2316
        %vm2420 = vcmp.eq.f32.partialorder %v2300, %v2316
        %vm2421 = vcmp.eq.f32.partialorder %v2296, %v2321
        %vm2422 = vcmp.eq.f32.partialorder %v2300, %v2321
        %vm2423 = vcmp.eq.f32.partialorder %v2296, %v2326
        %vm2424 = vcmp.eq.f32.partialorder %v2300, %v2326
        %vm2425 = vcmp.eq.f32.partialorder %v2296, %v2331
        %vm2426 = vcmp.eq.f32.partialorder %v2300, %v2331
        %vm2427 = vcmp.eq.f32.partialorder %v2296, %v2336
        %vm2428 = vcmp.eq.f32.partialorder %v2300, %v2336
        %vm2429 = vcmp.eq.f32.partialorder %v2296, %v2341
        %vm2430 = vcmp.eq.f32.partialorder %v2300, %v2341
        %vm2431 = vcmp.eq.f32.partialorder %v2296, %v2346
        %vm2432 = vcmp.eq.f32.partialorder %v2300, %v2346
        %vm2433 = vcmp.eq.f32.partialorder %v2296, %v2351
        %vm2434 = vcmp.eq.f32.partialorder %v2300, %v2351
        %vm2435 = vcmp.eq.f32.partialorder %v2296, %v2356
        %vm2436 = vcmp.eq.f32.partialorder %v2300, %v2356
        %vm2437 = vcmp.eq.f32.partialorder %v2296, %v2361
        %vm2438 = vcmp.eq.f32.partialorder %v2300, %v2361
        %vm2439 = vcmp.eq.f32.partialorder %v2296, %v2366
        %vm2440 = vcmp.eq.f32.partialorder %v2300, %v2366
        %vm2441 = vcmp.eq.f32.partialorder %v2296, %v2371
        %vm2442 = vcmp.eq.f32.partialorder %v2300, %v2371
        %vm2443 = vcmp.eq.f32.partialorder %v2296, %v2376
        %vm2444 = vcmp.eq.f32.partialorder %v2300, %v2376
        %vm2445 = vcmp.eq.f32.partialorder %v2296, %v2381
        %vm2446 = vcmp.eq.f32.partialorder %v2300, %v2381
        %vm2447 = vmand %vm2415, %vm478
        %vm2448 = vmand %vm2416, %vm479
        %vm2449 = vmand %vm2417, %vm480
        %vm2450 = vmand %vm2418, %vm481
        %vm2451 = vmand %vm2419, %vm482
        %vm2452 = vmand %vm2420, %vm483
        %vm2453 = vmand %vm2421, %vm484
        %vm2454 = vmand %vm2422, %vm485
        %vm2455 = vmand %vm2423, %vm486
        %vm2456 = vmand %vm2424, %vm487
        %vm2457 = vmand %vm2425, %vm488
        %vm2458 = vmand %vm2426, %vm489
        %vm2459 = vmand %vm2427, %vm490
        %vm2460 = vmand %vm2428, %vm491
        %vm2461 = vmand %vm2429, %vm492
        %vm2462 = vmand %vm2430, %vm493
        %vm2463 = vmand %vm2431, %vm494
        %vm2464 = vmand %vm2432, %vm495
        %vm2465 = vmand %vm2433, %vm496
        %vm2466 = vmand %vm2434, %vm497
        %vm2467 = vmand %vm2435, %vm498
        %vm2468 = vmand %vm2436, %vm499
        %vm2469 = vmand %vm2437, %vm500
        %vm2470 = vmand %vm2438, %vm501
        %vm2471 = vmand %vm2439, %vm502
        %vm2472 = vmand %vm2440, %vm503
        %vm2473 = vmand %vm2441, %vm504
        %vm2474 = vmand %vm2442, %vm505
        %vm2475 = vmand %vm2443, %vm506
        %vm2476 = vmand %vm2444, %vm507
        %vm2477 = vmand %vm2445, %vm508
        %vm2478 = vmand %vm2446, %vm509
        %vm2479 = vmor %vm2383, %vm2447
        %vm2480 = vmor %vm2384, %vm2448
        %vm2481 = vmor %vm2385, %vm2449
        %vm2482 = vmor %vm2386, %vm2450
        %vm2483 = vmor %vm2387, %vm2451
        %vm2484 = vmor %vm2388, %vm2452
        %vm2485 = vmor %vm2389, %vm2453
        %vm2486 = vmor %vm2390, %vm2454
        %vm2487 = vmor %vm2391, %vm2455
        %vm2488 = vmor %vm2392, %vm2456
        %vm2489 = vmor %vm2393, %vm2457
        %vm2490 = vmor %vm2394, %vm2458
        %vm2491 = vmor %vm2395, %vm2459
        %vm2492 = vmor %vm2396, %vm2460
        %vm2493 = vmor %vm2397, %vm2461
        %vm2494 = vmor %vm2398, %vm2462
        %vm2495 = vmor %vm2399, %vm2463
        %vm2496 = vmor %vm2400, %vm2464
        %vm2497 = vmor %vm2401, %vm2465
        %vm2498 = vmor %vm2402, %vm2466
        %vm2499 = vmor %vm2403, %vm2467
        %vm2500 = vmor %vm2404, %vm2468
        %vm2501 = vmor %vm2405, %vm2469
        %vm2502 = vmor %vm2406, %vm2470
        %vm2503 = vmor %vm2407, %vm2471
        %vm2504 = vmor %vm2408, %vm2472
        %vm2505 = vmor %vm2409, %vm2473
        %vm2506 = vmor %vm2410, %vm2474
        %vm2507 = vmor %vm2411, %vm2475
        %vm2508 = vmor %vm2412, %vm2476
        %vm2509 = vmor %vm2413, %vm2477
        %vm2510 = vmor %vm2414, %vm2478
        %v2511 = vsel %vm2479, 1.0, 0.0
        %v2512 = vsel %vm2480, 1.0, 0.0
        %v2513 = vsel %vm2481, 1.0, 0.0
        %v2514 = vsel %vm2482, 1.0, 0.0
        %v2515 = vsel %vm2483, 1.0, 0.0
        %v2516 = vsel %vm2484, 1.0, 0.0
        %v2517 = vsel %vm2485, 1.0, 0.0
        %v2518 = vsel %vm2486, 1.0, 0.0
        %v2519 = vsel %vm2487, 1.0, 0.0
        %v2520 = vsel %vm2488, 1.0, 0.0
        %v2521 = vsel %vm2489, 1.0, 0.0
        %v2522 = vsel %vm2490, 1.0, 0.0
        %v2523 = vsel %vm2491, 1.0, 0.0
        %v2524 = vsel %vm2492, 1.0, 0.0
        %v2525 = vsel %vm2493, 1.0, 0.0
        %v2526 = vsel %vm2494, 1.0, 0.0
        %v2527 = vsel %vm2495, 1.0, 0.0
        %v2528 = vsel %vm2496, 1.0, 0.0
        %v2529 = vsel %vm2497, 1.0, 0.0
        %v2530 = vsel %vm2498, 1.0, 0.0
        %v2531 = vsel %vm2499, 1.0, 0.0
        %v2532 = vsel %vm2500, 1.0, 0.0
        %v2533 = vsel %vm2501, 1.0, 0.0
        %v2534 = vsel %vm2502, 1.0, 0.0
        %v2535 = vsel %vm2503, 1.0, 0.0
        %v2536 = vsel %vm2504, 1.0, 0.0
        %v2537 = vsel %vm2505, 1.0, 0.0
        %v2538 = vsel %vm2506, 1.0, 0.0
        %v2539 = vsel %vm2507, 1.0, 0.0
        %v2540 = vsel %vm2508, 1.0, 0.0
        %v2541 = vsel %vm2509, 1.0, 0.0
        %v2542 = vsel %vm2510, 1.0, 0.0
        %v2543 = vpack.c.bf16 %v2513, %v2511
        %v2544 = vpack.c.bf16 %v2514, %v2512
        %v2545 = vpack.c.bf16 %v2517, %v2515
        %v2546 = vpack.c.bf16 %v2518, %v2516
        %v2547 = vpack.c.bf16 %v2521, %v2519
        %v2548 = vpack.c.bf16 %v2522, %v2520
        %v2549 = vpack.c.bf16 %v2525, %v2523
        %v2550 = vpack.c.bf16 %v2526, %v2524
        %v2551 = vpack.c.bf16 %v2529, %v2527
        %v2552 = vpack.c.bf16 %v2530, %v2528
        %v2553 = vpack.c.bf16 %v2533, %v2531
        %v2554 = vpack.c.bf16 %v2534, %v2532
        %v2555 = vpack.c.bf16 %v2537, %v2535
        %v2556 = vpack.c.bf16 %v2538, %v2536
        %v2557 = vpack.c.bf16 %v2541, %v2539
        %v2558 = vpack.c.bf16 %v2542, %v2540
        %vm2559 = vcmp.eq.s32.totalorder %v473, 2
        %vm2560 = vcmp.eq.s32.totalorder %v404, 2
        %vm2561 = vcmp.eq.s32.totalorder %v405, 2
        %vm2562 = vcmp.eq.s32.totalorder %v406, 2
        %vm2563 = vcmp.eq.s32.totalorder %v407, 2
        %vm2564 = vcmp.eq.s32.totalorder %v408, 2
        %vm2565 = vcmp.eq.s32.totalorder %v409, 2
        %vm2566 = vcmp.eq.s32.totalorder %v410, 2
        %vm2567 = vcmp.eq.s32.totalorder %v411, 2
        %vm2568 = vcmp.eq.s32.totalorder %v412, 2
        %vm2569 = vcmp.eq.s32.totalorder %v413, 2
        %vm2570 = vcmp.eq.s32.totalorder %v414, 2
        %vm2571 = vcmp.eq.s32.totalorder %v415, 2
        %vm2572 = vcmp.eq.s32.totalorder %v416, 2
        %vm2573 = vcmp.eq.s32.totalorder %v417, 2
        %vm2574 = vcmp.eq.s32.totalorder %v418, 2
        %vm2575 = vcmp.eq.s32.totalorder %v419, 2
        %vm2576 = vcmp.eq.s32.totalorder %v420, 2
        %vm2577 = vcmp.eq.s32.totalorder %v421, 2
        %vm2578 = vcmp.eq.s32.totalorder %v422, 2
        %vm2579 = vcmp.eq.s32.totalorder %v423, 2
        %vm2580 = vcmp.eq.s32.totalorder %v424, 2
        %vm2581 = vcmp.eq.s32.totalorder %v425, 2
        %vm2582 = vcmp.eq.s32.totalorder %v426, 2
        %vm2583 = vcmp.eq.s32.totalorder %v427, 2
        %vm2584 = vcmp.eq.s32.totalorder %v428, 2
        %vm2585 = vcmp.eq.s32.totalorder %v429, 2
        %vm2586 = vcmp.eq.s32.totalorder %v430, 2
        %vm2587 = vcmp.eq.s32.totalorder %v431, 2
        %vm2588 = vcmp.eq.s32.totalorder %v432, 2
        %vm2589 = vcmp.eq.s32.totalorder %v433, 2
        %vm2590 = vcmp.eq.s32.totalorder %v434, 2
        %vm2591 = vcmp.eq.s32.totalorder %v435, 2
        %v2592 = vsel %vm2560, 1, 0
        %v2593 = vsel %vm2561, 1, 0
        %v2594 = vsel %vm2562, 1, 0
        %v2595 = vsel %vm2563, 1, 0
        %v2596 = vsel %vm2564, 1, 0
        %v2597 = vsel %vm2565, 1, 0
        %v2598 = vsel %vm2566, 1, 0
        %v2599 = vsel %vm2567, 1, 0
        %v2600 = vsel %vm2568, 1, 0
        %v2601 = vsel %vm2569, 1, 0
        %v2602 = vsel %vm2570, 1, 0
        %v2603 = vsel %vm2571, 1, 0
        %v2604 = vsel %vm2572, 1, 0
        %v2605 = vsel %vm2573, 1, 0
        %v2606 = vsel %vm2574, 1, 0
        %v2607 = vsel %vm2575, 1, 0
        %v2608 = vsel %vm2576, 1, 0
        %v2609 = vsel %vm2577, 1, 0
        %v2610 = vsel %vm2578, 1, 0
        %v2611 = vsel %vm2579, 1, 0
        %v2612 = vsel %vm2580, 1, 0
        %v2613 = vsel %vm2581, 1, 0
        %v2614 = vsel %vm2582, 1, 0
        %v2615 = vsel %vm2583, 1, 0
        %v2616 = vsel %vm2584, 1, 0
        %v2617 = vsel %vm2585, 1, 0
        %v2618 = vsel %vm2586, 1, 0
        %v2619 = vsel %vm2587, 1, 0
        %v2620 = vsel %vm2588, 1, 0
        %v2621 = vsel %vm2589, 1, 0
        %v2622 = vsel %vm2590, 1, 0
        %v2623 = vsel %vm2591, 1, 0
        %2624 = vset.pattern.permute.xlu0 0
        %2625 = vperm.xlu0 %2624, %v2592
        %v2626 = vpop.permute.xlu0 %2625
        %2627 = vset.pattern.permute.xlu0 0
        %2628 = vperm.xlu0 %2627, %v2593
        %v2629 = vpop.permute.xlu0 %2628
        %2630 = vset.pattern.permute.xlu0 0
        %2631 = vperm.xlu0 %2630, %v2594
        %v2632 = vpop.permute.xlu0 %2631
        %2633 = vset.pattern.permute.xlu0 0
        %2634 = vperm.xlu0 %2633, %v2595
        %v2635 = vpop.permute.xlu0 %2634
        %2636 = vset.pattern.permute.xlu0 0
        %2637 = vperm.xlu0 %2636, %v2596
        %v2638 = vpop.permute.xlu0 %2637
        %2639 = vset.pattern.permute.xlu0 0
        %2640 = vperm.xlu0 %2639, %v2597
        %v2641 = vpop.permute.xlu0 %2640
        %2642 = vset.pattern.permute.xlu0 0
        %2643 = vperm.xlu0 %2642, %v2598
        %v2644 = vpop.permute.xlu0 %2643
        %2645 = vset.pattern.permute.xlu0 0
        %2646 = vperm.xlu0 %2645, %v2599
        %v2647 = vpop.permute.xlu0 %2646
        %2648 = vset.pattern.permute.xlu0 0
        %2649 = vperm.xlu0 %2648, %v2600
        %v2650 = vpop.permute.xlu0 %2649
        %2651 = vset.pattern.permute.xlu0 0
        %2652 = vperm.xlu0 %2651, %v2601
        %v2653 = vpop.permute.xlu0 %2652
        %2654 = vset.pattern.permute.xlu0 0
        %2655 = vperm.xlu0 %2654, %v2602
        %v2656 = vpop.permute.xlu0 %2655
        %2657 = vset.pattern.permute.xlu0 0
        %2658 = vperm.xlu0 %2657, %v2603
        %v2659 = vpop.permute.xlu0 %2658
        %2660 = vset.pattern.permute.xlu0 0
        %2661 = vperm.xlu0 %2660, %v2604
        %v2662 = vpop.permute.xlu0 %2661
        %2663 = vset.pattern.permute.xlu0 0
        %2664 = vperm.xlu0 %2663, %v2605
        %v2665 = vpop.permute.xlu0 %2664
        %2666 = vset.pattern.permute.xlu0 0
        %2667 = vperm.xlu0 %2666, %v2606
        %v2668 = vpop.permute.xlu0 %2667
        %2669 = vset.pattern.permute.xlu0 0
        %2670 = vperm.xlu0 %2669, %v2607
        %v2671 = vpop.permute.xlu0 %2670
        %2672 = vset.pattern.permute.xlu0 0
        %2673 = vperm.xlu0 %2672, %v2608
        %v2674 = vpop.permute.xlu0 %2673
        %2675 = vset.pattern.permute.xlu0 0
        %2676 = vperm.xlu0 %2675, %v2609
        %v2677 = vpop.permute.xlu0 %2676
        %2678 = vset.pattern.permute.xlu0 0
        %2679 = vperm.xlu0 %2678, %v2610
        %v2680 = vpop.permute.xlu0 %2679
        %2681 = vset.pattern.permute.xlu0 0
        %2682 = vperm.xlu0 %2681, %v2611
        %v2683 = vpop.permute.xlu0 %2682
        %2684 = vset.pattern.permute.xlu0 0
        %2685 = vperm.xlu0 %2684, %v2612
        %v2686 = vpop.permute.xlu0 %2685
        %2687 = vset.pattern.permute.xlu0 0
        %2688 = vperm.xlu0 %2687, %v2613
        %v2689 = vpop.permute.xlu0 %2688
        %2690 = vset.pattern.permute.xlu0 0
        %2691 = vperm.xlu0 %2690, %v2614
        %v2692 = vpop.permute.xlu0 %2691
        %2693 = vset.pattern.permute.xlu0 0
        %2694 = vperm.xlu0 %2693, %v2615
        %v2695 = vpop.permute.xlu0 %2694
        %2696 = vset.pattern.permute.xlu0 0
        %2697 = vperm.xlu0 %2696, %v2616
        %v2698 = vpop.permute.xlu0 %2697
        %2699 = vset.pattern.permute.xlu0 0
        %2700 = vperm.xlu0 %2699, %v2617
        %v2701 = vpop.permute.xlu0 %2700
        %2702 = vset.pattern.permute.xlu0 0
        %2703 = vperm.xlu0 %2702, %v2618
        %v2704 = vpop.permute.xlu0 %2703
        %2705 = vset.pattern.permute.xlu0 0
        %2706 = vperm.xlu0 %2705, %v2619
        %v2707 = vpop.permute.xlu0 %2706
        %2708 = vset.pattern.permute.xlu0 0
        %2709 = vperm.xlu0 %2708, %v2620
        %v2710 = vpop.permute.xlu0 %2709
        %2711 = vset.pattern.permute.xlu0 0
        %2712 = vperm.xlu0 %2711, %v2621
        %v2713 = vpop.permute.xlu0 %2712
        %2714 = vset.pattern.permute.xlu0 0
        %2715 = vperm.xlu0 %2714, %v2622
        %v2716 = vpop.permute.xlu0 %2715
        %2717 = vset.pattern.permute.xlu0 0
        %2718 = vperm.xlu0 %2717, %v2623
        %v2719 = vpop.permute.xlu0 %2718
        %vm2720 = vcmp.eq.s32.totalorder %v2626, 1
        %vm2721 = vcmp.eq.s32.totalorder %v2629, 1
        %vm2722 = vcmp.eq.s32.totalorder %v2632, 1
        %vm2723 = vcmp.eq.s32.totalorder %v2635, 1
        %vm2724 = vcmp.eq.s32.totalorder %v2638, 1
        %vm2725 = vcmp.eq.s32.totalorder %v2641, 1
        %vm2726 = vcmp.eq.s32.totalorder %v2644, 1
        %vm2727 = vcmp.eq.s32.totalorder %v2647, 1
        %vm2728 = vcmp.eq.s32.totalorder %v2650, 1
        %vm2729 = vcmp.eq.s32.totalorder %v2653, 1
        %vm2730 = vcmp.eq.s32.totalorder %v2656, 1
        %vm2731 = vcmp.eq.s32.totalorder %v2659, 1
        %vm2732 = vcmp.eq.s32.totalorder %v2662, 1
        %vm2733 = vcmp.eq.s32.totalorder %v2665, 1
        %vm2734 = vcmp.eq.s32.totalorder %v2668, 1
        %vm2735 = vcmp.eq.s32.totalorder %v2671, 1
        %vm2736 = vcmp.eq.s32.totalorder %v2674, 1
        %vm2737 = vcmp.eq.s32.totalorder %v2677, 1
        %vm2738 = vcmp.eq.s32.totalorder %v2680, 1
        %vm2739 = vcmp.eq.s32.totalorder %v2683, 1
        %vm2740 = vcmp.eq.s32.totalorder %v2686, 1
        %vm2741 = vcmp.eq.s32.totalorder %v2689, 1
        %vm2742 = vcmp.eq.s32.totalorder %v2692, 1
        %vm2743 = vcmp.eq.s32.totalorder %v2695, 1
        %vm2744 = vcmp.eq.s32.totalorder %v2698, 1
        %vm2745 = vcmp.eq.s32.totalorder %v2701, 1
        %vm2746 = vcmp.eq.s32.totalorder %v2704, 1
        %vm2747 = vcmp.eq.s32.totalorder %v2707, 1
        %vm2748 = vcmp.eq.s32.totalorder %v2710, 1
        %vm2749 = vcmp.eq.s32.totalorder %v2713, 1
        %vm2750 = vcmp.eq.s32.totalorder %v2716, 1
        %vm2751 = vcmp.eq.s32.totalorder %v2719, 1
        %vm2752 = vmand %vm2559, %vm2720
        %vm2753 = vmand %vm2559, %vm2721
        %vm2754 = vmand %vm2559, %vm2722
        %vm2755 = vmand %vm2559, %vm2723
        %vm2756 = vmand %vm2559, %vm2724
        %vm2757 = vmand %vm2559, %vm2725
        %vm2758 = vmand %vm2559, %vm2726
        %vm2759 = vmand %vm2559, %vm2727
        %vm2760 = vmand %vm2559, %vm2728
        %vm2761 = vmand %vm2559, %vm2729
        %vm2762 = vmand %vm2559, %vm2730
        %vm2763 = vmand %vm2559, %vm2731
        %vm2764 = vmand %vm2559, %vm2732
        %vm2765 = vmand %vm2559, %vm2733
        %vm2766 = vmand %vm2559, %vm2734
        %vm2767 = vmand %vm2559, %vm2735
        %vm2768 = vmand %vm2559, %vm2736
        %vm2769 = vmand %vm2559, %vm2737
        %vm2770 = vmand %vm2559, %vm2738
        %vm2771 = vmand %vm2559, %vm2739
        %vm2772 = vmand %vm2559, %vm2740
        %vm2773 = vmand %vm2559, %vm2741
        %vm2774 = vmand %vm2559, %vm2742
        %vm2775 = vmand %vm2559, %vm2743
        %vm2776 = vmand %vm2559, %vm2744
        %vm2777 = vmand %vm2559, %vm2745
        %vm2778 = vmand %vm2559, %vm2746
        %vm2779 = vmand %vm2559, %vm2747
        %vm2780 = vmand %vm2559, %vm2748
        %vm2781 = vmand %vm2559, %vm2749
        %vm2782 = vmand %vm2559, %vm2750
        %vm2783 = vmand %vm2559, %vm2751
        %vm2784 = vcmp.eq.s32.totalorder %v473, 66
        %vm2785 = vmor %vm2752, %vm2784
        %vm2786 = vmor %vm2753, %vm2784
        %vm2787 = vmor %vm2754, %vm2784
        %vm2788 = vmor %vm2755, %vm2784
        %vm2789 = vmor %vm2756, %vm2784
        %vm2790 = vmor %vm2757, %vm2784
        %vm2791 = vmor %vm2758, %vm2784
        %vm2792 = vmor %vm2759, %vm2784
        %vm2793 = vmor %vm2760, %vm2784
        %vm2794 = vmor %vm2761, %vm2784
        %vm2795 = vmor %vm2762, %vm2784
        %vm2796 = vmor %vm2763, %vm2784
        %vm2797 = vmor %vm2764, %vm2784
        %vm2798 = vmor %vm2765, %vm2784
        %vm2799 = vmor %vm2766, %vm2784
        %vm2800 = vmor %vm2767, %vm2784
        %vm2801 = vmor %vm2768, %vm2784
        %vm2802 = vmor %vm2769, %vm2784
        %vm2803 = vmor %vm2770, %vm2784
        %vm2804 = vmor %vm2771, %vm2784
        %vm2805 = vmor %vm2772, %vm2784
        %vm2806 = vmor %vm2773, %vm2784
        %vm2807 = vmor %vm2774, %vm2784
        %vm2808 = vmor %vm2775, %vm2784
        %vm2809 = vmor %vm2776, %vm2784
        %vm2810 = vmor %vm2777, %vm2784
        %vm2811 = vmor %vm2778, %vm2784
        %vm2812 = vmor %vm2779, %vm2784
        %vm2813 = vmor %vm2780, %vm2784
        %vm2814 = vmor %vm2781, %vm2784
        %vm2815 = vmor %vm2782, %vm2784
        %vm2816 = vmor %vm2783, %vm2784
        %v2817 = vsel %vm2785, 1.0, 0.0
        %v2818 = vsel %vm2786, 1.0, 0.0
        %v2819 = vsel %vm2787, 1.0, 0.0
        %v2820 = vsel %vm2788, 1.0, 0.0
        %v2821 = vsel %vm2789, 1.0, 0.0
        %v2822 = vsel %vm2790, 1.0, 0.0
        %v2823 = vsel %vm2791, 1.0, 0.0
        %v2824 = vsel %vm2792, 1.0, 0.0
        %v2825 = vsel %vm2793, 1.0, 0.0
        %v2826 = vsel %vm2794, 1.0, 0.0
        %v2827 = vsel %vm2795, 1.0, 0.0
        %v2828 = vsel %vm2796, 1.0, 0.0
        %v2829 = vsel %vm2797, 1.0, 0.0
        %v2830 = vsel %vm2798, 1.0, 0.0
        %v2831 = vsel %vm2799, 1.0, 0.0
        %v2832 = vsel %vm2800, 1.0, 0.0
        %v2833 = vsel %vm2801, 1.0, 0.0
        %v2834 = vsel %vm2802, 1.0, 0.0
        %v2835 = vsel %vm2803, 1.0, 0.0
        %v2836 = vsel %vm2804, 1.0, 0.0
        %v2837 = vsel %vm2805, 1.0, 0.0
        %v2838 = vsel %vm2806, 1.0, 0.0
        %v2839 = vsel %vm2807, 1.0, 0.0
        %v2840 = vsel %vm2808, 1.0, 0.0
        %v2841 = vsel %vm2809, 1.0, 0.0
        %v2842 = vsel %vm2810, 1.0, 0.0
        %v2843 = vsel %vm2811, 1.0, 0.0
        %v2844 = vsel %vm2812, 1.0, 0.0
        %v2845 = vsel %vm2813, 1.0, 0.0
        %v2846 = vsel %vm2814, 1.0, 0.0
        %v2847 = vsel %vm2815, 1.0, 0.0
        %v2848 = vsel %vm2816, 1.0, 0.0
        %v2849 = vpack.c.bf16 %v2818, %v2817
        %v2850 = vpack.c.bf16 %v2820, %v2819
        %v2851 = vpack.c.bf16 %v2822, %v2821
        %v2852 = vpack.c.bf16 %v2824, %v2823
        %v2853 = vpack.c.bf16 %v2826, %v2825
        %v2854 = vpack.c.bf16 %v2828, %v2827
        %v2855 = vpack.c.bf16 %v2830, %v2829
        %v2856 = vpack.c.bf16 %v2832, %v2831
        %v2857 = vpack.c.bf16 %v2834, %v2833
        %v2858 = vpack.c.bf16 %v2836, %v2835
        %v2859 = vpack.c.bf16 %v2838, %v2837
        %v2860 = vpack.c.bf16 %v2840, %v2839
        %v2861 = vpack.c.bf16 %v2842, %v2841
        %v2862 = vpack.c.bf16 %v2844, %v2843
        %v2863 = vpack.c.bf16 %v2846, %v2845
        %v2864 = vpack.c.bf16 %v2848, %v2847
        %2865 = vmatprep.subr.bf16.mxu0 0
        %2866 = vmatpush1.bf16.msra.mxu0 %v2849
        %2867 = vmatprep.subr.bf16.mxu0 0
        %2868 = vmatpush1.bf16.msra.mxu0 %v2850
        %2869 = vmatprep.subr.bf16.mxu0 0
        %2870 = vmatpush1.bf16.msra.mxu0 %v2851
        %2871 = vmatprep.subr.bf16.mxu0 0
        %2872 = vmatpush1.bf16.msra.mxu0 %v2852
        %2873 = vmatprep.subr.bf16.mxu0 0
        %2874 = vmatpush1.bf16.msra.mxu0 %v2853
        %2875 = vmatprep.subr.bf16.mxu0 0
        %2876 = vmatpush1.bf16.msra.mxu0 %v2854
        %2877 = vmatprep.subr.bf16.mxu0 0
        %2878 = vmatpush1.bf16.msra.mxu0 %v2855
        %2879 = vmatprep.subr.bf16.mxu0 0
        %2880 = vmatpush1.bf16.msra.mxu0 %v2856
        %2881 = vmatprep.subr.bf16.mxu0 0
        %2882 = vmatpush1.bf16.msra.mxu0 %v2857
        %2883 = vmatprep.subr.bf16.mxu0 0
        %2884 = vmatpush1.bf16.msra.mxu0 %v2858
        %2885 = vmatprep.subr.bf16.mxu0 0
        %2886 = vmatpush1.bf16.msra.mxu0 %v2859
        %2887 = vmatprep.subr.bf16.mxu0 0
        %2888 = vmatpush1.bf16.msra.mxu0 %v2860
        %2889 = vmatprep.subr.bf16.mxu0 0
        %2890 = vmatpush1.bf16.msra.mxu0 %v2861
        %2891 = vmatprep.subr.bf16.mxu0 0
        %2892 = vmatpush1.bf16.msra.mxu0 %v2862
        %2893 = vmatprep.subr.bf16.mxu0 0
        %2894 = vmatpush1.bf16.msra.mxu0 %v2863
        %2895 = vmatprep.subr.bf16.mxu0 0
        %2896 = vmatpush1.bf16.msra.mxu0 %v2864
        %2897 = vmatprep.mubr.bf16.mxu0 %v2544
        %2898 = vmatmul.mubr.bf16.gmra.mrb[0].mxu0 %v2543
        %v2899 = vpop.f32.mrb[0].mxu0
        %v2900 = vadd.f32 0.0, %v2899
        %v2901 = vpop.f32.mrb[0].mxu0
        %v2902 = vpop.f32.mrb[0].mxu0
        %v2903 = vadd.f32 0.0, %v2902
        %v2904 = vpop.f32.mrb[0].mxu0
        %2905 = vmatprep.mubr.bf16.mxu0 %v2546
        %2906 = vmatmul.mubr.bf16.gmra.mrb[0].mxu0 %v2545
        %v2907 = vpop.f32.mrb[0].mxu0
        %v2908 = vadd.f32 0.0, %v2907
        %v2909 = vpop.f32.mrb[0].mxu0
        %v2910 = vpop.f32.mrb[0].mxu0
        %v2911 = vadd.f32 0.0, %v2910
        %v2912 = vpop.f32.mrb[0].mxu0
        %2913 = vmatprep.mubr.bf16.mxu0 %v2548
        %2914 = vmatmul.mubr.bf16.gmra.mrb[0].mxu0 %v2547
        %v2915 = vpop.f32.mrb[0].mxu0
        %v2916 = vadd.f32 0.0, %v2915
        %v2917 = vpop.f32.mrb[0].mxu0
        %v2918 = vpop.f32.mrb[0].mxu0
        %v2919 = vadd.f32 0.0, %v2918
        %v2920 = vpop.f32.mrb[0].mxu0
        %2921 = vmatprep.mubr.bf16.mxu0 %v2550
        %2922 = vmatmul.mubr.bf16.gmra.mrb[0].mxu0 %v2549
        %v2923 = vpop.f32.mrb[0].mxu0
        %v2924 = vadd.f32 0.0, %v2923
        %v2925 = vpop.f32.mrb[0].mxu0
        %v2926 = vpop.f32.mrb[0].mxu0
        %v2927 = vadd.f32 0.0, %v2926
        %v2928 = vpop.f32.mrb[0].mxu0
        %2929 = vmatprep.mubr.bf16.mxu0 %v2552
        %2930 = vmatmul.mubr.bf16.gmra.mrb[0].mxu0 %v2551
        %v2931 = vpop.f32.mrb[0].mxu0
        %v2932 = vadd.f32 0.0, %v2931
        %v2933 = vpop.f32.mrb[0].mxu0
        %v2934 = vpop.f32.mrb[0].mxu0
        %v2935 = vadd.f32 0.0, %v2934
        %v2936 = vpop.f32.mrb[0].mxu0
        %2937 = vmatprep.mubr.bf16.mxu0 %v2554
        %2938 = vmatmul.mubr.bf16.gmra.mrb[0].mxu0 %v2553
        %v2939 = vpop.f32.mrb[0].mxu0
        %v2940 = vadd.f32 0.0, %v2939
        %v2941 = vpop.f32.mrb[0].mxu0
        %v2942 = vpop.f32.mrb[0].mxu0
        %v2943 = vadd.f32 0.0, %v2942
        %v2944 = vpop.f32.mrb[0].mxu0
        %2945 = vmatprep.mubr.bf16.mxu0 %v2556
        %2946 = vmatmul.mubr.bf16.gmra.mrb[0].mxu0 %v2555
        %v2947 = vpop.f32.mrb[0].mxu0
        %v2948 = vadd.f32 0.0, %v2947
        %v2949 = vpop.f32.mrb[0].mxu0
        %v2950 = vpop.f32.mrb[0].mxu0
        %v2951 = vadd.f32 0.0, %v2950
        %v2952 = vpop.f32.mrb[0].mxu0
        %2953 = vmatprep.mubr.bf16.mxu0 %v2558
        %2954 = vmatmul.mubr.bf16.gmra.mrb[0].mxu0 %v2557
        %v2955 = vpop.f32.mrb[0].mxu0
        %v2956 = vadd.f32 0.0, %v2955
        %v2957 = vpop.f32.mrb[0].mxu0
        %v2958 = vpop.f32.mrb[0].mxu0
        %v2959 = vadd.f32 0.0, %v2958
        %v2960 = vpop.f32.mrb[0].mxu0
        %2961 = vdwg.mxu0
        %v2962 = vadd.f32 %v2141, %v2900
        %v2963 = vadd.f32 %v2142, %v2903
        %v2964 = vadd.f32 %v2143, %v2908
        %v2965 = vadd.f32 %v2144, %v2911
        %v2966 = vadd.f32 %v2145, %v2916
        %v2967 = vadd.f32 %v2146, %v2919
        %v2968 = vadd.f32 %v2147, %v2924
        %v2969 = vadd.f32 %v2148, %v2927
        %v2970 = vadd.f32 %v2149, %v2932
        %v2971 = vadd.f32 %v2150, %v2935
        %v2972 = vadd.f32 %v2151, %v2940
        %v2973 = vadd.f32 %v2152, %v2943
        %v2974 = vadd.f32 %v2153, %v2948
        %v2975 = vadd.f32 %v2154, %v2951
        %v2976 = vadd.f32 %v2155, %v2956
        %v2977 = vadd.f32 %v2156, %v2959
        %vm2978 = vcmp.eq.s32.totalorder %v386, 3
        %vm2979 = vcmp.eq.s32.totalorder %v387, 3
        %vm2980 = vcmp.eq.s32.totalorder %v388, 3
        %vm2981 = vcmp.eq.s32.totalorder %v389, 3
        %vm2982 = vcmp.eq.s32.totalorder %v390, 3
        %vm2983 = vcmp.eq.s32.totalorder %v391, 3
        %vm2984 = vcmp.eq.s32.totalorder %v392, 3
        %vm2985 = vcmp.eq.s32.totalorder %v393, 3
        %vm2986 = vcmp.eq.s32.totalorder %v394, 3
        %vm2987 = vcmp.eq.s32.totalorder %v395, 3
        %vm2988 = vcmp.eq.s32.totalorder %v396, 3
        %vm2989 = vcmp.eq.s32.totalorder %v397, 3
        %vm2990 = vcmp.eq.s32.totalorder %v398, 3
        %vm2991 = vcmp.eq.s32.totalorder %v399, 3
        %vm2992 = vcmp.eq.s32.totalorder %v400, 3
        %vm2993 = vcmp.eq.s32.totalorder %v401, 3
        %v2994 = vsel %vm2978, 1, 0
        %v2995 = vsel %vm2979, 1, 0
        %v2996 = vsel %vm2980, 1, 0
        %v2997 = vsel %vm2981, 1, 0
        %v2998 = vsel %vm2982, 1, 0
        %v2999 = vsel %vm2983, 1, 0
        %v3000 = vsel %vm2984, 1, 0
        %v3001 = vsel %vm2985, 1, 0
        %v3002 = vsel %vm2986, 1, 0
        %v3003 = vsel %vm2987, 1, 0
        %v3004 = vsel %vm2988, 1, 0
        %v3005 = vsel %vm2989, 1, 0
        %v3006 = vsel %vm2990, 1, 0
        %v3007 = vsel %vm2991, 1, 0
        %v3008 = vsel %vm2992, 1, 0
        %v3009 = vsel %vm2993, 1, 0
        %v3010 = vcvt.s32.f32 %v2994
        %v3011 = vcvt.s32.f32 %v2995
        %v3012 = vcvt.s32.f32 %v2996
        %v3013 = vcvt.s32.f32 %v2997
        %v3014 = vcvt.s32.f32 %v2998
        %v3015 = vcvt.s32.f32 %v2999
        %v3016 = vcvt.s32.f32 %v3000
        %v3017 = vcvt.s32.f32 %v3001
        %v3018 = vcvt.s32.f32 %v3002
        %v3019 = vcvt.s32.f32 %v3003
        %v3020 = vcvt.s32.f32 %v3004
        %v3021 = vcvt.s32.f32 %v3005
        %v3022 = vcvt.s32.f32 %v3006
        %v3023 = vcvt.s32.f32 %v3007
        %v3024 = vcvt.s32.f32 %v3008
        %v3025 = vcvt.s32.f32 %v3009
        %3026 = vrot.lane.b32.xlu0 %v370, 125
        %v3027 = vpop.permute.xlu0 %3026
        %3028 = vrot.lane.b32.xlu0 %v371, 125
        %v3029 = vpop.permute.xlu0 %3028
        %3030 = vrot.lane.b32.xlu0 %v372, 125
        %v3031 = vpop.permute.xlu0 %3030
        %3032 = vrot.lane.b32.xlu0 %v373, 125
        %v3033 = vpop.permute.xlu0 %3032
        %3034 = vrot.lane.b32.xlu0 %v374, 125
        %v3035 = vpop.permute.xlu0 %3034
        %3036 = vrot.lane.b32.xlu0 %v375, 125
        %v3037 = vpop.permute.xlu0 %3036
        %3038 = vrot.lane.b32.xlu0 %v376, 125
        %v3039 = vpop.permute.xlu0 %3038
        %3040 = vrot.lane.b32.xlu0 %v377, 125
        %v3041 = vpop.permute.xlu0 %3040
        %3042 = vrot.lane.b32.xlu0 %v378, 125
        %v3043 = vpop.permute.xlu0 %3042
        %3044 = vrot.lane.b32.xlu0 %v379, 125
        %v3045 = vpop.permute.xlu0 %3044
        %3046 = vrot.lane.b32.xlu0 %v380, 125
        %v3047 = vpop.permute.xlu0 %3046
        %3048 = vrot.lane.b32.xlu0 %v381, 125
        %v3049 = vpop.permute.xlu0 %3048
        %3050 = vrot.lane.b32.xlu0 %v382, 125
        %v3051 = vpop.permute.xlu0 %3050
        %3052 = vrot.lane.b32.xlu0 %v383, 125
        %v3053 = vpop.permute.xlu0 %3052
        %3054 = vrot.lane.b32.xlu0 %v384, 125
        %v3055 = vpop.permute.xlu0 %3054
        %3056 = vrot.lane.b32.xlu0 %v385, 125
        %v3057 = vpop.permute.xlu0 %3056
        %v3074 = vsub.f32 %v3010, %v3027
        %v3075 = vsub.f32 %v3011, %v3029
        %v3076 = vsub.f32 %v3012, %v3031
        %v3077 = vsub.f32 %v3013, %v3033
        %v3078 = vsub.f32 %v3014, %v3035
        %v3079 = vsub.f32 %v3015, %v3037
        %v3080 = vsub.f32 %v3016, %v3039
        %v3081 = vsub.f32 %v3017, %v3041
        %v3082 = vsub.f32 %v3018, %v3043
        %v3083 = vsub.f32 %v3019, %v3045
        %v3084 = vsub.f32 %v3020, %v3047
        %v3085 = vsub.f32 %v3021, %v3049
        %v3086 = vsub.f32 %v3022, %v3051
        %v3087 = vsub.f32 %v3023, %v3053
        %v3088 = vsub.f32 %v3024, %v3055
        %v3089 = vsub.f32 %v3025, %v3057
        %v3090 = vand.u32 2147483647, %v3074
        %v3091 = vand.u32 2147483647, %v3075
        %v3092 = vand.u32 2147483647, %v3076
        %v3093 = vand.u32 2147483647, %v3077
        %v3094 = vand.u32 2147483647, %v3078
        %v3095 = vand.u32 2147483647, %v3079
        %v3096 = vand.u32 2147483647, %v3080
        %v3097 = vand.u32 2147483647, %v3081
        %v3098 = vand.u32 2147483647, %v3082
        %v3099 = vand.u32 2147483647, %v3083
        %v3100 = vand.u32 2147483647, %v3084
        %v3101 = vand.u32 2147483647, %v3085
        %v3102 = vand.u32 2147483647, %v3086
        %v3103 = vand.u32 2147483647, %v3087
        %v3104 = vand.u32 2147483647, %v3088
        %v3105 = vand.u32 2147483647, %v3089
        %vm3106 = vcmp.eq.s32.totalorder %v403, 3
        %v3107 = vsel %vm3106, 1, 0
        %v3108 = vcvt.s32.f32 %v3107
        %v3109 = vcombine.high %v1467, %v1467
        %v3111 = vsub.f32 %v3108, %v3109
        %v3112 = vand.u32 2147483647, %v3111
        %v3114 = vlaneseq
        %v3115 = vshrl.u32 %v3114, 7
        %v3116 = vsub.s32 0, %v3115
        %v3117 = vrot.slane %v3112, %v3116
        %v3118 = vlaneseq
        %v3119 = vshrl.u32 %v3118, 7
        %v3120 = vsub.s32 1, %v3119
        %v3121 = vrot.slane %v3112, %v3120
        %3125 = vset.pattern.permute.xlu0 0
        %3126 = vperm.xlu0 %3125, %v3090
        %v3127 = vpop.permute.xlu0 %3126
        %3130 = vset.pattern.permute.xlu0 0
        %3131 = vperm.xlu0 %3130, %v3091
        %v3132 = vpop.permute.xlu0 %3131
        %3135 = vset.pattern.permute.xlu0 0
        %3136 = vperm.xlu0 %3135, %v3092
        %v3137 = vpop.permute.xlu0 %3136
        %3140 = vset.pattern.permute.xlu0 0
        %3141 = vperm.xlu0 %3140, %v3093
        %v3142 = vpop.permute.xlu0 %3141
        %3145 = vset.pattern.permute.xlu0 0
        %3146 = vperm.xlu0 %3145, %v3094
        %v3147 = vpop.permute.xlu0 %3146
        %3150 = vset.pattern.permute.xlu0 0
        %3151 = vperm.xlu0 %3150, %v3095
        %v3152 = vpop.permute.xlu0 %3151
        %3155 = vset.pattern.permute.xlu0 0
        %3156 = vperm.xlu0 %3155, %v3096
        %v3157 = vpop.permute.xlu0 %3156
        %3160 = vset.pattern.permute.xlu0 0
        %3161 = vperm.xlu0 %3160, %v3097
        %v3162 = vpop.permute.xlu0 %3161
        %3165 = vset.pattern.permute.xlu0 0
        %3166 = vperm.xlu0 %3165, %v3098
        %v3167 = vpop.permute.xlu0 %3166
        %3170 = vset.pattern.permute.xlu0 0
        %3171 = vperm.xlu0 %3170, %v3099
        %v3172 = vpop.permute.xlu0 %3171
        %3175 = vset.pattern.permute.xlu0 0
        %3176 = vperm.xlu0 %3175, %v3100
        %v3177 = vpop.permute.xlu0 %3176
        %3180 = vset.pattern.permute.xlu0 0
        %3181 = vperm.xlu0 %3180, %v3101
        %v3182 = vpop.permute.xlu0 %3181
        %3185 = vset.pattern.permute.xlu0 0
        %3186 = vperm.xlu0 %3185, %v3102
        %v3187 = vpop.permute.xlu0 %3186
        %3190 = vset.pattern.permute.xlu0 0
        %3191 = vperm.xlu0 %3190, %v3103
        %v3192 = vpop.permute.xlu0 %3191
        %3195 = vset.pattern.permute.xlu0 0
        %3196 = vperm.xlu0 %3195, %v3104
        %v3197 = vpop.permute.xlu0 %3196
        %3200 = vset.pattern.permute.xlu0 0
        %3201 = vperm.xlu0 %3200, %v3105
        %v3202 = vpop.permute.xlu0 %3201
        %vm3204 = vcmp.gt.f32.partialorder %v3117, %v3127
        %vm3205 = vcmp.gt.f32.partialorder %v3121, %v3127
        %vm3206 = vcmp.gt.f32.partialorder %v3117, %v3132
        %vm3207 = vcmp.gt.f32.partialorder %v3121, %v3132
        %vm3208 = vcmp.gt.f32.partialorder %v3117, %v3137
        %vm3209 = vcmp.gt.f32.partialorder %v3121, %v3137
        %vm3210 = vcmp.gt.f32.partialorder %v3117, %v3142
        %vm3211 = vcmp.gt.f32.partialorder %v3121, %v3142
        %vm3212 = vcmp.gt.f32.partialorder %v3117, %v3147
        %vm3213 = vcmp.gt.f32.partialorder %v3121, %v3147
        %vm3214 = vcmp.gt.f32.partialorder %v3117, %v3152
        %vm3215 = vcmp.gt.f32.partialorder %v3121, %v3152
        %vm3216 = vcmp.gt.f32.partialorder %v3117, %v3157
        %vm3217 = vcmp.gt.f32.partialorder %v3121, %v3157
        %vm3218 = vcmp.gt.f32.partialorder %v3117, %v3162
        %vm3219 = vcmp.gt.f32.partialorder %v3121, %v3162
        %vm3220 = vcmp.gt.f32.partialorder %v3117, %v3167
        %vm3221 = vcmp.gt.f32.partialorder %v3121, %v3167
        %vm3222 = vcmp.gt.f32.partialorder %v3117, %v3172
        %vm3223 = vcmp.gt.f32.partialorder %v3121, %v3172
        %vm3224 = vcmp.gt.f32.partialorder %v3117, %v3177
        %vm3225 = vcmp.gt.f32.partialorder %v3121, %v3177
        %vm3226 = vcmp.gt.f32.partialorder %v3117, %v3182
        %vm3227 = vcmp.gt.f32.partialorder %v3121, %v3182
        %vm3228 = vcmp.gt.f32.partialorder %v3117, %v3187
        %vm3229 = vcmp.gt.f32.partialorder %v3121, %v3187
        %vm3230 = vcmp.gt.f32.partialorder %v3117, %v3192
        %vm3231 = vcmp.gt.f32.partialorder %v3121, %v3192
        %vm3232 = vcmp.gt.f32.partialorder %v3117, %v3197
        %vm3233 = vcmp.gt.f32.partialorder %v3121, %v3197
        %vm3234 = vcmp.gt.f32.partialorder %v3117, %v3202
        %vm3235 = vcmp.gt.f32.partialorder %v3121, %v3202
        %vm3236 = vcmp.eq.f32.partialorder %v3117, %v3127
        %vm3237 = vcmp.eq.f32.partialorder %v3121, %v3127
        %vm3238 = vcmp.eq.f32.partialorder %v3117, %v3132
        %vm3239 = vcmp.eq.f32.partialorder %v3121, %v3132
        %vm3240 = vcmp.eq.f32.partialorder %v3117, %v3137
        %vm3241 = vcmp.eq.f32.partialorder %v3121, %v3137
        %vm3242 = vcmp.eq.f32.partialorder %v3117, %v3142
        %vm3243 = vcmp.eq.f32.partialorder %v3121, %v3142
        %vm3244 = vcmp.eq.f32.partialorder %v3117, %v3147
        %vm3245 = vcmp.eq.f32.partialorder %v3121, %v3147
        %vm3246 = vcmp.eq.f32.partialorder %v3117, %v3152
        %vm3247 = vcmp.eq.f32.partialorder %v3121, %v3152
        %vm3248 = vcmp.eq.f32.partialorder %v3117, %v3157
        %vm3249 = vcmp.eq.f32.partialorder %v3121, %v3157
        %vm3250 = vcmp.eq.f32.partialorder %v3117, %v3162
        %vm3251 = vcmp.eq.f32.partialorder %v3121, %v3162
        %vm3252 = vcmp.eq.f32.partialorder %v3117, %v3167
        %vm3253 = vcmp.eq.f32.partialorder %v3121, %v3167
        %vm3254 = vcmp.eq.f32.partialorder %v3117, %v3172
        %vm3255 = vcmp.eq.f32.partialorder %v3121, %v3172
        %vm3256 = vcmp.eq.f32.partialorder %v3117, %v3177
        %vm3257 = vcmp.eq.f32.partialorder %v3121, %v3177
        %vm3258 = vcmp.eq.f32.partialorder %v3117, %v3182
        %vm3259 = vcmp.eq.f32.partialorder %v3121, %v3182
        %vm3260 = vcmp.eq.f32.partialorder %v3117, %v3187
        %vm3261 = vcmp.eq.f32.partialorder %v3121, %v3187
        %vm3262 = vcmp.eq.f32.partialorder %v3117, %v3192
        %vm3263 = vcmp.eq.f32.partialorder %v3121, %v3192
        %vm3264 = vcmp.eq.f32.partialorder %v3117, %v3197
        %vm3265 = vcmp.eq.f32.partialorder %v3121, %v3197
        %vm3266 = vcmp.eq.f32.partialorder %v3117, %v3202
        %vm3267 = vcmp.eq.f32.partialorder %v3121, %v3202
        %vm3268 = vmand %vm3236, %vm478
        %vm3269 = vmand %vm3237, %vm479
        %vm3270 = vmand %vm3238, %vm480
        %vm3271 = vmand %vm3239, %vm481
        %vm3272 = vmand %vm3240, %vm482
        %vm3273 = vmand %vm3241, %vm483
        %vm3274 = vmand %vm3242, %vm484
        %vm3275 = vmand %vm3243, %vm485
        %vm3276 = vmand %vm3244, %vm486
        %vm3277 = vmand %vm3245, %vm487
        %vm3278 = vmand %vm3246, %vm488
        %vm3279 = vmand %vm3247, %vm489
        %vm3280 = vmand %vm3248, %vm490
        %vm3281 = vmand %vm3249, %vm491
        %vm3282 = vmand %vm3250, %vm492
        %vm3283 = vmand %vm3251, %vm493
        %vm3284 = vmand %vm3252, %vm494
        %vm3285 = vmand %vm3253, %vm495
        %vm3286 = vmand %vm3254, %vm496
        %vm3287 = vmand %vm3255, %vm497
        %vm3288 = vmand %vm3256, %vm498
        %vm3289 = vmand %vm3257, %vm499
        %vm3290 = vmand %vm3258, %vm500
        %vm3291 = vmand %vm3259, %vm501
        %vm3292 = vmand %vm3260, %vm502
        %vm3293 = vmand %vm3261, %vm503
        %vm3294 = vmand %vm3262, %vm504
        %vm3295 = vmand %vm3263, %vm505
        %vm3296 = vmand %vm3264, %vm506
        %vm3297 = vmand %vm3265, %vm507
        %vm3298 = vmand %vm3266, %vm508
        %vm3299 = vmand %vm3267, %vm509
        %vm3300 = vmor %vm3204, %vm3268
        %vm3301 = vmor %vm3205, %vm3269
        %vm3302 = vmor %vm3206, %vm3270
        %vm3303 = vmor %vm3207, %vm3271
        %vm3304 = vmor %vm3208, %vm3272
        %vm3305 = vmor %vm3209, %vm3273
        %vm3306 = vmor %vm3210, %vm3274
        %vm3307 = vmor %vm3211, %vm3275
        %vm3308 = vmor %vm3212, %vm3276
        %vm3309 = vmor %vm3213, %vm3277
        %vm3310 = vmor %vm3214, %vm3278
        %vm3311 = vmor %vm3215, %vm3279
        %vm3312 = vmor %vm3216, %vm3280
        %vm3313 = vmor %vm3217, %vm3281
        %vm3314 = vmor %vm3218, %vm3282
        %vm3315 = vmor %vm3219, %vm3283
        %vm3316 = vmor %vm3220, %vm3284
        %vm3317 = vmor %vm3221, %vm3285
        %vm3318 = vmor %vm3222, %vm3286
        %vm3319 = vmor %vm3223, %vm3287
        %vm3320 = vmor %vm3224, %vm3288
        %vm3321 = vmor %vm3225, %vm3289
        %vm3322 = vmor %vm3226, %vm3290
        %vm3323 = vmor %vm3227, %vm3291
        %vm3324 = vmor %vm3228, %vm3292
        %vm3325 = vmor %vm3229, %vm3293
        %vm3326 = vmor %vm3230, %vm3294
        %vm3327 = vmor %vm3231, %vm3295
        %vm3328 = vmor %vm3232, %vm3296
        %vm3329 = vmor %vm3233, %vm3297
        %vm3330 = vmor %vm3234, %vm3298
        %vm3331 = vmor %vm3235, %vm3299
        %v3332 = vsel %vm3300, 1.0, 0.0
        %v3333 = vsel %vm3301, 1.0, 0.0
        %v3334 = vsel %vm3302, 1.0, 0.0
        %v3335 = vsel %vm3303, 1.0, 0.0
        %v3336 = vsel %vm3304, 1.0, 0.0
        %v3337 = vsel %vm3305, 1.0, 0.0
        %v3338 = vsel %vm3306, 1.0, 0.0
        %v3339 = vsel %vm3307, 1.0, 0.0
        %v3340 = vsel %vm3308, 1.0, 0.0
        %v3341 = vsel %vm3309, 1.0, 0.0
        %v3342 = vsel %vm3310, 1.0, 0.0
        %v3343 = vsel %vm3311, 1.0, 0.0
        %v3344 = vsel %vm3312, 1.0, 0.0
        %v3345 = vsel %vm3313, 1.0, 0.0
        %v3346 = vsel %vm3314, 1.0, 0.0
        %v3347 = vsel %vm3315, 1.0, 0.0
        %v3348 = vsel %vm3316, 1.0, 0.0
        %v3349 = vsel %vm3317, 1.0, 0.0
        %v3350 = vsel %vm3318, 1.0, 0.0
        %v3351 = vsel %vm3319, 1.0, 0.0
        %v3352 = vsel %vm3320, 1.0, 0.0
        %v3353 = vsel %vm3321, 1.0, 0.0
        %v3354 = vsel %vm3322, 1.0, 0.0
        %v3355 = vsel %vm3323, 1.0, 0.0
        %v3356 = vsel %vm3324, 1.0, 0.0
        %v3357 = vsel %vm3325, 1.0, 0.0
        %v3358 = vsel %vm3326, 1.0, 0.0
        %v3359 = vsel %vm3327, 1.0, 0.0
        %v3360 = vsel %vm3328, 1.0, 0.0
        %v3361 = vsel %vm3329, 1.0, 0.0
        %v3362 = vsel %vm3330, 1.0, 0.0
        %v3363 = vsel %vm3331, 1.0, 0.0
        %v3364 = vpack.c.bf16 %v3334, %v3332
        %v3365 = vpack.c.bf16 %v3335, %v3333
        %v3366 = vpack.c.bf16 %v3338, %v3336
        %v3367 = vpack.c.bf16 %v3339, %v3337
        %v3368 = vpack.c.bf16 %v3342, %v3340
        %v3369 = vpack.c.bf16 %v3343, %v3341
        %v3370 = vpack.c.bf16 %v3346, %v3344
        %v3371 = vpack.c.bf16 %v3347, %v3345
        %v3372 = vpack.c.bf16 %v3350, %v3348
        %v3373 = vpack.c.bf16 %v3351, %v3349
        %v3374 = vpack.c.bf16 %v3354, %v3352
        %v3375 = vpack.c.bf16 %v3355, %v3353
        %v3376 = vpack.c.bf16 %v3358, %v3356
        %v3377 = vpack.c.bf16 %v3359, %v3357
        %v3378 = vpack.c.bf16 %v3362, %v3360
        %v3379 = vpack.c.bf16 %v3363, %v3361
        %vm3380 = vcmp.eq.s32.totalorder %v473, 3
        %vm3381 = vcmp.eq.s32.totalorder %v404, 3
        %vm3382 = vcmp.eq.s32.totalorder %v405, 3
        %vm3383 = vcmp.eq.s32.totalorder %v406, 3
        %vm3384 = vcmp.eq.s32.totalorder %v407, 3
        %vm3385 = vcmp.eq.s32.totalorder %v408, 3
        %vm3386 = vcmp.eq.s32.totalorder %v409, 3
        %vm3387 = vcmp.eq.s32.totalorder %v410, 3
        %vm3388 = vcmp.eq.s32.totalorder %v411, 3
        %vm3389 = vcmp.eq.s32.totalorder %v412, 3
        %vm3390 = vcmp.eq.s32.totalorder %v413, 3
        %vm3391 = vcmp.eq.s32.totalorder %v414, 3
        %vm3392 = vcmp.eq.s32.totalorder %v415, 3
        %vm3393 = vcmp.eq.s32.totalorder %v416, 3
        %vm3394 = vcmp.eq.s32.totalorder %v417, 3
        %vm3395 = vcmp.eq.s32.totalorder %v418, 3
        %vm3396 = vcmp.eq.s32.totalorder %v419, 3
        %vm3397 = vcmp.eq.s32.totalorder %v420, 3
        %vm3398 = vcmp.eq.s32.totalorder %v421, 3
        %vm3399 = vcmp.eq.s32.totalorder %v422, 3
        %vm3400 = vcmp.eq.s32.totalorder %v423, 3
        %vm3401 = vcmp.eq.s32.totalorder %v424, 3
        %vm3402 = vcmp.eq.s32.totalorder %v425, 3
        %vm3403 = vcmp.eq.s32.totalorder %v426, 3
        %vm3404 = vcmp.eq.s32.totalorder %v427, 3
        %vm3405 = vcmp.eq.s32.totalorder %v428, 3
        %vm3406 = vcmp.eq.s32.totalorder %v429, 3
        %vm3407 = vcmp.eq.s32.totalorder %v430, 3
        %vm3408 = vcmp.eq.s32.totalorder %v431, 3
        %vm3409 = vcmp.eq.s32.totalorder %v432, 3
        %vm3410 = vcmp.eq.s32.totalorder %v433, 3
        %vm3411 = vcmp.eq.s32.totalorder %v434, 3
        %vm3412 = vcmp.eq.s32.totalorder %v435, 3
        %v3413 = vsel %vm3381, 1, 0
        %v3414 = vsel %vm3382, 1, 0
        %v3415 = vsel %vm3383, 1, 0
        %v3416 = vsel %vm3384, 1, 0
        %v3417 = vsel %vm3385, 1, 0
        %v3418 = vsel %vm3386, 1, 0
        %v3419 = vsel %vm3387, 1, 0
        %v3420 = vsel %vm3388, 1, 0
        %v3421 = vsel %vm3389, 1, 0
        %v3422 = vsel %vm3390, 1, 0
        %v3423 = vsel %vm3391, 1, 0
        %v3424 = vsel %vm3392, 1, 0
        %v3425 = vsel %vm3393, 1, 0
        %v3426 = vsel %vm3394, 1, 0
        %v3427 = vsel %vm3395, 1, 0
        %v3428 = vsel %vm3396, 1, 0
        %v3429 = vsel %vm3397, 1, 0
        %v3430 = vsel %vm3398, 1, 0
        %v3431 = vsel %vm3399, 1, 0
        %v3432 = vsel %vm3400, 1, 0
        %v3433 = vsel %vm3401, 1, 0
        %v3434 = vsel %vm3402, 1, 0
        %v3435 = vsel %vm3403, 1, 0
        %v3436 = vsel %vm3404, 1, 0
        %v3437 = vsel %vm3405, 1, 0
        %v3438 = vsel %vm3406, 1, 0
        %v3439 = vsel %vm3407, 1, 0
        %v3440 = vsel %vm3408, 1, 0
        %v3441 = vsel %vm3409, 1, 0
        %v3442 = vsel %vm3410, 1, 0
        %v3443 = vsel %vm3411, 1, 0
        %v3444 = vsel %vm3412, 1, 0
        %3445 = vset.pattern.permute.xlu0 0
        %3446 = vperm.xlu0 %3445, %v3413
        %v3447 = vpop.permute.xlu0 %3446
        %3448 = vset.pattern.permute.xlu0 0
        %3449 = vperm.xlu0 %3448, %v3414
        %v3450 = vpop.permute.xlu0 %3449
        %3451 = vset.pattern.permute.xlu0 0
        %3452 = vperm.xlu0 %3451, %v3415
        %v3453 = vpop.permute.xlu0 %3452
        %3454 = vset.pattern.permute.xlu0 0
        %3455 = vperm.xlu0 %3454, %v3416
        %v3456 = vpop.permute.xlu0 %3455
        %3457 = vset.pattern.permute.xlu0 0
        %3458 = vperm.xlu0 %3457, %v3417
        %v3459 = vpop.permute.xlu0 %3458
        %3460 = vset.pattern.permute.xlu0 0
        %3461 = vperm.xlu0 %3460, %v3418
        %v3462 = vpop.permute.xlu0 %3461
        %3463 = vset.pattern.permute.xlu0 0
        %3464 = vperm.xlu0 %3463, %v3419
        %v3465 = vpop.permute.xlu0 %3464
        %3466 = vset.pattern.permute.xlu0 0
        %3467 = vperm.xlu0 %3466, %v3420
        %v3468 = vpop.permute.xlu0 %3467
        %3469 = vset.pattern.permute.xlu0 0
        %3470 = vperm.xlu0 %3469, %v3421
        %v3471 = vpop.permute.xlu0 %3470
        %3472 = vset.pattern.permute.xlu0 0
        %3473 = vperm.xlu0 %3472, %v3422
        %v3474 = vpop.permute.xlu0 %3473
        %3475 = vset.pattern.permute.xlu0 0
        %3476 = vperm.xlu0 %3475, %v3423
        %v3477 = vpop.permute.xlu0 %3476
        %3478 = vset.pattern.permute.xlu0 0
        %3479 = vperm.xlu0 %3478, %v3424
        %v3480 = vpop.permute.xlu0 %3479
        %3481 = vset.pattern.permute.xlu0 0
        %3482 = vperm.xlu0 %3481, %v3425
        %v3483 = vpop.permute.xlu0 %3482
        %3484 = vset.pattern.permute.xlu0 0
        %3485 = vperm.xlu0 %3484, %v3426
        %v3486 = vpop.permute.xlu0 %3485
        %3487 = vset.pattern.permute.xlu0 0
        %3488 = vperm.xlu0 %3487, %v3427
        %v3489 = vpop.permute.xlu0 %3488
        %3490 = vset.pattern.permute.xlu0 0
        %3491 = vperm.xlu0 %3490, %v3428
        %v3492 = vpop.permute.xlu0 %3491
        %3493 = vset.pattern.permute.xlu0 0
        %3494 = vperm.xlu0 %3493, %v3429
        %v3495 = vpop.permute.xlu0 %3494
        %3496 = vset.pattern.permute.xlu0 0
        %3497 = vperm.xlu0 %3496, %v3430
        %v3498 = vpop.permute.xlu0 %3497
        %3499 = vset.pattern.permute.xlu0 0
        %3500 = vperm.xlu0 %3499, %v3431
        %v3501 = vpop.permute.xlu0 %3500
        %3502 = vset.pattern.permute.xlu0 0
        %3503 = vperm.xlu0 %3502, %v3432
        %v3504 = vpop.permute.xlu0 %3503
        %3505 = vset.pattern.permute.xlu0 0
        %3506 = vperm.xlu0 %3505, %v3433
        %v3507 = vpop.permute.xlu0 %3506
        %3508 = vset.pattern.permute.xlu0 0
        %3509 = vperm.xlu0 %3508, %v3434
        %v3510 = vpop.permute.xlu0 %3509
        %3511 = vset.pattern.permute.xlu0 0
        %3512 = vperm.xlu0 %3511, %v3435
        %v3513 = vpop.permute.xlu0 %3512
        %3514 = vset.pattern.permute.xlu0 0
        %3515 = vperm.xlu0 %3514, %v3436
        %v3516 = vpop.permute.xlu0 %3515
        %3517 = vset.pattern.permute.xlu0 0
        %3518 = vperm.xlu0 %3517, %v3437
        %v3519 = vpop.permute.xlu0 %3518
        %3520 = vset.pattern.permute.xlu0 0
        %3521 = vperm.xlu0 %3520, %v3438
        %v3522 = vpop.permute.xlu0 %3521
        %3523 = vset.pattern.permute.xlu0 0
        %3524 = vperm.xlu0 %3523, %v3439
        %v3525 = vpop.permute.xlu0 %3524
        %3526 = vset.pattern.permute.xlu0 0
        %3527 = vperm.xlu0 %3526, %v3440
        %v3528 = vpop.permute.xlu0 %3527
        %3529 = vset.pattern.permute.xlu0 0
        %3530 = vperm.xlu0 %3529, %v3441
        %v3531 = vpop.permute.xlu0 %3530
        %3532 = vset.pattern.permute.xlu0 0
        %3533 = vperm.xlu0 %3532, %v3442
        %v3534 = vpop.permute.xlu0 %3533
        %3535 = vset.pattern.permute.xlu0 0
        %3536 = vperm.xlu0 %3535, %v3443
        %v3537 = vpop.permute.xlu0 %3536
        %3538 = vset.pattern.permute.xlu0 0
        %3539 = vperm.xlu0 %3538, %v3444
        %v3540 = vpop.permute.xlu0 %3539
        %vm3541 = vcmp.eq.s32.totalorder %v3447, 1
        %vm3542 = vcmp.eq.s32.totalorder %v3450, 1
        %vm3543 = vcmp.eq.s32.totalorder %v3453, 1
        %vm3544 = vcmp.eq.s32.totalorder %v3456, 1
        %vm3545 = vcmp.eq.s32.totalorder %v3459, 1
        %vm3546 = vcmp.eq.s32.totalorder %v3462, 1
        %vm3547 = vcmp.eq.s32.totalorder %v3465, 1
        %vm3548 = vcmp.eq.s32.totalorder %v3468, 1
        %vm3549 = vcmp.eq.s32.totalorder %v3471, 1
        %vm3550 = vcmp.eq.s32.totalorder %v3474, 1
        %vm3551 = vcmp.eq.s32.totalorder %v3477, 1
        %vm3552 = vcmp.eq.s32.totalorder %v3480, 1
        %vm3553 = vcmp.eq.s32.totalorder %v3483, 1
        %vm3554 = vcmp.eq.s32.totalorder %v3486, 1
        %vm3555 = vcmp.eq.s32.totalorder %v3489, 1
        %vm3556 = vcmp.eq.s32.totalorder %v3492, 1
        %vm3557 = vcmp.eq.s32.totalorder %v3495, 1
        %vm3558 = vcmp.eq.s32.totalorder %v3498, 1
        %vm3559 = vcmp.eq.s32.totalorder %v3501, 1
        %vm3560 = vcmp.eq.s32.totalorder %v3504, 1
        %vm3561 = vcmp.eq.s32.totalorder %v3507, 1
        %vm3562 = vcmp.eq.s32.totalorder %v3510, 1
        %vm3563 = vcmp.eq.s32.totalorder %v3513, 1
        %vm3564 = vcmp.eq.s32.totalorder %v3516, 1
        %vm3565 = vcmp.eq.s32.totalorder %v3519, 1
        %vm3566 = vcmp.eq.s32.totalorder %v3522, 1
        %vm3567 = vcmp.eq.s32.totalorder %v3525, 1
        %vm3568 = vcmp.eq.s32.totalorder %v3528, 1
        %vm3569 = vcmp.eq.s32.totalorder %v3531, 1
        %vm3570 = vcmp.eq.s32.totalorder %v3534, 1
        %vm3571 = vcmp.eq.s32.totalorder %v3537, 1
        %vm3572 = vcmp.eq.s32.totalorder %v3540, 1
        %vm3573 = vmand %vm3380, %vm3541
        %vm3574 = vmand %vm3380, %vm3542
        %vm3575 = vmand %vm3380, %vm3543
        %vm3576 = vmand %vm3380, %vm3544
        %vm3577 = vmand %vm3380, %vm3545
        %vm3578 = vmand %vm3380, %vm3546
        %vm3579 = vmand %vm3380, %vm3547
        %vm3580 = vmand %vm3380, %vm3548
        %vm3581 = vmand %vm3380, %vm3549
        %vm3582 = vmand %vm3380, %vm3550
        %vm3583 = vmand %vm3380, %vm3551
        %vm3584 = vmand %vm3380, %vm3552
        %vm3585 = vmand %vm3380, %vm3553
        %vm3586 = vmand %vm3380, %vm3554
        %vm3587 = vmand %vm3380, %vm3555
        %vm3588 = vmand %vm3380, %vm3556
        %vm3589 = vmand %vm3380, %vm3557
        %vm3590 = vmand %vm3380, %vm3558
        %vm3591 = vmand %vm3380, %vm3559
        %vm3592 = vmand %vm3380, %vm3560
        %vm3593 = vmand %vm3380, %vm3561
        %vm3594 = vmand %vm3380, %vm3562
        %vm3595 = vmand %vm3380, %vm3563
        %vm3596 = vmand %vm3380, %vm3564
        %vm3597 = vmand %vm3380, %vm3565
        %vm3598 = vmand %vm3380, %vm3566
        %vm3599 = vmand %vm3380, %vm3567
        %vm3600 = vmand %vm3380, %vm3568
        %vm3601 = vmand %vm3380, %vm3569
        %vm3602 = vmand %vm3380, %vm3570
        %vm3603 = vmand %vm3380, %vm3571
        %vm3604 = vmand %vm3380, %vm3572
        %vm3605 = vcmp.eq.s32.totalorder %v473, 67
        %vm3606 = vmor %vm3573, %vm3605
        %vm3607 = vmor %vm3574, %vm3605
        %vm3608 = vmor %vm3575, %vm3605
        %vm3609 = vmor %vm3576, %vm3605
        %vm3610 = vmor %vm3577, %vm3605
        %vm3611 = vmor %vm3578, %vm3605
        %vm3612 = vmor %vm3579, %vm3605
        %vm3613 = vmor %vm3580, %vm3605
        %vm3614 = vmor %vm3581, %vm3605
        %vm3615 = vmor %vm3582, %vm3605
        %vm3616 = vmor %vm3583, %vm3605
        %vm3617 = vmor %vm3584, %vm3605
        %vm3618 = vmor %vm3585, %vm3605
        %vm3619 = vmor %vm3586, %vm3605
        %vm3620 = vmor %vm3587, %vm3605
        %vm3621 = vmor %vm3588, %vm3605
        %vm3622 = vmor %vm3589, %vm3605
        %vm3623 = vmor %vm3590, %vm3605
        %vm3624 = vmor %vm3591, %vm3605
        %vm3625 = vmor %vm3592, %vm3605
        %vm3626 = vmor %vm3593, %vm3605
        %vm3627 = vmor %vm3594, %vm3605
        %vm3628 = vmor %vm3595, %vm3605
        %vm3629 = vmor %vm3596, %vm3605
        %vm3630 = vmor %vm3597, %vm3605
        %vm3631 = vmor %vm3598, %vm3605
        %vm3632 = vmor %vm3599, %vm3605
        %vm3633 = vmor %vm3600, %vm3605
        %vm3634 = vmor %vm3601, %vm3605
        %vm3635 = vmor %vm3602, %vm3605
        %vm3636 = vmor %vm3603, %vm3605
        %vm3637 = vmor %vm3604, %vm3605
        %v3638 = vsel %vm3606, 1.0, 0.0
        %v3639 = vsel %vm3607, 1.0, 0.0
        %v3640 = vsel %vm3608, 1.0, 0.0
        %v3641 = vsel %vm3609, 1.0, 0.0
        %v3642 = vsel %vm3610, 1.0, 0.0
        %v3643 = vsel %vm3611, 1.0, 0.0
        %v3644 = vsel %vm3612, 1.0, 0.0
        %v3645 = vsel %vm3613, 1.0, 0.0
        %v3646 = vsel %vm3614, 1.0, 0.0
        %v3647 = vsel %vm3615, 1.0, 0.0
        %v3648 = vsel %vm3616, 1.0, 0.0
        %v3649 = vsel %vm3617, 1.0, 0.0
        %v3650 = vsel %vm3618, 1.0, 0.0
        %v3651 = vsel %vm3619, 1.0, 0.0
        %v3652 = vsel %vm3620, 1.0, 0.0
        %v3653 = vsel %vm3621, 1.0, 0.0
        %v3654 = vsel %vm3622, 1.0, 0.0
        %v3655 = vsel %vm3623, 1.0, 0.0
        %v3656 = vsel %vm3624, 1.0, 0.0
        %v3657 = vsel %vm3625, 1.0, 0.0
        %v3658 = vsel %vm3626, 1.0, 0.0
        %v3659 = vsel %vm3627, 1.0, 0.0
        %v3660 = vsel %vm3628, 1.0, 0.0
        %v3661 = vsel %vm3629, 1.0, 0.0
        %v3662 = vsel %vm3630, 1.0, 0.0
        %v3663 = vsel %vm3631, 1.0, 0.0
        %v3664 = vsel %vm3632, 1.0, 0.0
        %v3665 = vsel %vm3633, 1.0, 0.0
        %v3666 = vsel %vm3634, 1.0, 0.0
        %v3667 = vsel %vm3635, 1.0, 0.0
        %v3668 = vsel %vm3636, 1.0, 0.0
        %v3669 = vsel %vm3637, 1.0, 0.0
        %v3670 = vpack.c.bf16 %v3639, %v3638
        %v3671 = vpack.c.bf16 %v3641, %v3640
        %v3672 = vpack.c.bf16 %v3643, %v3642
        %v3673 = vpack.c.bf16 %v3645, %v3644
        %v3674 = vpack.c.bf16 %v3647, %v3646
        %v3675 = vpack.c.bf16 %v3649, %v3648
        %v3676 = vpack.c.bf16 %v3651, %v3650
        %v3677 = vpack.c.bf16 %v3653, %v3652
        %v3678 = vpack.c.bf16 %v3655, %v3654
        %v3679 = vpack.c.bf16 %v3657, %v3656
        %v3680 = vpack.c.bf16 %v3659, %v3658
        %v3681 = vpack.c.bf16 %v3661, %v3660
        %v3682 = vpack.c.bf16 %v3663, %v3662
        %v3683 = vpack.c.bf16 %v3665, %v3664
        %v3684 = vpack.c.bf16 %v3667, %v3666
        %v3685 = vpack.c.bf16 %v3669, %v3668
        %3686 = vmatprep.subr.bf16.mxu0 0
        %3687 = vmatpush1.bf16.msra.mxu0 %v3670
        %3688 = vmatprep.subr.bf16.mxu0 0
        %3689 = vmatpush1.bf16.msra.mxu0 %v3671
        %3690 = vmatprep.subr.bf16.mxu0 0
        %3691 = vmatpush1.bf16.msra.mxu0 %v3672
        %3692 = vmatprep.subr.bf16.mxu0 0
        %3693 = vmatpush1.bf16.msra.mxu0 %v3673
        %3694 = vmatprep.subr.bf16.mxu0 0
        %3695 = vmatpush1.bf16.msra.mxu0 %v3674
        %3696 = vmatprep.subr.bf16.mxu0 0
        %3697 = vmatpush1.bf16.msra.mxu0 %v3675
        %3698 = vmatprep.subr.bf16.mxu0 0
        %3699 = vmatpush1.bf16.msra.mxu0 %v3676
        %3700 = vmatprep.subr.bf16.mxu0 0
        %3701 = vmatpush1.bf16.msra.mxu0 %v3677
        %3702 = vmatprep.subr.bf16.mxu0 0
        %3703 = vmatpush1.bf16.msra.mxu0 %v3678
        %3704 = vmatprep.subr.bf16.mxu0 0
        %3705 = vmatpush1.bf16.msra.mxu0 %v3679
        %3706 = vmatprep.subr.bf16.mxu0 0
        %3707 = vmatpush1.bf16.msra.mxu0 %v3680
        %3708 = vmatprep.subr.bf16.mxu0 0
        %3709 = vmatpush1.bf16.msra.mxu0 %v3681
        %3710 = vmatprep.subr.bf16.mxu0 0
        %3711 = vmatpush1.bf16.msra.mxu0 %v3682
        %3712 = vmatprep.subr.bf16.mxu0 0
        %3713 = vmatpush1.bf16.msra.mxu0 %v3683
        %3714 = vmatprep.subr.bf16.mxu0 0
        %3715 = vmatpush1.bf16.msra.mxu0 %v3684
        %3716 = vmatprep.subr.bf16.mxu0 0
        %3717 = vmatpush1.bf16.msra.mxu0 %v3685
        %3718 = vmatprep.mubr.bf16.mxu0 %v3365
        %3719 = vmatmul.mubr.bf16.gmra.mrb[0].mxu0 %v3364
        %v3720 = vpop.f32.mrb[0].mxu0
        %v3721 = vadd.f32 0.0, %v3720
        %v3722 = vpop.f32.mrb[0].mxu0
        %v3723 = vpop.f32.mrb[0].mxu0
        %v3724 = vadd.f32 0.0, %v3723
        %v3725 = vpop.f32.mrb[0].mxu0
        %3726 = vmatprep.mubr.bf16.mxu0 %v3367
        %3727 = vmatmul.mubr.bf16.gmra.mrb[0].mxu0 %v3366
        %v3728 = vpop.f32.mrb[0].mxu0
        %v3729 = vadd.f32 0.0, %v3728
        %v3730 = vpop.f32.mrb[0].mxu0
        %v3731 = vpop.f32.mrb[0].mxu0
        %v3732 = vadd.f32 0.0, %v3731
        %v3733 = vpop.f32.mrb[0].mxu0
        %3734 = vmatprep.mubr.bf16.mxu0 %v3369
        %3735 = vmatmul.mubr.bf16.gmra.mrb[0].mxu0 %v3368
        %v3736 = vpop.f32.mrb[0].mxu0
        %v3737 = vadd.f32 0.0, %v3736
        %v3738 = vpop.f32.mrb[0].mxu0
        %v3739 = vpop.f32.mrb[0].mxu0
        %v3740 = vadd.f32 0.0, %v3739
        %v3741 = vpop.f32.mrb[0].mxu0
        %3742 = vmatprep.mubr.bf16.mxu0 %v3371
        %3743 = vmatmul.mubr.bf16.gmra.mrb[0].mxu0 %v3370
        %v3744 = vpop.f32.mrb[0].mxu0
        %v3745 = vadd.f32 0.0, %v3744
        %v3746 = vpop.f32.mrb[0].mxu0
        %v3747 = vpop.f32.mrb[0].mxu0
        %v3748 = vadd.f32 0.0, %v3747
        %v3749 = vpop.f32.mrb[0].mxu0
        %3750 = vmatprep.mubr.bf16.mxu0 %v3373
        %3751 = vmatmul.mubr.bf16.gmra.mrb[0].mxu0 %v3372
        %v3752 = vpop.f32.mrb[0].mxu0
        %v3753 = vadd.f32 0.0, %v3752
        %v3754 = vpop.f32.mrb[0].mxu0
        %v3755 = vpop.f32.mrb[0].mxu0
        %v3756 = vadd.f32 0.0, %v3755
        %v3757 = vpop.f32.mrb[0].mxu0
        %3758 = vmatprep.mubr.bf16.mxu0 %v3375
        %3759 = vmatmul.mubr.bf16.gmra.mrb[0].mxu0 %v3374
        %v3760 = vpop.f32.mrb[0].mxu0
        %v3761 = vadd.f32 0.0, %v3760
        %v3762 = vpop.f32.mrb[0].mxu0
        %v3763 = vpop.f32.mrb[0].mxu0
        %v3764 = vadd.f32 0.0, %v3763
        %v3765 = vpop.f32.mrb[0].mxu0
        %3766 = vmatprep.mubr.bf16.mxu0 %v3377
        %3767 = vmatmul.mubr.bf16.gmra.mrb[0].mxu0 %v3376
        %v3768 = vpop.f32.mrb[0].mxu0
        %v3769 = vadd.f32 0.0, %v3768
        %v3770 = vpop.f32.mrb[0].mxu0
        %v3771 = vpop.f32.mrb[0].mxu0
        %v3772 = vadd.f32 0.0, %v3771
        %v3773 = vpop.f32.mrb[0].mxu0
        %3774 = vmatprep.mubr.bf16.mxu0 %v3379
        %3775 = vmatmul.mubr.bf16.gmra.mrb[0].mxu0 %v3378
        %v3776 = vpop.f32.mrb[0].mxu0
        %v3777 = vadd.f32 0.0, %v3776
        %v3778 = vpop.f32.mrb[0].mxu0
        %v3779 = vpop.f32.mrb[0].mxu0
        %v3780 = vadd.f32 0.0, %v3779
        %v3781 = vpop.f32.mrb[0].mxu0
        %3782 = vdwg.mxu0
        %v3783 = vadd.f32 %v2962, %v3721
        %v3784 = vadd.f32 %v2963, %v3724
        %v3785 = vadd.f32 %v2964, %v3729
        %v3786 = vadd.f32 %v2965, %v3732
        %v3787 = vadd.f32 %v2966, %v3737
        %v3788 = vadd.f32 %v2967, %v3740
        %v3789 = vadd.f32 %v2968, %v3745
        %v3790 = vadd.f32 %v2969, %v3748
        %v3791 = vadd.f32 %v2970, %v3753
        %v3792 = vadd.f32 %v2971, %v3756
        %v3793 = vadd.f32 %v2972, %v3761
        %v3794 = vadd.f32 %v2973, %v3764
        %v3795 = vadd.f32 %v2974, %v3769
        %v3796 = vadd.f32 %v2975, %v3772
        %v3797 = vadd.f32 %v2976, %v3777
        %v3798 = vadd.f32 %v2977, %v3780
        %3799 = vst [vmem:[#allocation2] sm:$0xff] %v3783
        %3800 = vst [vmem:[#allocation2 + $0x8] sm:$0xff] %v3784
        %3801 = vst [vmem:[#allocation2 + $0x10] sm:$0xff] %v3785
        %3802 = vst [vmem:[#allocation2 + $0x18] sm:$0xff] %v3786
        %3803 = vst [vmem:[#allocation2 + $0x20] sm:$0xff] %v3787
        %3804 = vst [vmem:[#allocation2 + $0x28] sm:$0xff] %v3788
        %3805 = vst [vmem:[#allocation2 + $0x30] sm:$0xff] %v3789
        %3806 = vst [vmem:[#allocation2 + $0x38] sm:$0xff] %v3790
        %3807 = vst [vmem:[#allocation2 + $0x40] sm:$0xff] %v3791
        %3808 = vst [vmem:[#allocation2 + $0x48] sm:$0xff] %v3792
        %3809 = vst [vmem:[#allocation2 + $0x50] sm:$0xff] %v3793
        %3810 = vst [vmem:[#allocation2 + $0x58] sm:$0xff] %v3794
        %3811 = vst [vmem:[#allocation2 + $0x60] sm:$0xff] %v3795
        %3812 = vst [vmem:[#allocation2 + $0x68] sm:$0xff] %v3796
        %3813 = vst [vmem:[#allocation2 + $0x70] sm:$0xff] %v3797
        %3814 = vst [vmem:[#allocation2 + $0x78] sm:$0xff] %v3798
        %p3815 = scmp.eq.s32.totalorder %s25, 1
        // Predicated region
        $region49: #{tpu_custom_call.1} parent=43 // pred_check
          %p3816 = pneg %p3815
        $region50: #{tpu_custom_call.1} parent=43 // pred_check_branch
          %3818 = sbr.rel (%p3816) target = $region52
        $region51: #{tpu_custom_call.1} parent=43 // pred_region
          %v3819 = vld [vmem:[%s0] sm:$0x1]
          %v3821 = vlaneseq
          %v3822 = vshrl.u32 %v3821, 7
          %v3823 = vsub.s32 0, %v3822
          %v3824 = vrot.slane %v3819, %v3823
          %v3826 = vsub.f32 %v3824, %v3783
          %v3827 = vsub.f32 %v3824, %v3784
          %v3828 = vsub.f32 %v3824, %v3785
          %v3829 = vsub.f32 %v3824, %v3786
          %v3830 = vsub.f32 %v3824, %v3787
          %v3831 = vsub.f32 %v3824, %v3788
          %v3832 = vsub.f32 %v3824, %v3789
          %v3833 = vsub.f32 %v3824, %v3790
          %v3834 = vsub.f32 %v3824, %v3791
          %v3835 = vsub.f32 %v3824, %v3792
          %v3836 = vsub.f32 %v3824, %v3793
          %v3837 = vsub.f32 %v3824, %v3794
          %v3838 = vsub.f32 %v3824, %v3795
          %v3839 = vsub.f32 %v3824, %v3796
          %v3840 = vsub.f32 %v3824, %v3797
          %v3841 = vsub.f32 %v3824, %v3798
          %3858 = vrot.lane.b32.xlu0 %v3783, 64
          %v3859 = vpop.permute.xlu0 %3858
          %3860 = vrot.lane.b32.xlu0 %v3784, 64
          %v3861 = vpop.permute.xlu0 %3860
          %3862 = vrot.lane.b32.xlu0 %v3785, 64
          %v3863 = vpop.permute.xlu0 %3862
          %3864 = vrot.lane.b32.xlu0 %v3786, 64
          %v3865 = vpop.permute.xlu0 %3864
          %3866 = vrot.lane.b32.xlu0 %v3787, 64
          %v3867 = vpop.permute.xlu0 %3866
          %3868 = vrot.lane.b32.xlu0 %v3788, 64
          %v3869 = vpop.permute.xlu0 %3868
          %3870 = vrot.lane.b32.xlu0 %v3789, 64
          %v3871 = vpop.permute.xlu0 %3870
          %3872 = vrot.lane.b32.xlu0 %v3790, 64
          %v3873 = vpop.permute.xlu0 %3872
          %3874 = vrot.lane.b32.xlu0 %v3791, 64
          %v3875 = vpop.permute.xlu0 %3874
          %3876 = vrot.lane.b32.xlu0 %v3792, 64
          %v3877 = vpop.permute.xlu0 %3876
          %3878 = vrot.lane.b32.xlu0 %v3793, 64
          %v3879 = vpop.permute.xlu0 %3878
          %3880 = vrot.lane.b32.xlu0 %v3794, 64
          %v3881 = vpop.permute.xlu0 %3880
          %3882 = vrot.lane.b32.xlu0 %v3795, 64
          %v3883 = vpop.permute.xlu0 %3882
          %3884 = vrot.lane.b32.xlu0 %v3796, 64
          %v3885 = vpop.permute.xlu0 %3884
          %3886 = vrot.lane.b32.xlu0 %v3797, 64
          %v3887 = vpop.permute.xlu0 %3886
          %3888 = vrot.lane.b32.xlu0 %v3798, 64
          %v3889 = vpop.permute.xlu0 %3888
          %v3906 = vadd.f32 %v3824, %v3859
          %v3907 = vadd.f32 %v3824, %v3861
          %v3908 = vadd.f32 %v3824, %v3863
          %v3909 = vadd.f32 %v3824, %v3865
          %v3910 = vadd.f32 %v3824, %v3867
          %v3911 = vadd.f32 %v3824, %v3869
          %v3912 = vadd.f32 %v3824, %v3871
          %v3913 = vadd.f32 %v3824, %v3873
          %v3914 = vadd.f32 %v3824, %v3875
          %v3915 = vadd.f32 %v3824, %v3877
          %v3916 = vadd.f32 %v3824, %v3879
          %v3917 = vadd.f32 %v3824, %v3881
          %v3918 = vadd.f32 %v3824, %v3883
          %v3919 = vadd.f32 %v3824, %v3885
          %v3920 = vadd.f32 %v3824, %v3887
          %v3921 = vadd.f32 %v3824, %v3889
          %v3922 = vsub.f32 %v3906, %v3783
          %v3923 = vsub.f32 %v3907, %v3784
          %v3924 = vsub.f32 %v3908, %v3785
          %v3925 = vsub.f32 %v3909, %v3786
          %v3926 = vsub.f32 %v3910, %v3787
          %v3927 = vsub.f32 %v3911, %v3788
          %v3928 = vsub.f32 %v3912, %v3789
          %v3929 = vsub.f32 %v3913, %v3790
          %v3930 = vsub.f32 %v3914, %v3791
          %v3931 = vsub.f32 %v3915, %v3792
          %v3932 = vsub.f32 %v3916, %v3793
          %v3933 = vsub.f32 %v3917, %v3794
          %v3934 = vsub.f32 %v3918, %v3795
          %v3935 = vsub.f32 %v3919, %v3796
          %v3936 = vsub.f32 %v3920, %v3797
          %v3937 = vsub.f32 %v3921, %v3798
          %v3938 = vrcp.pop %v3922
          %v3939 = vmul.f32 %v3826, %v3938
          %v3940 = vrcp.pop %v3923
          %v3941 = vmul.f32 %v3827, %v3940
          %v3942 = vrcp.pop %v3924
          %v3943 = vmul.f32 %v3828, %v3942
          %v3944 = vrcp.pop %v3925
          %v3945 = vmul.f32 %v3829, %v3944
          %v3946 = vrcp.pop %v3926
          %v3947 = vmul.f32 %v3830, %v3946
          %v3948 = vrcp.pop %v3927
          %v3949 = vmul.f32 %v3831, %v3948
          %v3950 = vrcp.pop %v3928
          %v3951 = vmul.f32 %v3832, %v3950
          %v3952 = vrcp.pop %v3929
          %v3953 = vmul.f32 %v3833, %v3952
          %v3954 = vrcp.pop %v3930
          %v3955 = vmul.f32 %v3834, %v3954
          %v3956 = vrcp.pop %v3931
          %v3957 = vmul.f32 %v3835, %v3956
          %v3958 = vrcp.pop %v3932
          %v3959 = vmul.f32 %v3836, %v3958
          %v3960 = vrcp.pop %v3933
          %v3961 = vmul.f32 %v3837, %v3960
          %v3962 = vrcp.pop %v3934
          %v3963 = vmul.f32 %v3838, %v3962
          %v3964 = vrcp.pop %v3935
          %v3965 = vmul.f32 %v3839, %v3964
          %v3966 = vrcp.pop %v3936
          %v3967 = vmul.f32 %v3840, %v3966
          %v3968 = vrcp.pop %v3937
          %v3969 = vmul.f32 %v3841, %v3968
          %v3970 = vsub.f32 1.0, %v3939
          %v3971 = vsub.f32 1.0, %v3941
          %v3972 = vsub.f32 1.0, %v3943
          %v3973 = vsub.f32 1.0, %v3945
          %v3974 = vsub.f32 1.0, %v3947
          %v3975 = vsub.f32 1.0, %v3949
          %v3976 = vsub.f32 1.0, %v3951
          %v3977 = vsub.f32 1.0, %v3953
          %v3978 = vsub.f32 1.0, %v3955
          %v3979 = vsub.f32 1.0, %v3957
          %v3980 = vsub.f32 1.0, %v3959
          %v3981 = vsub.f32 1.0, %v3961
          %v3982 = vsub.f32 1.0, %v3963
          %v3983 = vsub.f32 1.0, %v3965
          %v3984 = vsub.f32 1.0, %v3967
          %v3985 = vsub.f32 1.0, %v3969
          %v3986 = vadd.f32 %v3826, %v558
          %v3987 = vadd.f32 %v3827, %v559
          %v3988 = vadd.f32 %v3828, %v560
          %v3989 = vadd.f32 %v3829, %v561
          %v3990 = vadd.f32 %v3830, %v562
          %v3991 = vadd.f32 %v3831, %v563
          %v3992 = vadd.f32 %v3832, %v564
          %v3993 = vadd.f32 %v3833, %v565
          %v3994 = vadd.f32 %v3834, %v566
          %v3995 = vadd.f32 %v3835, %v567
          %v3996 = vadd.f32 %v3836, %v568
          %v3997 = vadd.f32 %v3837, %v569
          %v3998 = vadd.f32 %v3838, %v570
          %v3999 = vadd.f32 %v3839, %v571
          %v4000 = vadd.f32 %v3840, %v572
          %v4001 = vadd.f32 %v3841, %v573
          %v4002 = vsub.f32 %v3922, 1.0
          %v4003 = vsub.f32 %v3923, 1.0
          %v4004 = vsub.f32 %v3924, 1.0
          %v4005 = vsub.f32 %v3925, 1.0
          %v4006 = vsub.f32 %v3926, 1.0
          %v4007 = vsub.f32 %v3927, 1.0
          %v4008 = vsub.f32 %v3928, 1.0
          %v4009 = vsub.f32 %v3929, 1.0
          %v4010 = vsub.f32 %v3930, 1.0
          %v4011 = vsub.f32 %v3931, 1.0
          %v4012 = vsub.f32 %v3932, 1.0
          %v4013 = vsub.f32 %v3933, 1.0
          %v4014 = vsub.f32 %v3934, 1.0
          %v4015 = vsub.f32 %v3935, 1.0
          %v4016 = vsub.f32 %v3936, 1.0
          %v4017 = vsub.f32 %v3937, 1.0
          %v4018 = vadd.f32 %v4002, %v558
          %v4019 = vadd.f32 %v4003, %v559
          %v4020 = vadd.f32 %v4004, %v560
          %v4021 = vadd.f32 %v4005, %v561
          %v4022 = vadd.f32 %v4006, %v562
          %v4023 = vadd.f32 %v4007, %v563
          %v4024 = vadd.f32 %v4008, %v564
          %v4025 = vadd.f32 %v4009, %v565
          %v4026 = vadd.f32 %v4010, %v566
          %v4027 = vadd.f32 %v4011, %v567
          %v4028 = vadd.f32 %v4012, %v568
          %v4029 = vadd.f32 %v4013, %v569
          %v4030 = vadd.f32 %v4014, %v570
          %v4031 = vadd.f32 %v4015, %v571
          %v4032 = vadd.f32 %v4016, %v572
          %v4033 = vadd.f32 %v4017, %v573
          %v4034 = vmax.f32 %v4018, 1.0
          %v4035 = vmax.f32 %v4019, 1.0
          %v4036 = vmax.f32 %v4020, 1.0
          %v4037 = vmax.f32 %v4021, 1.0
          %v4038 = vmax.f32 %v4022, 1.0
          %v4039 = vmax.f32 %v4023, 1.0
          %v4040 = vmax.f32 %v4024, 1.0
          %v4041 = vmax.f32 %v4025, 1.0
          %v4042 = vmax.f32 %v4026, 1.0
          %v4043 = vmax.f32 %v4027, 1.0
          %v4044 = vmax.f32 %v4028, 1.0
          %v4045 = vmax.f32 %v4029, 1.0
          %v4046 = vmax.f32 %v4030, 1.0
          %v4047 = vmax.f32 %v4031, 1.0
          %v4048 = vmax.f32 %v4032, 1.0
          %v4049 = vmax.f32 %v4033, 1.0
          %v4050 = vrcp.pop %v4034
          %v4051 = vmul.f32 %v3986, %v4050
          %v4052 = vrcp.pop %v4035
          %v4053 = vmul.f32 %v3987, %v4052
          %v4054 = vrcp.pop %v4036
          %v4055 = vmul.f32 %v3988, %v4054
          %v4056 = vrcp.pop %v4037
          %v4057 = vmul.f32 %v3989, %v4056
          %v4058 = vrcp.pop %v4038
          %v4059 = vmul.f32 %v3990, %v4058
          %v4060 = vrcp.pop %v4039
          %v4061 = vmul.f32 %v3991, %v4060
          %v4062 = vrcp.pop %v4040
          %v4063 = vmul.f32 %v3992, %v4062
          %v4064 = vrcp.pop %v4041
          %v4065 = vmul.f32 %v3993, %v4064
          %v4066 = vrcp.pop %v4042
          %v4067 = vmul.f32 %v3994, %v4066
          %v4068 = vrcp.pop %v4043
          %v4069 = vmul.f32 %v3995, %v4068
          %v4070 = vrcp.pop %v4044
          %v4071 = vmul.f32 %v3996, %v4070
          %v4072 = vrcp.pop %v4045
          %v4073 = vmul.f32 %v3997, %v4072
          %v4074 = vrcp.pop %v4046
          %v4075 = vmul.f32 %v3998, %v4074
          %v4076 = vrcp.pop %v4047
          %v4077 = vmul.f32 %v3999, %v4076
          %v4078 = vrcp.pop %v4048
          %v4079 = vmul.f32 %v4000, %v4078
          %v4080 = vrcp.pop %v4049
          %v4081 = vmul.f32 %v4001, %v4080
          %v4082 = vsub.f32 1.0, %v4051
          %v4083 = vsub.f32 1.0, %v4053
          %v4084 = vsub.f32 1.0, %v4055
          %v4085 = vsub.f32 1.0, %v4057
          %v4086 = vsub.f32 1.0, %v4059
          %v4087 = vsub.f32 1.0, %v4061
          %v4088 = vsub.f32 1.0, %v4063
          %v4089 = vsub.f32 1.0, %v4065
          %v4090 = vsub.f32 1.0, %v4067
          %v4091 = vsub.f32 1.0, %v4069
          %v4092 = vsub.f32 1.0, %v4071
          %v4093 = vsub.f32 1.0, %v4073
          %v4094 = vsub.f32 1.0, %v4075
          %v4095 = vsub.f32 1.0, %v4077
          %v4096 = vsub.f32 1.0, %v4079
          %v4097 = vsub.f32 1.0, %v4081
          %v4098 = vsub.f32 %v3970, %v4082
          %v4099 = vsub.f32 %v3971, %v4083
          %v4100 = vsub.f32 %v3972, %v4084
          %v4101 = vsub.f32 %v3973, %v4085
          %v4102 = vsub.f32 %v3974, %v4086
          %v4103 = vsub.f32 %v3975, %v4087
          %v4104 = vsub.f32 %v3976, %v4088
          %v4105 = vsub.f32 %v3977, %v4089
          %v4106 = vsub.f32 %v3978, %v4090
          %v4107 = vsub.f32 %v3979, %v4091
          %v4108 = vsub.f32 %v3980, %v4092
          %v4109 = vsub.f32 %v3981, %v4093
          %v4110 = vsub.f32 %v3982, %v4094
          %v4111 = vsub.f32 %v3983, %v4095
          %v4112 = vsub.f32 %v3984, %v4096
          %v4113 = vsub.f32 %v3985, %v4097
          %v4114 = vmul.f32 %v590, %v4098
          %v4115 = vmul.f32 %v591, %v4099
          %v4116 = vmul.f32 %v592, %v4100
          %v4117 = vmul.f32 %v593, %v4101
          %v4118 = vmul.f32 %v594, %v4102
          %v4119 = vmul.f32 %v595, %v4103
          %v4120 = vmul.f32 %v596, %v4104
          %v4121 = vmul.f32 %v597, %v4105
          %v4122 = vmul.f32 %v598, %v4106
          %v4123 = vmul.f32 %v599, %v4107
          %v4124 = vmul.f32 %v600, %v4108
          %v4125 = vmul.f32 %v601, %v4109
          %v4126 = vmul.f32 %v602, %v4110
          %v4127 = vmul.f32 %v603, %v4111
          %v4128 = vmul.f32 %v604, %v4112
          %v4129 = vmul.f32 %v605, %v4113
          %vm4130 = vcmask 7168
          %v4131 = vsel %vm4130, %v4114, 0.0
          %v4132 = vsel %vm4130, %v4115, 0.0
          %v4133 = vadd.f32 %v4131, %v4132
          %v4134 = vsel %vm4130, %v4116, 0.0
          %v4135 = vadd.f32 %v4133, %v4134
          %v4136 = vsel %vm4130, %v4117, 0.0
          %v4137 = vadd.f32 %v4135, %v4136
          %v4138 = vsel %vm4130, %v4118, 0.0
          %v4139 = vadd.f32 %v4137, %v4138
          %v4140 = vsel %vm4130, %v4119, 0.0
          %v4141 = vadd.f32 %v4139, %v4140
          %v4142 = vsel %vm4130, %v4120, 0.0
          %v4143 = vadd.f32 %v4141, %v4142
          %v4144 = vsel %vm4130, %v4121, 0.0
          %v4145 = vadd.f32 %v4143, %v4144
          %v4146 = vsel %vm4130, %v4122, 0.0
          %v4147 = vadd.f32 %v4145, %v4146
          %v4148 = vsel %vm4130, %v4123, 0.0
          %v4149 = vadd.f32 %v4147, %v4148
          %v4150 = vsel %vm4130, %v4124, 0.0
          %v4151 = vadd.f32 %v4149, %v4150
          %v4152 = vsel %vm4130, %v4125, 0.0
          %v4153 = vadd.f32 %v4151, %v4152
          %v4154 = vsel %vm4130, %v4126, 0.0
          %v4155 = vadd.f32 %v4153, %v4154
          %v4156 = vsel %vm4130, %v4127, 0.0
          %v4157 = vadd.f32 %v4155, %v4156
          %v4158 = vsel %vm4130, %v4128, 0.0
          %v4159 = vadd.f32 %v4157, %v4158
          %v4160 = vsel %vm4130, %v4129, 0.0
          %v4161 = vadd.f32 %v4159, %v4160
          %v4162 = vrot.slane %v4161, 4
          %v4163 = vadd.f32 %v4161, %v4162
          %v4164 = vrot.slane %v4163, 2
          %v4165 = vadd.f32 %v4163, %v4164
          %v4166 = vrot.slane %v4165, 1
          %v4167 = vadd.f32 %v4165, %v4166
          %vm4168 = vcmp.eq.s32.totalorder %v438, 0
          %vm4169 = vmand %vm4168, %vm894
          %4171 = vset.pattern.permute.xlu0 0
          %4172 = vperm.xlu0 %4171, %v4167
          %v4173 = vpop.permute.xlu0 %4172
          %v4175 = vsel %vm4169, %v4173, 0.0
          %v4176 = vadd.f32 %v4175, 0.0
          %4193 = vrot.lane.b32.xlu0 %v1345, 1
          %v4194 = vpop.permute.xlu0 %4193
          %4195 = vrot.lane.b32.xlu0 %v1346, 1
          %v4196 = vpop.permute.xlu0 %4195
          %4197 = vrot.lane.b32.xlu0 %v1347, 1
          %v4198 = vpop.permute.xlu0 %4197
          %4199 = vrot.lane.b32.xlu0 %v1348, 1
          %v4200 = vpop.permute.xlu0 %4199
          %4201 = vrot.lane.b32.xlu0 %v1349, 1
          %v4202 = vpop.permute.xlu0 %4201
          %4203 = vrot.lane.b32.xlu0 %v1350, 1
          %v4204 = vpop.permute.xlu0 %4203
          %4205 = vrot.lane.b32.xlu0 %v1351, 1
          %v4206 = vpop.permute.xlu0 %4205
          %4207 = vrot.lane.b32.xlu0 %v1352, 1
          %v4208 = vpop.permute.xlu0 %4207
          %4209 = vrot.lane.b32.xlu0 %v1353, 1
          %v4210 = vpop.permute.xlu0 %4209
          %4211 = vrot.lane.b32.xlu0 %v1354, 1
          %v4212 = vpop.permute.xlu0 %4211
          %4213 = vrot.lane.b32.xlu0 %v1355, 1
          %v4214 = vpop.permute.xlu0 %4213
          %4215 = vrot.lane.b32.xlu0 %v1356, 1
          %v4216 = vpop.permute.xlu0 %4215
          %4217 = vrot.lane.b32.xlu0 %v1357, 1
          %v4218 = vpop.permute.xlu0 %4217
          %4219 = vrot.lane.b32.xlu0 %v1358, 1
          %v4220 = vpop.permute.xlu0 %4219
          %4221 = vrot.lane.b32.xlu0 %v1359, 1
          %v4222 = vpop.permute.xlu0 %4221
          %4223 = vrot.lane.b32.xlu0 %v1360, 1
          %v4224 = vpop.permute.xlu0 %4223
          %v4241 = vadd.f32 %v3826, %v4194
          %v4242 = vadd.f32 %v3827, %v4196
          %v4243 = vadd.f32 %v3828, %v4198
          %v4244 = vadd.f32 %v3829, %v4200
          %v4245 = vadd.f32 %v3830, %v4202
          %v4246 = vadd.f32 %v3831, %v4204
          %v4247 = vadd.f32 %v3832, %v4206
          %v4248 = vadd.f32 %v3833, %v4208
          %v4249 = vadd.f32 %v3834, %v4210
          %v4250 = vadd.f32 %v3835, %v4212
          %v4251 = vadd.f32 %v3836, %v4214
          %v4252 = vadd.f32 %v3837, %v4216
          %v4253 = vadd.f32 %v3838, %v4218
          %v4254 = vadd.f32 %v3839, %v4220
          %v4255 = vadd.f32 %v3840, %v4222
          %v4256 = vadd.f32 %v3841, %v4224
          %v4257 = vadd.f32 %v4002, %v4194
          %v4258 = vadd.f32 %v4003, %v4196
          %v4259 = vadd.f32 %v4004, %v4198
          %v4260 = vadd.f32 %v4005, %v4200
          %v4261 = vadd.f32 %v4006, %v4202
          %v4262 = vadd.f32 %v4007, %v4204
          %v4263 = vadd.f32 %v4008, %v4206
          %v4264 = vadd.f32 %v4009, %v4208
          %v4265 = vadd.f32 %v4010, %v4210
          %v4266 = vadd.f32 %v4011, %v4212
          %v4267 = vadd.f32 %v4012, %v4214
          %v4268 = vadd.f32 %v4013, %v4216
          %v4269 = vadd.f32 %v4014, %v4218
          %v4270 = vadd.f32 %v4015, %v4220
          %v4271 = vadd.f32 %v4016, %v4222
          %v4272 = vadd.f32 %v4017, %v4224
          %v4273 = vmax.f32 %v4257, 1.0
          %v4274 = vmax.f32 %v4258, 1.0
          %v4275 = vmax.f32 %v4259, 1.0
          %v4276 = vmax.f32 %v4260, 1.0
          %v4277 = vmax.f32 %v4261, 1.0
          %v4278 = vmax.f32 %v4262, 1.0
          %v4279 = vmax.f32 %v4263, 1.0
          %v4280 = vmax.f32 %v4264, 1.0
          %v4281 = vmax.f32 %v4265, 1.0
          %v4282 = vmax.f32 %v4266, 1.0
          %v4283 = vmax.f32 %v4267, 1.0
          %v4284 = vmax.f32 %v4268, 1.0
          %v4285 = vmax.f32 %v4269, 1.0
          %v4286 = vmax.f32 %v4270, 1.0
          %v4287 = vmax.f32 %v4271, 1.0
          %v4288 = vmax.f32 %v4272, 1.0
          %v4289 = vrcp.pop %v4273
          %v4290 = vmul.f32 %v4241, %v4289
          %v4291 = vrcp.pop %v4274
          %v4292 = vmul.f32 %v4242, %v4291
          %v4293 = vrcp.pop %v4275
          %v4294 = vmul.f32 %v4243, %v4293
          %v4295 = vrcp.pop %v4276
          %v4296 = vmul.f32 %v4244, %v4295
          %v4297 = vrcp.pop %v4277
          %v4298 = vmul.f32 %v4245, %v4297
          %v4299 = vrcp.pop %v4278
          %v4300 = vmul.f32 %v4246, %v4299
          %v4301 = vrcp.pop %v4279
          %v4302 = vmul.f32 %v4247, %v4301
          %v4303 = vrcp.pop %v4280
          %v4304 = vmul.f32 %v4248, %v4303
          %v4305 = vrcp.pop %v4281
          %v4306 = vmul.f32 %v4249, %v4305
          %v4307 = vrcp.pop %v4282
          %v4308 = vmul.f32 %v4250, %v4307
          %v4309 = vrcp.pop %v4283
          %v4310 = vmul.f32 %v4251, %v4309
          %v4311 = vrcp.pop %v4284
          %v4312 = vmul.f32 %v4252, %v4311
          %v4313 = vrcp.pop %v4285
          %v4314 = vmul.f32 %v4253, %v4313
          %v4315 = vrcp.pop %v4286
          %v4316 = vmul.f32 %v4254, %v4315
          %v4317 = vrcp.pop %v4287
          %v4318 = vmul.f32 %v4255, %v4317
          %v4319 = vrcp.pop %v4288
          %v4320 = vmul.f32 %v4256, %v4319
          %v4321 = vsub.f32 1.0, %v4290
          %v4322 = vsub.f32 1.0, %v4292
          %v4323 = vsub.f32 1.0, %v4294
          %v4324 = vsub.f32 1.0, %v4296
          %v4325 = vsub.f32 1.0, %v4298
          %v4326 = vsub.f32 1.0, %v4300
          %v4327 = vsub.f32 1.0, %v4302
          %v4328 = vsub.f32 1.0, %v4304
          %v4329 = vsub.f32 1.0, %v4306
          %v4330 = vsub.f32 1.0, %v4308
          %v4331 = vsub.f32 1.0, %v4310
          %v4332 = vsub.f32 1.0, %v4312
          %v4333 = vsub.f32 1.0, %v4314
          %v4334 = vsub.f32 1.0, %v4316
          %v4335 = vsub.f32 1.0, %v4318
          %v4336 = vsub.f32 1.0, %v4320
          %v4337 = vsub.f32 %v3970, %v4321
          %v4338 = vsub.f32 %v3971, %v4322
          %v4339 = vsub.f32 %v3972, %v4323
          %v4340 = vsub.f32 %v3973, %v4324
          %v4341 = vsub.f32 %v3974, %v4325
          %v4342 = vsub.f32 %v3975, %v4326
          %v4343 = vsub.f32 %v3976, %v4327
          %v4344 = vsub.f32 %v3977, %v4328
          %v4345 = vsub.f32 %v3978, %v4329
          %v4346 = vsub.f32 %v3979, %v4330
          %v4347 = vsub.f32 %v3980, %v4331
          %v4348 = vsub.f32 %v3981, %v4332
          %v4349 = vsub.f32 %v3982, %v4333
          %v4350 = vsub.f32 %v3983, %v4334
          %v4351 = vsub.f32 %v3984, %v4335
          %v4352 = vsub.f32 %v3985, %v4336
          %4369 = vrot.lane.b32.xlu0 %v4337, 127
          %v4370 = vpop.permute.xlu0 %4369
          %4371 = vrot.lane.b32.xlu0 %v4338, 127
          %v4372 = vpop.permute.xlu0 %4371
          %4373 = vrot.lane.b32.xlu0 %v4339, 127
          %v4374 = vpop.permute.xlu0 %4373
          %4375 = vrot.lane.b32.xlu0 %v4340, 127
          %v4376 = vpop.permute.xlu0 %4375
          %4377 = vrot.lane.b32.xlu0 %v4341, 127
          %v4378 = vpop.permute.xlu0 %4377
          %4379 = vrot.lane.b32.xlu0 %v4342, 127
          %v4380 = vpop.permute.xlu0 %4379
          %4381 = vrot.lane.b32.xlu0 %v4343, 127
          %v4382 = vpop.permute.xlu0 %4381
          %4383 = vrot.lane.b32.xlu0 %v4344, 127
          %v4384 = vpop.permute.xlu0 %4383
          %4385 = vrot.lane.b32.xlu0 %v4345, 127
          %v4386 = vpop.permute.xlu0 %4385
          %4387 = vrot.lane.b32.xlu0 %v4346, 127
          %v4388 = vpop.permute.xlu0 %4387
          %4389 = vrot.lane.b32.xlu0 %v4347, 127
          %v4390 = vpop.permute.xlu0 %4389
          %4391 = vrot.lane.b32.xlu0 %v4348, 127
          %v4392 = vpop.permute.xlu0 %4391
          %4393 = vrot.lane.b32.xlu0 %v4349, 127
          %v4394 = vpop.permute.xlu0 %4393
          %4395 = vrot.lane.b32.xlu0 %v4350, 127
          %v4396 = vpop.permute.xlu0 %4395
          %4397 = vrot.lane.b32.xlu0 %v4351, 127
          %v4398 = vpop.permute.xlu0 %4397
          %4399 = vrot.lane.b32.xlu0 %v4352, 127
          %v4400 = vpop.permute.xlu0 %4399
          %v4417 = vmul.f32 %v1441, %v4370
          %v4418 = vmul.f32 %v1442, %v4372
          %v4419 = vmul.f32 %v1443, %v4374
          %v4420 = vmul.f32 %v1444, %v4376
          %v4421 = vmul.f32 %v1445, %v4378
          %v4422 = vmul.f32 %v1446, %v4380
          %v4423 = vmul.f32 %v1447, %v4382
          %v4424 = vmul.f32 %v1448, %v4384
          %v4425 = vmul.f32 %v1449, %v4386
          %v4426 = vmul.f32 %v1450, %v4388
          %v4427 = vmul.f32 %v1451, %v4390
          %v4428 = vmul.f32 %v1452, %v4392
          %v4429 = vmul.f32 %v1453, %v4394
          %v4430 = vmul.f32 %v1454, %v4396
          %v4431 = vmul.f32 %v1455, %v4398
          %v4432 = vmul.f32 %v1456, %v4400
          %v4433 = vsel %vm4130, %v4417, 0.0
          %v4434 = vsel %vm4130, %v4418, 0.0
          %v4435 = vadd.f32 %v4433, %v4434
          %v4436 = vsel %vm4130, %v4419, 0.0
          %v4437 = vadd.f32 %v4435, %v4436
          %v4438 = vsel %vm4130, %v4420, 0.0
          %v4439 = vadd.f32 %v4437, %v4438
          %v4440 = vsel %vm4130, %v4421, 0.0
          %v4441 = vadd.f32 %v4439, %v4440
          %v4442 = vsel %vm4130, %v4422, 0.0
          %v4443 = vadd.f32 %v4441, %v4442
          %v4444 = vsel %vm4130, %v4423, 0.0
          %v4445 = vadd.f32 %v4443, %v4444
          %v4446 = vsel %vm4130, %v4424, 0.0
          %v4447 = vadd.f32 %v4445, %v4446
          %v4448 = vsel %vm4130, %v4425, 0.0
          %v4449 = vadd.f32 %v4447, %v4448
          %v4450 = vsel %vm4130, %v4426, 0.0
          %v4451 = vadd.f32 %v4449, %v4450
          %v4452 = vsel %vm4130, %v4427, 0.0
          %v4453 = vadd.f32 %v4451, %v4452
          %v4454 = vsel %vm4130, %v4428, 0.0
          %v4455 = vadd.f32 %v4453, %v4454
          %v4456 = vsel %vm4130, %v4429, 0.0
          %v4457 = vadd.f32 %v4455, %v4456
          %v4458 = vsel %vm4130, %v4430, 0.0
          %v4459 = vadd.f32 %v4457, %v4458
          %v4460 = vsel %vm4130, %v4431, 0.0
          %v4461 = vadd.f32 %v4459, %v4460
          %v4462 = vsel %vm4130, %v4432, 0.0
          %v4463 = vadd.f32 %v4461, %v4462
          %v4464 = vrot.slane %v4463, 4
          %v4465 = vadd.f32 %v4463, %v4464
          %v4466 = vrot.slane %v4465, 2
          %v4467 = vadd.f32 %v4465, %v4466
          %v4468 = vrot.slane %v4467, 1
          %v4469 = vadd.f32 %v4467, %v4468
          %vm4470 = vmand %vm4168, %vm1738
          %4472 = vset.pattern.permute.xlu0 0
          %4473 = vperm.xlu0 %4472, %v4469
          %v4474 = vpop.permute.xlu0 %4473
          %v4476 = vsel %vm4470, %v4474, 0.0
          %v4477 = vadd.f32 %v4176, %v4476
          %4494 = vrot.lane.b32.xlu0 %v2189, 2
          %v4495 = vpop.permute.xlu0 %4494
          %4496 = vrot.lane.b32.xlu0 %v2190, 2
          %v4497 = vpop.permute.xlu0 %4496
          %4498 = vrot.lane.b32.xlu0 %v2191, 2
          %v4499 = vpop.permute.xlu0 %4498
          %4500 = vrot.lane.b32.xlu0 %v2192, 2
          %v4501 = vpop.permute.xlu0 %4500
          %4502 = vrot.lane.b32.xlu0 %v2193, 2
          %v4503 = vpop.permute.xlu0 %4502
          %4504 = vrot.lane.b32.xlu0 %v2194, 2
          %v4505 = vpop.permute.xlu0 %4504
          %4506 = vrot.lane.b32.xlu0 %v2195, 2
          %v4507 = vpop.permute.xlu0 %4506
          %4508 = vrot.lane.b32.xlu0 %v2196, 2
          %v4509 = vpop.permute.xlu0 %4508
          %4510 = vrot.lane.b32.xlu0 %v2197, 2
          %v4511 = vpop.permute.xlu0 %4510
          %4512 = vrot.lane.b32.xlu0 %v2198, 2
          %v4513 = vpop.permute.xlu0 %4512
          %4514 = vrot.lane.b32.xlu0 %v2199, 2
          %v4515 = vpop.permute.xlu0 %4514
          %4516 = vrot.lane.b32.xlu0 %v2200, 2
          %v4517 = vpop.permute.xlu0 %4516
          %4518 = vrot.lane.b32.xlu0 %v2201, 2
          %v4519 = vpop.permute.xlu0 %4518
          %4520 = vrot.lane.b32.xlu0 %v2202, 2
          %v4521 = vpop.permute.xlu0 %4520
          %4522 = vrot.lane.b32.xlu0 %v2203, 2
          %v4523 = vpop.permute.xlu0 %4522
          %4524 = vrot.lane.b32.xlu0 %v2204, 2
          %v4525 = vpop.permute.xlu0 %4524
          %v4542 = vadd.f32 %v3826, %v4495
          %v4543 = vadd.f32 %v3827, %v4497
          %v4544 = vadd.f32 %v3828, %v4499
          %v4545 = vadd.f32 %v3829, %v4501
          %v4546 = vadd.f32 %v3830, %v4503
          %v4547 = vadd.f32 %v3831, %v4505
          %v4548 = vadd.f32 %v3832, %v4507
          %v4549 = vadd.f32 %v3833, %v4509
          %v4550 = vadd.f32 %v3834, %v4511
          %v4551 = vadd.f32 %v3835, %v4513
          %v4552 = vadd.f32 %v3836, %v4515
          %v4553 = vadd.f32 %v3837, %v4517
          %v4554 = vadd.f32 %v3838, %v4519
          %v4555 = vadd.f32 %v3839, %v4521
          %v4556 = vadd.f32 %v3840, %v4523
          %v4557 = vadd.f32 %v3841, %v4525
          %v4558 = vadd.f32 %v4002, %v4495
          %v4559 = vadd.f32 %v4003, %v4497
          %v4560 = vadd.f32 %v4004, %v4499
          %v4561 = vadd.f32 %v4005, %v4501
          %v4562 = vadd.f32 %v4006, %v4503
          %v4563 = vadd.f32 %v4007, %v4505
          %v4564 = vadd.f32 %v4008, %v4507
          %v4565 = vadd.f32 %v4009, %v4509
          %v4566 = vadd.f32 %v4010, %v4511
          %v4567 = vadd.f32 %v4011, %v4513
          %v4568 = vadd.f32 %v4012, %v4515
          %v4569 = vadd.f32 %v4013, %v4517
          %v4570 = vadd.f32 %v4014, %v4519
          %v4571 = vadd.f32 %v4015, %v4521
          %v4572 = vadd.f32 %v4016, %v4523
          %v4573 = vadd.f32 %v4017, %v4525
          %v4574 = vmax.f32 %v4558, 1.0
          %v4575 = vmax.f32 %v4559, 1.0
          %v4576 = vmax.f32 %v4560, 1.0
          %v4577 = vmax.f32 %v4561, 1.0
          %v4578 = vmax.f32 %v4562, 1.0
          %v4579 = vmax.f32 %v4563, 1.0
          %v4580 = vmax.f32 %v4564, 1.0
          %v4581 = vmax.f32 %v4565, 1.0
          %v4582 = vmax.f32 %v4566, 1.0
          %v4583 = vmax.f32 %v4567, 1.0
          %v4584 = vmax.f32 %v4568, 1.0
          %v4585 = vmax.f32 %v4569, 1.0
          %v4586 = vmax.f32 %v4570, 1.0
          %v4587 = vmax.f32 %v4571, 1.0
          %v4588 = vmax.f32 %v4572, 1.0
          %v4589 = vmax.f32 %v4573, 1.0
          %v4590 = vrcp.pop %v4574
          %v4591 = vmul.f32 %v4542, %v4590
          %v4592 = vrcp.pop %v4575
          %v4593 = vmul.f32 %v4543, %v4592
          %v4594 = vrcp.pop %v4576
          %v4595 = vmul.f32 %v4544, %v4594
          %v4596 = vrcp.pop %v4577
          %v4597 = vmul.f32 %v4545, %v4596
          %v4598 = vrcp.pop %v4578
          %v4599 = vmul.f32 %v4546, %v4598
          %v4600 = vrcp.pop %v4579
          %v4601 = vmul.f32 %v4547, %v4600
          %v4602 = vrcp.pop %v4580
          %v4603 = vmul.f32 %v4548, %v4602
          %v4604 = vrcp.pop %v4581
          %v4605 = vmul.f32 %v4549, %v4604
          %v4606 = vrcp.pop %v4582
          %v4607 = vmul.f32 %v4550, %v4606
          %v4608 = vrcp.pop %v4583
          %v4609 = vmul.f32 %v4551, %v4608
          %v4610 = vrcp.pop %v4584
          %v4611 = vmul.f32 %v4552, %v4610
          %v4612 = vrcp.pop %v4585
          %v4613 = vmul.f32 %v4553, %v4612
          %v4614 = vrcp.pop %v4586
          %v4615 = vmul.f32 %v4554, %v4614
          %v4616 = vrcp.pop %v4587
          %v4617 = vmul.f32 %v4555, %v4616
          %v4618 = vrcp.pop %v4588
          %v4619 = vmul.f32 %v4556, %v4618
          %v4620 = vrcp.pop %v4589
          %v4621 = vmul.f32 %v4557, %v4620
          %v4622 = vsub.f32 1.0, %v4591
          %v4623 = vsub.f32 1.0, %v4593
          %v4624 = vsub.f32 1.0, %v4595
          %v4625 = vsub.f32 1.0, %v4597
          %v4626 = vsub.f32 1.0, %v4599
          %v4627 = vsub.f32 1.0, %v4601
          %v4628 = vsub.f32 1.0, %v4603
          %v4629 = vsub.f32 1.0, %v4605
          %v4630 = vsub.f32 1.0, %v4607
          %v4631 = vsub.f32 1.0, %v4609
          %v4632 = vsub.f32 1.0, %v4611
          %v4633 = vsub.f32 1.0, %v4613
          %v4634 = vsub.f32 1.0, %v4615
          %v4635 = vsub.f32 1.0, %v4617
          %v4636 = vsub.f32 1.0, %v4619
          %v4637 = vsub.f32 1.0, %v4621
          %v4638 = vsub.f32 %v3970, %v4622
          %v4639 = vsub.f32 %v3971, %v4623
          %v4640 = vsub.f32 %v3972, %v4624
          %v4641 = vsub.f32 %v3973, %v4625
          %v4642 = vsub.f32 %v3974, %v4626
          %v4643 = vsub.f32 %v3975, %v4627
          %v4644 = vsub.f32 %v3976, %v4628
          %v4645 = vsub.f32 %v3977, %v4629
          %v4646 = vsub.f32 %v3978, %v4630
          %v4647 = vsub.f32 %v3979, %v4631
          %v4648 = vsub.f32 %v3980, %v4632
          %v4649 = vsub.f32 %v3981, %v4633
          %v4650 = vsub.f32 %v3982, %v4634
          %v4651 = vsub.f32 %v3983, %v4635
          %v4652 = vsub.f32 %v3984, %v4636
          %v4653 = vsub.f32 %v3985, %v4637
          %4670 = vrot.lane.b32.xlu0 %v4638, 126
          %v4671 = vpop.permute.xlu0 %4670
          %4672 = vrot.lane.b32.xlu0 %v4639, 126
          %v4673 = vpop.permute.xlu0 %4672
          %4674 = vrot.lane.b32.xlu0 %v4640, 126
          %v4675 = vpop.permute.xlu0 %4674
          %4676 = vrot.lane.b32.xlu0 %v4641, 126
          %v4677 = vpop.permute.xlu0 %4676
          %4678 = vrot.lane.b32.xlu0 %v4642, 126
          %v4679 = vpop.permute.xlu0 %4678
          %4680 = vrot.lane.b32.xlu0 %v4643, 126
          %v4681 = vpop.permute.xlu0 %4680
          %4682 = vrot.lane.b32.xlu0 %v4644, 126
          %v4683 = vpop.permute.xlu0 %4682
          %4684 = vrot.lane.b32.xlu0 %v4645, 126
          %v4685 = vpop.permute.xlu0 %4684
          %4686 = vrot.lane.b32.xlu0 %v4646, 126
          %v4687 = vpop.permute.xlu0 %4686
          %4688 = vrot.lane.b32.xlu0 %v4647, 126
          %v4689 = vpop.permute.xlu0 %4688
          %4690 = vrot.lane.b32.xlu0 %v4648, 126
          %v4691 = vpop.permute.xlu0 %4690
          %4692 = vrot.lane.b32.xlu0 %v4649, 126
          %v4693 = vpop.permute.xlu0 %4692
          %4694 = vrot.lane.b32.xlu0 %v4650, 126
          %v4695 = vpop.permute.xlu0 %4694
          %4696 = vrot.lane.b32.xlu0 %v4651, 126
          %v4697 = vpop.permute.xlu0 %4696
          %4698 = vrot.lane.b32.xlu0 %v4652, 126
          %v4699 = vpop.permute.xlu0 %4698
          %4700 = vrot.lane.b32.xlu0 %v4653, 126
          %v4701 = vpop.permute.xlu0 %4700
          %v4718 = vmul.f32 %v2269, %v4671
          %v4719 = vmul.f32 %v2270, %v4673
          %v4720 = vmul.f32 %v2271, %v4675
          %v4721 = vmul.f32 %v2272, %v4677
          %v4722 = vmul.f32 %v2273, %v4679
          %v4723 = vmul.f32 %v2274, %v4681
          %v4724 = vmul.f32 %v2275, %v4683
          %v4725 = vmul.f32 %v2276, %v4685
          %v4726 = vmul.f32 %v2277, %v4687
          %v4727 = vmul.f32 %v2278, %v4689
          %v4728 = vmul.f32 %v2279, %v4691
          %v4729 = vmul.f32 %v2280, %v4693
          %v4730 = vmul.f32 %v2281, %v4695
          %v4731 = vmul.f32 %v2282, %v4697
          %v4732 = vmul.f32 %v2283, %v4699
          %v4733 = vmul.f32 %v2284, %v4701
          %v4734 = vsel %vm4130, %v4718, 0.0
          %v4735 = vsel %vm4130, %v4719, 0.0
          %v4736 = vadd.f32 %v4734, %v4735
          %v4737 = vsel %vm4130, %v4720, 0.0
          %v4738 = vadd.f32 %v4736, %v4737
          %v4739 = vsel %vm4130, %v4721, 0.0
          %v4740 = vadd.f32 %v4738, %v4739
          %v4741 = vsel %vm4130, %v4722, 0.0
          %v4742 = vadd.f32 %v4740, %v4741
          %v4743 = vsel %vm4130, %v4723, 0.0
          %v4744 = vadd.f32 %v4742, %v4743
          %v4745 = vsel %vm4130, %v4724, 0.0
          %v4746 = vadd.f32 %v4744, %v4745
          %v4747 = vsel %vm4130, %v4725, 0.0
          %v4748 = vadd.f32 %v4746, %v4747
          %v4749 = vsel %vm4130, %v4726, 0.0
          %v4750 = vadd.f32 %v4748, %v4749
          %v4751 = vsel %vm4130, %v4727, 0.0
          %v4752 = vadd.f32 %v4750, %v4751
          %v4753 = vsel %vm4130, %v4728, 0.0
          %v4754 = vadd.f32 %v4752, %v4753
          %v4755 = vsel %vm4130, %v4729, 0.0
          %v4756 = vadd.f32 %v4754, %v4755
          %v4757 = vsel %vm4130, %v4730, 0.0
          %v4758 = vadd.f32 %v4756, %v4757
          %v4759 = vsel %vm4130, %v4731, 0.0
          %v4760 = vadd.f32 %v4758, %v4759
          %v4761 = vsel %vm4130, %v4732, 0.0
          %v4762 = vadd.f32 %v4760, %v4761
          %v4763 = vsel %vm4130, %v4733, 0.0
          %v4764 = vadd.f32 %v4762, %v4763
          %v4765 = vrot.slane %v4764, 4
          %v4766 = vadd.f32 %v4764, %v4765
          %v4767 = vrot.slane %v4766, 2
          %v4768 = vadd.f32 %v4766, %v4767
          %v4769 = vrot.slane %v4768, 1
          %v4770 = vadd.f32 %v4768, %v4769
          %vm4771 = vmand %vm4168, %vm2559
          %4773 = vset.pattern.permute.xlu0 0
          %4774 = vperm.xlu0 %4773, %v4770
          %v4775 = vpop.permute.xlu0 %4774
          %v4777 = vsel %vm4771, %v4775, 0.0
          %v4778 = vadd.f32 %v4477, %v4777
          %4795 = vrot.lane.b32.xlu0 %v3010, 3
          %v4796 = vpop.permute.xlu0 %4795
          %4797 = vrot.lane.b32.xlu0 %v3011, 3
          %v4798 = vpop.permute.xlu0 %4797
          %4799 = vrot.lane.b32.xlu0 %v3012, 3
          %v4800 = vpop.permute.xlu0 %4799
          %4801 = vrot.lane.b32.xlu0 %v3013, 3
          %v4802 = vpop.permute.xlu0 %4801
          %4803 = vrot.lane.b32.xlu0 %v3014, 3
          %v4804 = vpop.permute.xlu0 %4803
          %4805 = vrot.lane.b32.xlu0 %v3015, 3
          %v4806 = vpop.permute.xlu0 %4805
          %4807 = vrot.lane.b32.xlu0 %v3016, 3
          %v4808 = vpop.permute.xlu0 %4807
          %4809 = vrot.lane.b32.xlu0 %v3017, 3
          %v4810 = vpop.permute.xlu0 %4809
          %4811 = vrot.lane.b32.xlu0 %v3018, 3
          %v4812 = vpop.permute.xlu0 %4811
          %4813 = vrot.lane.b32.xlu0 %v3019, 3
          %v4814 = vpop.permute.xlu0 %4813
          %4815 = vrot.lane.b32.xlu0 %v3020, 3
          %v4816 = vpop.permute.xlu0 %4815
          %4817 = vrot.lane.b32.xlu0 %v3021, 3
          %v4818 = vpop.permute.xlu0 %4817
          %4819 = vrot.lane.b32.xlu0 %v3022, 3
          %v4820 = vpop.permute.xlu0 %4819
          %4821 = vrot.lane.b32.xlu0 %v3023, 3
          %v4822 = vpop.permute.xlu0 %4821
          %4823 = vrot.lane.b32.xlu0 %v3024, 3
          %v4824 = vpop.permute.xlu0 %4823
          %4825 = vrot.lane.b32.xlu0 %v3025, 3
          %v4826 = vpop.permute.xlu0 %4825
          %v4843 = vadd.f32 %v3826, %v4796
          %v4844 = vadd.f32 %v3827, %v4798
          %v4845 = vadd.f32 %v3828, %v4800
          %v4846 = vadd.f32 %v3829, %v4802
          %v4847 = vadd.f32 %v3830, %v4804
          %v4848 = vadd.f32 %v3831, %v4806
          %v4849 = vadd.f32 %v3832, %v4808
          %v4850 = vadd.f32 %v3833, %v4810
          %v4851 = vadd.f32 %v3834, %v4812
          %v4852 = vadd.f32 %v3835, %v4814
          %v4853 = vadd.f32 %v3836, %v4816
          %v4854 = vadd.f32 %v3837, %v4818
          %v4855 = vadd.f32 %v3838, %v4820
          %v4856 = vadd.f32 %v3839, %v4822
          %v4857 = vadd.f32 %v3840, %v4824
          %v4858 = vadd.f32 %v3841, %v4826
          %v4859 = vadd.f32 %v4002, %v4796
          %v4860 = vadd.f32 %v4003, %v4798
          %v4861 = vadd.f32 %v4004, %v4800
          %v4862 = vadd.f32 %v4005, %v4802
          %v4863 = vadd.f32 %v4006, %v4804
          %v4864 = vadd.f32 %v4007, %v4806
          %v4865 = vadd.f32 %v4008, %v4808
          %v4866 = vadd.f32 %v4009, %v4810
          %v4867 = vadd.f32 %v4010, %v4812
          %v4868 = vadd.f32 %v4011, %v4814
          %v4869 = vadd.f32 %v4012, %v4816
          %v4870 = vadd.f32 %v4013, %v4818
          %v4871 = vadd.f32 %v4014, %v4820
          %v4872 = vadd.f32 %v4015, %v4822
          %v4873 = vadd.f32 %v4016, %v4824
          %v4874 = vadd.f32 %v4017, %v4826
          %v4875 = vmax.f32 %v4859, 1.0
          %v4876 = vmax.f32 %v4860, 1.0
          %v4877 = vmax.f32 %v4861, 1.0
          %v4878 = vmax.f32 %v4862, 1.0
          %v4879 = vmax.f32 %v4863, 1.0
          %v4880 = vmax.f32 %v4864, 1.0
          %v4881 = vmax.f32 %v4865, 1.0
          %v4882 = vmax.f32 %v4866, 1.0
          %v4883 = vmax.f32 %v4867, 1.0
          %v4884 = vmax.f32 %v4868, 1.0
          %v4885 = vmax.f32 %v4869, 1.0
          %v4886 = vmax.f32 %v4870, 1.0
          %v4887 = vmax.f32 %v4871, 1.0
          %v4888 = vmax.f32 %v4872, 1.0
          %v4889 = vmax.f32 %v4873, 1.0
          %v4890 = vmax.f32 %v4874, 1.0
          %v4891 = vrcp.pop %v4875
          %v4892 = vmul.f32 %v4843, %v4891
          %v4893 = vrcp.pop %v4876
          %v4894 = vmul.f32 %v4844, %v4893
          %v4895 = vrcp.pop %v4877
          %v4896 = vmul.f32 %v4845, %v4895
          %v4897 = vrcp.pop %v4878
          %v4898 = vmul.f32 %v4846, %v4897
          %v4899 = vrcp.pop %v4879
          %v4900 = vmul.f32 %v4847, %v4899
          %v4901 = vrcp.pop %v4880
          %v4902 = vmul.f32 %v4848, %v4901
          %v4903 = vrcp.pop %v4881
          %v4904 = vmul.f32 %v4849, %v4903
          %v4905 = vrcp.pop %v4882
          %v4906 = vmul.f32 %v4850, %v4905
          %v4907 = vrcp.pop %v4883
          %v4908 = vmul.f32 %v4851, %v4907
          %v4909 = vrcp.pop %v4884
          %v4910 = vmul.f32 %v4852, %v4909
          %v4911 = vrcp.pop %v4885
          %v4912 = vmul.f32 %v4853, %v4911
          %v4913 = vrcp.pop %v4886
          %v4914 = vmul.f32 %v4854, %v4913
          %v4915 = vrcp.pop %v4887
          %v4916 = vmul.f32 %v4855, %v4915
          %v4917 = vrcp.pop %v4888
          %v4918 = vmul.f32 %v4856, %v4917
          %v4919 = vrcp.pop %v4889
          %v4920 = vmul.f32 %v4857, %v4919
          %v4921 = vrcp.pop %v4890
          %v4922 = vmul.f32 %v4858, %v4921
          %v4923 = vsub.f32 1.0, %v4892
          %v4924 = vsub.f32 1.0, %v4894
          %v4925 = vsub.f32 1.0, %v4896
          %v4926 = vsub.f32 1.0, %v4898
          %v4927 = vsub.f32 1.0, %v4900
          %v4928 = vsub.f32 1.0, %v4902
          %v4929 = vsub.f32 1.0, %v4904
          %v4930 = vsub.f32 1.0, %v4906
          %v4931 = vsub.f32 1.0, %v4908
          %v4932 = vsub.f32 1.0, %v4910
          %v4933 = vsub.f32 1.0, %v4912
          %v4934 = vsub.f32 1.0, %v4914
          %v4935 = vsub.f32 1.0, %v4916
          %v4936 = vsub.f32 1.0, %v4918
          %v4937 = vsub.f32 1.0, %v4920
          %v4938 = vsub.f32 1.0, %v4922
          %v4939 = vsub.f32 %v3970, %v4923
          %v4940 = vsub.f32 %v3971, %v4924
          %v4941 = vsub.f32 %v3972, %v4925
          %v4942 = vsub.f32 %v3973, %v4926
          %v4943 = vsub.f32 %v3974, %v4927
          %v4944 = vsub.f32 %v3975, %v4928
          %v4945 = vsub.f32 %v3976, %v4929
          %v4946 = vsub.f32 %v3977, %v4930
          %v4947 = vsub.f32 %v3978, %v4931
          %v4948 = vsub.f32 %v3979, %v4932
          %v4949 = vsub.f32 %v3980, %v4933
          %v4950 = vsub.f32 %v3981, %v4934
          %v4951 = vsub.f32 %v3982, %v4935
          %v4952 = vsub.f32 %v3983, %v4936
          %v4953 = vsub.f32 %v3984, %v4937
          %v4954 = vsub.f32 %v3985, %v4938
          %4971 = vrot.lane.b32.xlu0 %v4939, 125
          %v4972 = vpop.permute.xlu0 %4971
          %4973 = vrot.lane.b32.xlu0 %v4940, 125
          %v4974 = vpop.permute.xlu0 %4973
          %4975 = vrot.lane.b32.xlu0 %v4941, 125
          %v4976 = vpop.permute.xlu0 %4975
          %4977 = vrot.lane.b32.xlu0 %v4942, 125
          %v4978 = vpop.permute.xlu0 %4977
          %4979 = vrot.lane.b32.xlu0 %v4943, 125
          %v4980 = vpop.permute.xlu0 %4979
          %4981 = vrot.lane.b32.xlu0 %v4944, 125
          %v4982 = vpop.permute.xlu0 %4981
          %4983 = vrot.lane.b32.xlu0 %v4945, 125
          %v4984 = vpop.permute.xlu0 %4983
          %4985 = vrot.lane.b32.xlu0 %v4946, 125
          %v4986 = vpop.permute.xlu0 %4985
          %4987 = vrot.lane.b32.xlu0 %v4947, 125
          %v4988 = vpop.permute.xlu0 %4987
          %4989 = vrot.lane.b32.xlu0 %v4948, 125
          %v4990 = vpop.permute.xlu0 %4989
          %4991 = vrot.lane.b32.xlu0 %v4949, 125
          %v4992 = vpop.permute.xlu0 %4991
          %4993 = vrot.lane.b32.xlu0 %v4950, 125
          %v4994 = vpop.permute.xlu0 %4993
          %4995 = vrot.lane.b32.xlu0 %v4951, 125
          %v4996 = vpop.permute.xlu0 %4995
          %4997 = vrot.lane.b32.xlu0 %v4952, 125
          %v4998 = vpop.permute.xlu0 %4997
          %4999 = vrot.lane.b32.xlu0 %v4953, 125
          %v5000 = vpop.permute.xlu0 %4999
          %5001 = vrot.lane.b32.xlu0 %v4954, 125
          %v5002 = vpop.permute.xlu0 %5001
          %v5019 = vmul.f32 %v3090, %v4972
          %v5020 = vmul.f32 %v3091, %v4974
          %v5021 = vmul.f32 %v3092, %v4976
          %v5022 = vmul.f32 %v3093, %v4978
          %v5023 = vmul.f32 %v3094, %v4980
          %v5024 = vmul.f32 %v3095, %v4982
          %v5025 = vmul.f32 %v3096, %v4984
          %v5026 = vmul.f32 %v3097, %v4986
          %v5027 = vmul.f32 %v3098, %v4988
          %v5028 = vmul.f32 %v3099, %v4990
          %v5029 = vmul.f32 %v3100, %v4992
          %v5030 = vmul.f32 %v3101, %v4994
          %v5031 = vmul.f32 %v3102, %v4996
          %v5032 = vmul.f32 %v3103, %v4998
          %v5033 = vmul.f32 %v3104, %v5000
          %v5034 = vmul.f32 %v3105, %v5002
          %v5035 = vsel %vm4130, %v5019, 0.0
          %v5036 = vsel %vm4130, %v5020, 0.0
          %v5037 = vadd.f32 %v5035, %v5036
          %v5038 = vsel %vm4130, %v5021, 0.0
          %v5039 = vadd.f32 %v5037, %v5038
          %v5040 = vsel %vm4130, %v5022, 0.0
          %v5041 = vadd.f32 %v5039, %v5040
          %v5042 = vsel %vm4130, %v5023, 0.0
          %v5043 = vadd.f32 %v5041, %v5042
          %v5044 = vsel %vm4130, %v5024, 0.0
          %v5045 = vadd.f32 %v5043, %v5044
          %v5046 = vsel %vm4130, %v5025, 0.0
          %v5047 = vadd.f32 %v5045, %v5046
          %v5048 = vsel %vm4130, %v5026, 0.0
          %v5049 = vadd.f32 %v5047, %v5048
          %v5050 = vsel %vm4130, %v5027, 0.0
          %v5051 = vadd.f32 %v5049, %v5050
          %v5052 = vsel %vm4130, %v5028, 0.0
          %v5053 = vadd.f32 %v5051, %v5052
          %v5054 = vsel %vm4130, %v5029, 0.0
          %v5055 = vadd.f32 %v5053, %v5054
          %v5056 = vsel %vm4130, %v5030, 0.0
          %v5057 = vadd.f32 %v5055, %v5056
          %v5058 = vsel %vm4130, %v5031, 0.0
          %v5059 = vadd.f32 %v5057, %v5058
          %v5060 = vsel %vm4130, %v5032, 0.0
          %v5061 = vadd.f32 %v5059, %v5060
          %v5062 = vsel %vm4130, %v5033, 0.0
          %v5063 = vadd.f32 %v5061, %v5062
          %v5064 = vsel %vm4130, %v5034, 0.0
          %v5065 = vadd.f32 %v5063, %v5064
          %v5066 = vrot.slane %v5065, 4
          %v5067 = vadd.f32 %v5065, %v5066
          %v5068 = vrot.slane %v5067, 2
          %v5069 = vadd.f32 %v5067, %v5068
          %v5070 = vrot.slane %v5069, 1
          %v5071 = vadd.f32 %v5069, %v5070
          %vm5072 = vmand %vm4168, %vm3380
          %5074 = vset.pattern.permute.xlu0 0
          %5075 = vperm.xlu0 %5074, %v5071
          %v5076 = vpop.permute.xlu0 %5075
          %v5078 = vsel %vm5072, %v5076, 0.0
          %v5079 = vadd.f32 %v4778, %v5078
          %5080 = vst [vmem:[%s319] sm:$0xff] %v5079
        $region52: #{tpu_custom_call.1} parent=43 // pred_fallthru
          _
        %s5081 = sand.u32 %s191, 1
        %s5082 = scalar_lea.sflag [#allocation4], %s5081
        %s5083 = sand.u32 %s191, 1
        %s5084 = smul.addr %s5083, 8
        %s5085 = scalar_lea.vmem [#allocation3], %s5084
        // Predicated region
        $region53: #{tpu_custom_call.1} parent=43 // pred_check
          %p5086 = pneg %p201
        $region54: #{tpu_custom_call.1} parent=43 // pred_check_branch
          %5088 = sbr.rel (%p5086) target = $region56
        $region55: #{tpu_custom_call.1} parent=43 // pred_region
          %s5090 = ssub.s32 128, 128
          %5091 = vsyncadd %s5082, %s5090
          %s5092 = smul.addr %s24, 128
          %s5093 = scalar_lea.hbm %s6, %s5092
          %s5095 = sshll.u32 %s5085, 4
          %s5096 = int_to_ptr.vmem [resolvable:$true] %s5095
          %5098 = dma.vmem_to_hbm [thread:$0]  %s5096, 128, %s5093, %s5082
        $region56: #{tpu_custom_call.1} parent=43 // pred_fallthru
          _
      $region44: #{tpu_custom_call.1} parent=5 // pred_fallthru
        _
      %p5099 = scmp.le.s32.totalorder 2, %s15
      // Predicated region
      $region57: #{tpu_custom_call.1} parent=5 // pred_check
        %p5100 = pneg %p5099
      $region58: #{tpu_custom_call.1} parent=5 // pred_check_branch
        %5102 = sbr.rel (%p5100) target = $region60
      $region59: #{tpu_custom_call.1} parent=5 // pred_region
        %s5103 = ssub.s32 %s15, 2
        // Predicated region
        $region61: #{tpu_custom_call.1} parent=59 // pred_check
          %p5104 = pneg %p207
        $region62: #{tpu_custom_call.1} parent=59 // pred_check_branch
          %5106 = sbr.rel (%p5104) target = $region64
        $region63: #{tpu_custom_call.1} parent=59 // pred_region
          %s5107 = sand.u32 %s192, 1
          %s5108 = scalar_lea.sflag [#allocation4], %s5107
          %s5109 = sand.u32 %s192, 1
          %s5110 = smul.addr %s5109, 8
          %s5111 = scalar_lea.vmem [#allocation3], %s5110
          %5112 = dma.done %s5108, 128
        $region64: #{tpu_custom_call.1} parent=59 // pred_fallthru
          _
      $region60: #{tpu_custom_call.1} parent=5 // pred_fallthru
        _
    $region6: #{tpu_custom_call.1} parent=1 // loop_footer
      %s19 = sadd.s32 1, %s15
    $region7: #{tpu_custom_call.1} parent=1 // loop_footer_branch
      %14 = sbr.rel target = $region3
    $region8: #{tpu_custom_call.1} parent=1 // loop_exit
      _
    %5113 = vsyncpa [#allocation4], 1
    %s5114 = scalar_lea.sflag [#allocation4], 1
    %5115 = vsyncpa %s5114, 1

</llo_original>
